<compile_context>
chip_gen: v6e
topology: v6e:2x2x1
jax: 0.10.0
libtpu: 0.0.40
codegen_flags: <defaults>
</compile_context>

<pallas_src>
import functools

import jax
import jax.numpy as jnp
from jax import lax
from jax.experimental import pallas as pl
from jax.experimental.pallas import tpu as pltpu

EPS = 1e-5  # torch.nn.LayerNorm default eps


def _layernorm(v, g, b):
    mu = jnp.mean(v, axis=-1, keepdims=True)
    var = jnp.mean((v - mu) ** 2, axis=-1, keepdims=True)   # biased, like torch
    return (v - mu) * lax.rsqrt(var + EPS) * g + b


# --------------------------- fused ViT kernel ---------------------------
def vit_kernel(patches_ref, pw_ref, pb_ref, cls_ref, pos_ref,
               ln1g_ref, ln1b_ref, wqkv_ref, bqkv_ref, wo_ref, bo_ref,
               ln2g_ref, ln2b_ref, w1_ref, b1_ref, w2_ref, b2_ref,
               hg_ref, hb_ref, hw_ref, hbias_ref,
               o_ref, x_vmem,
               *, num_heads, num_layers, activation):
    l = pl.program_id(1)
    Bt, S, E = x_vmem.shape
    H = num_heads
    Dh = E // H
    scale = 1.0 / (Dh ** 0.5)

    # ---- patch embedding + cls + pos embed (first layer step only) ----
    @pl.when(l == 0)
    def _():
        pw = pw_ref[...]                                   # (C*P*P, E)
        pb = pb_ref[...]                                   # (1, E)
        pos = pos_ref[...]                                 # (S, E)
        cls_row = cls_ref[...] + pos[0:1, :]               # (1, E)
        pos_rest = pos[1:, :]                              # (N, E)
        for b in range(Bt):
            emb = jnp.dot(patches_ref[b], pw,
                          preferred_element_type=jnp.float32) + pb   # (N, E)
            x_vmem[b, 0:1, :] = cls_row
            x_vmem[b, 1:, :] = emb + pos_rest
        # TODO(synk): nn.Dropout after pos-embed is eval-mode identity here.

    # ---- one pre-norm transformer encoder layer (weights of layer `l`) ----
    ln1g = ln1g_ref[0]; ln1b = ln1b_ref[0]
    wqkv = wqkv_ref[0]; bqkv = bqkv_ref[0]                 # (E, 3E), (1, 3E)
    wo = wo_ref[0];     bo = bo_ref[0]
    ln2g = ln2g_ref[0]; ln2b = ln2b_ref[0]
    w1 = w1_ref[0];     b1 = b1_ref[0]
    w2 = w2_ref[0];     b2 = b2_ref[0]

    for b in range(Bt):
        xb = x_vmem[b]                                     # (S, E)

        # --- self-attention block: x = x + MHA(LN1(x)) ---
        xn = _layernorm(xb, ln1g, ln1b)
        qkv = jnp.dot(xn, wqkv, preferred_element_type=jnp.float32) + bqkv  # (S, 3E)
        q = qkv[:, 0:E] * scale
        k = qkv[:, E:2 * E]
        v = qkv[:, 2 * E:3 * E]

        attn = jnp.zeros((S, E), jnp.float32)
        for h in range(H):
            sl = slice(h * Dh, (h + 1) * Dh)
            qh, kh, vh = q[:, sl], k[:, sl], v[:, sl]      # (S, Dh)
            # q @ k^T without materializing a transpose: contract Dh of both.
            sc = lax.dot_general(qh, kh, (((1,), (1,)), ((), ())),
                                 preferred_element_type=jnp.float32)  # (S, S)
            sc = sc - jnp.max(sc, axis=-1, keepdims=True)
            p = jnp.exp(sc)
            p = p * pl.reciprocal(jnp.sum(p, axis=-1, keepdims=True), approx=True)
            oh = jnp.dot(p, vh, preferred_element_type=jnp.float32)   # (S, Dh)
            # concat-free head merge: accumulate through this head's rows of wo.
            attn = attn + jnp.dot(oh, wo[sl, :],
                                  preferred_element_type=jnp.float32)
        xb = xb + attn + bo

        # --- feed-forward block: x = x + FFN(LN2(x)) ---
        xn2 = _layernorm(xb, ln2g, ln2b)
        h1 = jnp.dot(xn2, w1, preferred_element_type=jnp.float32) + b1
        if activation == "relu":
            h1 = jnp.maximum(h1, 0.0)
        else:  # exact erf-based gelu (torch F.gelu default)
            h1 = 0.5 * h1 * (1.0 + lax.erf(h1 * (1.0 / jnp.sqrt(jnp.float32(2.0)))))
        xb = xb + jnp.dot(h1, w2, preferred_element_type=jnp.float32) + b2

        x_vmem[b] = xb
        # TODO(synk): dropout inside attention/FFN is eval-mode identity here.

    # ---- MLP head on the cls token (last layer step only) ----
    @pl.when(l == num_layers - 1)
    def _():
        hg = hg_ref[...]; hbn = hb_ref[...]
        hw = hw_ref[...]; hbias = hbias_ref[...]
        for b in range(Bt):
            cn = _layernorm(x_vmem[b, 0:1, :], hg, hbn)    # (1, E)
            o_ref[b:b + 1, :] = (jnp.dot(cn, hw, preferred_element_type=jnp.float32)
                                 + hbias)


# ------------------------------- wrapper -------------------------------
def extract_patches(x, patch_size):
    # x: (B, C, H, W) NCHW -> (B, num_patches, C*P*P); matches Conv2d's
    # (C, P, P) flatten order and row-major patch order.
    B, C, Himg, Wimg = x.shape
    P = patch_size
    hp, wp = Himg // P, Wimg // P
    x = x.reshape(B, C, hp, P, wp, P)
    x = x.transpose(0, 2, 4, 1, 3, 5)                      # (B, hp, wp, C, P, P)
    return x.reshape(B, hp * wp, C * P * P)


def vit_forward(x_nchw, params, *, patch_size, num_heads, activation):
    patches = extract_patches(x_nchw, patch_size)
    B, N, CPP = patches.shape
    E = params["patch_w"].shape[1]
    S = N + 1
    L = params["wqkv"].shape[0]
    NCLS = params["head_w"].shape[1]

    Bt = B if B <= 8 else 8                                # rows per grid step
    assert B % Bt == 0, "batch must be divisible by the batch tile"
    nb = B // Bt

    c2 = lambda shape: pl.BlockSpec(tuple(shape), lambda b, l: (0, 0))
    lyr = lambda shape: pl.BlockSpec((1,) + tuple(shape[1:]),
                                     lambda b, l: (l, 0, 0))

    kernel = functools.partial(vit_kernel, num_heads=num_heads,
                               num_layers=L, activation=activation)

    return pl.pallas_call(
        kernel,
        out_shape=jax.ShapeDtypeStruct((B, NCLS), jnp.float32),
        grid_spec=pltpu.PrefetchScalarGridSpec(
            num_scalar_prefetch=0,
            grid=(nb, L),                                  # (batch blocks, layers)
            in_specs=[
                pl.BlockSpec((Bt, N, CPP), lambda b, l: (b, 0, 0)),
                c2(params["patch_w"].shape), c2(params["patch_b"].shape),
                c2(params["cls"].shape), c2(params["pos"].shape),
                lyr(params["ln1_g"].shape), lyr(params["ln1_b"].shape),
                lyr(params["wqkv"].shape), lyr(params["bqkv"].shape),
                lyr(params["wo"].shape), lyr(params["bo"].shape),
                lyr(params["ln2_g"].shape), lyr(params["ln2_b"].shape),
                lyr(params["w1"].shape), lyr(params["b1"].shape),
                lyr(params["w2"].shape), lyr(params["b2"].shape),
                c2(params["head_ln_g"].shape), c2(params["head_ln_b"].shape),
                c2(params["head_w"].shape), c2(params["head_b"].shape),
            ],
            out_specs=pl.BlockSpec((Bt, NCLS), lambda b, l: (b, 0)),
            scratch_shapes=[pltpu.VMEM((Bt, S, E), jnp.float32)],
        ),
        compiler_params=pltpu.CompilerParams(
            dimension_semantics=("parallel", "arbitrary")),
    )(patches,
      params["patch_w"], params["patch_b"], params["cls"], params["pos"],
      params["ln1_g"], params["ln1_b"], params["wqkv"], params["bqkv"],
      params["wo"], params["bo"], params["ln2_g"], params["ln2_b"],
      params["w1"], params["b1"], params["w2"], params["b2"],
      params["head_ln_g"], params["head_ln_b"],
      params["head_w"], params["head_b"])


def init_params(key, *, in_channels, patch_size, num_patches, embed_dim,
                hidden_dim, num_encoders, num_classes):
    E, F, P, C, L = embed_dim, hidden_dim, patch_size, in_channels, num_encoders
    S = num_patches + 1
    keys = iter(jax.random.split(key, 16))
    nrm = lambda shape, s=0.02: jax.random.normal(next(keys), shape, jnp.float32) * s
    return {
        # Conv2d weight (E, C, P, P) flattened over (C,P,P), transposed -> (C*P*P, E)
        "patch_w": nrm((C * P * P, E)),
        "patch_b": jnp.zeros((1, E), jnp.float32),
        "cls": nrm((1, E), 1.0),                    # torch.randn(1, 1, E)
        "pos": nrm((S, E), 1.0),                    # torch.randn(1, S, E)
        # per-layer weights stacked with a leading layer dim; QKV fused to (E, 3E)
        "ln1_g": jnp.ones((L, 1, E), jnp.float32), "ln1_b": jnp.zeros((L, 1, E), jnp.float32),
        "wqkv": nrm((L, E, 3 * E)), "bqkv": jnp.zeros((L, 1, 3 * E), jnp.float32),
        "wo": nrm((L, E, E)), "bo": jnp.zeros((L, 1, E), jnp.float32),
        "ln2_g": jnp.ones((L, 1, E), jnp.float32), "ln2_b": jnp.zeros((L, 1, E), jnp.float32),
        "w1": nrm((L, E, F)), "b1": jnp.zeros((L, 1, F), jnp.float32),
        "w2": nrm((L, F, E)), "b2": jnp.zeros((L, 1, E), jnp.float32),
        "head_ln_g": jnp.ones((1, E), jnp.float32),
        "head_ln_b": jnp.zeros((1, E), jnp.float32),
        "head_w": nrm((E, num_classes)),
        "head_b": jnp.zeros((1, num_classes), jnp.float32),
    }


if __name__ == "__main__":
    # Small config implied by the module: img 16x16, patch 4 -> 16 patches (+cls = 17 tokens)
    B, C, IMG, P = 2, 4, 16, 4
    N = (IMG // P) ** 2
    E, HEADS, F, L, NCLS = 32, 4, 64, 2, 10

    key = jax.random.PRNGKey(0)
    kx, kp = jax.random.split(key)
    x = jax.random.normal(kx, (B, C, IMG, IMG), jnp.float32)
    params = init_params(kp, in_channels=C, patch_size=P, num_patches=N,
                         embed_dim=E, hidden_dim=F, num_encoders=L, num_classes=NCLS)

    fwd = jax.jit(functools.partial(vit_forward, patch_size=P,
                                    num_heads=HEADS, activation="relu"))
    out = fwd(x, params)
    out = jax.block_until_ready(out)
    assert out.shape == (B, NCLS) and out.dtype == jnp.float32
    print("KERNEL_OK")
</pallas_src>

<mosaic_0001>
module attributes {stable_mosaic.version = 11 : i64} {
  func.func @vit_kernel(%arg0: i32, %arg1: i32, %arg2: memref<2x16x64xf32, #tpu.memory_space<vmem>>, %arg3: memref<64x32xf32, #tpu.memory_space<vmem>>, %arg4: memref<1x32xf32, #tpu.memory_space<vmem>>, %arg5: memref<1x32xf32, #tpu.memory_space<vmem>>, %arg6: memref<17x32xf32, #tpu.memory_space<vmem>>, %arg7: memref<1x1x32xf32, #tpu.memory_space<vmem>>, %arg8: memref<1x1x32xf32, #tpu.memory_space<vmem>>, %arg9: memref<1x32x96xf32, #tpu.memory_space<vmem>>, %arg10: memref<1x1x96xf32, #tpu.memory_space<vmem>>, %arg11: memref<1x32x32xf32, #tpu.memory_space<vmem>>, %arg12: memref<1x1x32xf32, #tpu.memory_space<vmem>>, %arg13: memref<1x1x32xf32, #tpu.memory_space<vmem>>, %arg14: memref<1x1x32xf32, #tpu.memory_space<vmem>>, %arg15: memref<1x32x64xf32, #tpu.memory_space<vmem>>, %arg16: memref<1x1x64xf32, #tpu.memory_space<vmem>>, %arg17: memref<1x64x32xf32, #tpu.memory_space<vmem>>, %arg18: memref<1x1x32xf32, #tpu.memory_space<vmem>>, %arg19: memref<1x32xf32, #tpu.memory_space<vmem>>, %arg20: memref<1x32xf32, #tpu.memory_space<vmem>>, %arg21: memref<32x10xf32, #tpu.memory_space<vmem>>, %arg22: memref<1x10xf32, #tpu.memory_space<vmem>>, %arg23: memref<2x10xf32, #tpu.memory_space<vmem>>, %arg24: memref<2x17x32xf32, #tpu.memory_space<vmem>>) attributes {dimension_semantics = [#tpu.dimension_semantics<parallel>, #tpu.dimension_semantics<arbitrary>], iteration_bounds = array<i64: 1, 2>, scalar_prefetch = 0 : i64, scratch_operands = 1 : i64, tpu.core_type = #tpu.core_type<tc>, window_params = [{transform_indices = @transform_0, window_bounds = array<i64: 2, 16, 64>}, {pipeline_mode = #tpu.pipeline_mode<synchronous>, transform_indices = @transform_1, window_bounds = array<i64: 64, 32>}, {pipeline_mode = #tpu.pipeline_mode<synchronous>, transform_indices = @transform_2, window_bounds = array<i64: 1, 32>}, {pipeline_mode = #tpu.pipeline_mode<synchronous>, transform_indices = @transform_3, window_bounds = array<i64: 1, 32>}, {pipeline_mode = #tpu.pipeline_mode<synchronous>, transform_indices = @transform_4, window_bounds = array<i64: 17, 32>}, {transform_indices = @transform_5, window_bounds = array<i64: 1, 1, 32>}, {transform_indices = @transform_6, window_bounds = array<i64: 1, 1, 32>}, {transform_indices = @transform_7, window_bounds = array<i64: 1, 32, 96>}, {transform_indices = @transform_8, window_bounds = array<i64: 1, 1, 96>}, {transform_indices = @transform_9, window_bounds = array<i64: 1, 32, 32>}, {transform_indices = @transform_10, window_bounds = array<i64: 1, 1, 32>}, {transform_indices = @transform_11, window_bounds = array<i64: 1, 1, 32>}, {transform_indices = @transform_12, window_bounds = array<i64: 1, 1, 32>}, {transform_indices = @transform_13, window_bounds = array<i64: 1, 32, 64>}, {transform_indices = @transform_14, window_bounds = array<i64: 1, 1, 64>}, {transform_indices = @transform_15, window_bounds = array<i64: 1, 64, 32>}, {transform_indices = @transform_16, window_bounds = array<i64: 1, 1, 32>}, {pipeline_mode = #tpu.pipeline_mode<synchronous>, transform_indices = @transform_17, window_bounds = array<i64: 1, 32>}, {pipeline_mode = #tpu.pipeline_mode<synchronous>, transform_indices = @transform_18, window_bounds = array<i64: 1, 32>}, {pipeline_mode = #tpu.pipeline_mode<synchronous>, transform_indices = @transform_19, window_bounds = array<i64: 32, 10>}, {pipeline_mode = #tpu.pipeline_mode<synchronous>, transform_indices = @transform_20, window_bounds = array<i64: 1, 10>}, {transform_indices = @transform_21, window_bounds = array<i64: 2, 10>}]} {
    %c0_i32 = arith.constant 0 : i32
    %0 = arith.cmpi eq, %arg1, %c0_i32 : i32
    %1 = arith.extui %0 : i1 to i32
    %c0_i32_0 = arith.constant 0 : i32
    %2 = arith.cmpi ne, %1, %c0_i32_0 : i32
    scf.if %2 {
      %c0_119 = arith.constant 0 : index
      %c0_120 = arith.constant 0 : index
      %314 = vector.load %arg3[%c0_119, %c0_120] : memref<64x32xf32, #tpu.memory_space<vmem>>, vector<64x32xf32>
      %c0_121 = arith.constant 0 : index
      %c0_122 = arith.constant 0 : index
      %315 = vector.load %arg4[%c0_121, %c0_122] : memref<1x32xf32, #tpu.memory_space<vmem>>, vector<1x32xf32>
      %c0_123 = arith.constant 0 : index
      %c0_124 = arith.constant 0 : index
      %316 = vector.load %arg6[%c0_123, %c0_124] : memref<17x32xf32, #tpu.memory_space<vmem>>, vector<17x32xf32>
      %c0_125 = arith.constant 0 : index
      %c0_126 = arith.constant 0 : index
      %317 = vector.load %arg5[%c0_125, %c0_126] : memref<1x32xf32, #tpu.memory_space<vmem>>, vector<1x32xf32>
      %318 = vector.extract_strided_slice %316 {offsets = [0, 0], sizes = [1, 32], strides = [1, 1]} : vector<17x32xf32> to vector<1x32xf32>
      %319 = arith.addf %317, %318 : vector<1x32xf32>
      %320 = vector.extract_strided_slice %316 {offsets = [1, 0], sizes = [16, 32], strides = [1, 1]} : vector<17x32xf32> to vector<16x32xf32>
      %c0_127 = arith.constant 0 : index
      %c0_128 = arith.constant 0 : index
      %c0_129 = arith.constant 0 : index
      %321 = vector.load %arg2[%c0_127, %c0_128, %c0_129] : memref<2x16x64xf32, #tpu.memory_space<vmem>>, vector<1x16x64xf32>
      %322 = vector.shape_cast %321 : vector<1x16x64xf32> to vector<16x64xf32>
      %cst_130 = arith.constant dense<0.000000e+00> : vector<16x32xf32>
      %323 = tpu.matmul %322, %314, %cst_130 {dimension_numbers = #tpu.dot_dimension_numbers<[1], [0], [0], [1], [0, 0, 1, 1], [], []>} : vector<16x64xf32>, vector<64x32xf32>, vector<16x32xf32> -> vector<16x32xf32>
      %324 = vector.broadcast %315 : vector<1x32xf32> to vector<16x32xf32>
      %325 = arith.addf %323, %324 : vector<16x32xf32>
      %c0_131 = arith.constant 0 : index
      %c0_132 = arith.constant 0 : index
      %c0_133 = arith.constant 0 : index
      %326 = vector.load %arg24[%c0_131, %c0_132, %c0_133] : memref<2x17x32xf32, #tpu.memory_space<vmem>>, vector<1x1x32xf32>
      %327 = vector.shape_cast %326 : vector<1x1x32xf32> to vector<1x32xf32>
      %328 = vector.shape_cast %319 : vector<1x32xf32> to vector<1x1x32xf32>
      tpu.vector_store %arg24[%c0_131, %c0_132, %c0_133], %328 {strides = array<i32>} : memref<2x17x32xf32, #tpu.memory_space<vmem>>, vector<1x1x32xf32>,
      %329 = arith.addf %325, %320 : vector<16x32xf32>
      %c0_134 = arith.constant 0 : index
      %c1_135 = arith.constant 1 : index
      %c0_136 = arith.constant 0 : index
      %330 = vector.load %arg24[%c0_134, %c1_135, %c0_136] : memref<2x17x32xf32, #tpu.memory_space<vmem>>, vector<1x16x32xf32>
      %331 = vector.shape_cast %330 : vector<1x16x32xf32> to vector<16x32xf32>
      %332 = vector.shape_cast %329 : vector<16x32xf32> to vector<1x16x32xf32>
      tpu.vector_store %arg24[%c0_134, %c1_135, %c0_136], %332 {strides = array<i32>} : memref<2x17x32xf32, #tpu.memory_space<vmem>>, vector<1x16x32xf32>,
      %c1_137 = arith.constant 1 : index
      %c0_138 = arith.constant 0 : index
      %c0_139 = arith.constant 0 : index
      %333 = vector.load %arg2[%c1_137, %c0_138, %c0_139] : memref<2x16x64xf32, #tpu.memory_space<vmem>>, vector<1x16x64xf32>
      %334 = vector.shape_cast %333 : vector<1x16x64xf32> to vector<16x64xf32>
      %cst_140 = arith.constant dense<0.000000e+00> : vector<16x32xf32>
      %335 = tpu.matmul %334, %314, %cst_140 {dimension_numbers = #tpu.dot_dimension_numbers<[1], [0], [0], [1], [0, 0, 1, 1], [], []>} : vector<16x64xf32>, vector<64x32xf32>, vector<16x32xf32> -> vector<16x32xf32>
      %336 = vector.broadcast %315 : vector<1x32xf32> to vector<16x32xf32>
      %337 = arith.addf %335, %336 : vector<16x32xf32>
      %c1_141 = arith.constant 1 : index
      %c0_142 = arith.constant 0 : index
      %c0_143 = arith.constant 0 : index
      %338 = vector.load %arg24[%c1_141, %c0_142, %c0_143] : memref<2x17x32xf32, #tpu.memory_space<vmem>>, vector<1x1x32xf32>
      %339 = vector.shape_cast %338 : vector<1x1x32xf32> to vector<1x32xf32>
      %340 = vector.shape_cast %319 : vector<1x32xf32> to vector<1x1x32xf32>
      tpu.vector_store %arg24[%c1_141, %c0_142, %c0_143], %340 {strides = array<i32>} : memref<2x17x32xf32, #tpu.memory_space<vmem>>, vector<1x1x32xf32>,
      %341 = arith.addf %337, %320 : vector<16x32xf32>
      %c1_144 = arith.constant 1 : index
      %c1_145 = arith.constant 1 : index
      %c0_146 = arith.constant 0 : index
      %342 = vector.load %arg24[%c1_144, %c1_145, %c0_146] : memref<2x17x32xf32, #tpu.memory_space<vmem>>, vector<1x16x32xf32>
      %343 = vector.shape_cast %342 : vector<1x16x32xf32> to vector<16x32xf32>
      %344 = vector.shape_cast %341 : vector<16x32xf32> to vector<1x16x32xf32>
      tpu.vector_store %arg24[%c1_144, %c1_145, %c0_146], %344 {strides = array<i32>} : memref<2x17x32xf32, #tpu.memory_space<vmem>>, vector<1x16x32xf32>,
    } else {
    }
    %c0 = arith.constant 0 : index
    %c0_1 = arith.constant 0 : index
    %c0_2 = arith.constant 0 : index
    %3 = vector.load %arg7[%c0, %c0_1, %c0_2] : memref<1x1x32xf32, #tpu.memory_space<vmem>>, vector<1x1x32xf32>
    %4 = vector.shape_cast %3 : vector<1x1x32xf32> to vector<1x32xf32>
    %c0_3 = arith.constant 0 : index
    %c0_4 = arith.constant 0 : index
    %c0_5 = arith.constant 0 : index
    %5 = vector.load %arg8[%c0_3, %c0_4, %c0_5] : memref<1x1x32xf32, #tpu.memory_space<vmem>>, vector<1x1x32xf32>
    %6 = vector.shape_cast %5 : vector<1x1x32xf32> to vector<1x32xf32>
    %c0_6 = arith.constant 0 : index
    %c0_7 = arith.constant 0 : index
    %c0_8 = arith.constant 0 : index
    %7 = vector.load %arg9[%c0_6, %c0_7, %c0_8] : memref<1x32x96xf32, #tpu.memory_space<vmem>>, vector<1x32x96xf32>
    %8 = vector.shape_cast %7 : vector<1x32x96xf32> to vector<32x96xf32>
    %c0_9 = arith.constant 0 : index
    %c0_10 = arith.constant 0 : index
    %c0_11 = arith.constant 0 : index
    %9 = vector.load %arg10[%c0_9, %c0_10, %c0_11] : memref<1x1x96xf32, #tpu.memory_space<vmem>>, vector<1x1x96xf32>
    %10 = vector.shape_cast %9 : vector<1x1x96xf32> to vector<1x96xf32>
    %c0_12 = arith.constant 0 : index
    %c0_13 = arith.constant 0 : index
    %c0_14 = arith.constant 0 : index
    %11 = vector.load %arg11[%c0_12, %c0_13, %c0_14] : memref<1x32x32xf32, #tpu.memory_space<vmem>>, vector<1x32x32xf32>
    %12 = vector.shape_cast %11 : vector<1x32x32xf32> to vector<32x32xf32>
    %c0_15 = arith.constant 0 : index
    %c0_16 = arith.constant 0 : index
    %c0_17 = arith.constant 0 : index
    %13 = vector.load %arg12[%c0_15, %c0_16, %c0_17] : memref<1x1x32xf32, #tpu.memory_space<vmem>>, vector<1x1x32xf32>
    %14 = vector.shape_cast %13 : vector<1x1x32xf32> to vector<1x32xf32>
    %c0_18 = arith.constant 0 : index
    %c0_19 = arith.constant 0 : index
    %c0_20 = arith.constant 0 : index
    %15 = vector.load %arg13[%c0_18, %c0_19, %c0_20] : memref<1x1x32xf32, #tpu.memory_space<vmem>>, vector<1x1x32xf32>
    %16 = vector.shape_cast %15 : vector<1x1x32xf32> to vector<1x32xf32>
    %c0_21 = arith.constant 0 : index
    %c0_22 = arith.constant 0 : index
    %c0_23 = arith.constant 0 : index
    %17 = vector.load %arg14[%c0_21, %c0_22, %c0_23] : memref<1x1x32xf32, #tpu.memory_space<vmem>>, vector<1x1x32xf32>
    %18 = vector.shape_cast %17 : vector<1x1x32xf32> to vector<1x32xf32>
    %c0_24 = arith.constant 0 : index
    %c0_25 = arith.constant 0 : index
    %c0_26 = arith.constant 0 : index
    %19 = vector.load %arg15[%c0_24, %c0_25, %c0_26] : memref<1x32x64xf32, #tpu.memory_space<vmem>>, vector<1x32x64xf32>
    %20 = vector.shape_cast %19 : vector<1x32x64xf32> to vector<32x64xf32>
    %c0_27 = arith.constant 0 : index
    %c0_28 = arith.constant 0 : index
    %c0_29 = arith.constant 0 : index
    %21 = vector.load %arg16[%c0_27, %c0_28, %c0_29] : memref<1x1x64xf32, #tpu.memory_space<vmem>>, vector<1x1x64xf32>
    %22 = vector.shape_cast %21 : vector<1x1x64xf32> to vector<1x64xf32>
    %c0_30 = arith.constant 0 : index
    %c0_31 = arith.constant 0 : index
    %c0_32 = arith.constant 0 : index
    %23 = vector.load %arg17[%c0_30, %c0_31, %c0_32] : memref<1x64x32xf32, #tpu.memory_space<vmem>>, vector<1x64x32xf32>
    %24 = vector.shape_cast %23 : vector<1x64x32xf32> to vector<64x32xf32>
    %c0_33 = arith.constant 0 : index
    %c0_34 = arith.constant 0 : index
    %c0_35 = arith.constant 0 : index
    %25 = vector.load %arg18[%c0_33, %c0_34, %c0_35] : memref<1x1x32xf32, #tpu.memory_space<vmem>>, vector<1x1x32xf32>
    %26 = vector.shape_cast %25 : vector<1x1x32xf32> to vector<1x32xf32>
    %c0_36 = arith.constant 0 : index
    %c0_37 = arith.constant 0 : index
    %c0_38 = arith.constant 0 : index
    %27 = vector.load %arg24[%c0_36, %c0_37, %c0_38] : memref<2x17x32xf32, #tpu.memory_space<vmem>>, vector<1x17x32xf32>
    %28 = vector.shape_cast %27 : vector<1x17x32xf32> to vector<17x32xf32>
    %cst = arith.constant dense<0.000000e+00> : vector<17xf32>
    %29 = vector.multi_reduction <add>, %28, %cst [1] : vector<17x32xf32> to vector<17xf32>
    %30 = vector.shape_cast %29 : vector<17xf32> to vector<17x1xf32>
    %cst_39 = arith.constant 3.200000e+01 : f32
    %31 = vector.broadcast %cst_39 : f32 to vector<17x1xf32>
    %32 = arith.divf %30, %31 : vector<17x1xf32>
    %33 = vector.broadcast %32 : vector<17x1xf32> to vector<17x32xf32>
    %34 = arith.subf %28, %33 : vector<17x32xf32>
    %35 = arith.mulf %34, %34 : vector<17x32xf32>
    %cst_40 = arith.constant dense<0.000000e+00> : vector<17xf32>
    %36 = vector.multi_reduction <add>, %35, %cst_40 [1] : vector<17x32xf32> to vector<17xf32>
    %37 = vector.shape_cast %36 : vector<17xf32> to vector<17x1xf32>
    %cst_41 = arith.constant 3.200000e+01 : f32
    %38 = vector.broadcast %cst_41 : f32 to vector<17x1xf32>
    %39 = arith.divf %37, %38 : vector<17x1xf32>
    %40 = vector.broadcast %32 : vector<17x1xf32> to vector<17x32xf32>
    %41 = arith.subf %28, %40 : vector<17x32xf32>
    %cst_42 = arith.constant 9.99999974E-6 : f32
    %42 = vector.broadcast %cst_42 : f32 to vector<17x1xf32>
    %43 = arith.addf %39, %42 : vector<17x1xf32>
    %44 = math.rsqrt %43 : vector<17x1xf32>
    %45 = vector.broadcast %44 : vector<17x1xf32> to vector<17x32xf32>
    %46 = arith.mulf %41, %45 : vector<17x32xf32>
    %47 = vector.broadcast %4 : vector<1x32xf32> to vector<17x32xf32>
    %48 = arith.mulf %46, %47 : vector<17x32xf32>
    %49 = vector.broadcast %6 : vector<1x32xf32> to vector<17x32xf32>
    %50 = arith.addf %48, %49 : vector<17x32xf32>
    %cst_43 = arith.constant dense<0.000000e+00> : vector<17x96xf32>
    %51 = tpu.matmul %50, %8, %cst_43 {dimension_numbers = #tpu.dot_dimension_numbers<[1], [0], [0], [1], [0, 0, 1, 1], [], []>} : vector<17x32xf32>, vector<32x96xf32>, vector<17x96xf32> -> vector<17x96xf32>
    %52 = vector.broadcast %10 : vector<1x96xf32> to vector<17x96xf32>
    %53 = arith.addf %51, %52 : vector<17x96xf32>
    %54 = vector.extract_strided_slice %53 {offsets = [0, 0], sizes = [17, 32], strides = [1, 1]} : vector<17x96xf32> to vector<17x32xf32>
    %cst_44 = arith.constant 0.353553385 : f32
    %55 = vector.broadcast %cst_44 : f32 to vector<17x32xf32>
    %56 = arith.mulf %54, %55 : vector<17x32xf32>
    %57 = vector.extract_strided_slice %53 {offsets = [0, 32], sizes = [17, 32], strides = [1, 1]} : vector<17x96xf32> to vector<17x32xf32>
    %58 = vector.extract_strided_slice %53 {offsets = [0, 64], sizes = [17, 32], strides = [1, 1]} : vector<17x96xf32> to vector<17x32xf32>
    %cst_45 = arith.constant 0.000000e+00 : f32
    %59 = vector.broadcast %cst_45 : f32 to vector<17x32xf32>
    %60 = vector.extract_strided_slice %56 {offsets = [0, 0], sizes = [17, 8], strides = [1, 1]} : vector<17x32xf32> to vector<17x8xf32>
    %61 = vector.extract_strided_slice %57 {offsets = [0, 0], sizes = [17, 8], strides = [1, 1]} : vector<17x32xf32> to vector<17x8xf32>
    %62 = vector.extract_strided_slice %58 {offsets = [0, 0], sizes = [17, 8], strides = [1, 1]} : vector<17x32xf32> to vector<17x8xf32>
    %cst_46 = arith.constant dense<0.000000e+00> : vector<17x17xf32>
    %63 = tpu.matmul %60, %61, %cst_46 {dimension_numbers = #tpu.dot_dimension_numbers<[1], [1], [0], [0], [0, 0, 1, 0], [], []>} : vector<17x8xf32>, vector<17x8xf32>, vector<17x17xf32> -> vector<17x17xf32>
    %cst_47 = arith.constant dense<0xFF800000> : vector<17xf32>
    %64 = vector.multi_reduction <maximumf>, %63, %cst_47 [1] : vector<17x17xf32> to vector<17xf32>
    %65 = vector.shape_cast %64 : vector<17xf32> to vector<17x1xf32>
    %66 = vector.broadcast %65 : vector<17x1xf32> to vector<17x17xf32>
    %67 = arith.subf %63, %66 : vector<17x17xf32>
    %68 = math.exp %67 : vector<17x17xf32>
    %cst_48 = arith.constant dense<0.000000e+00> : vector<17xf32>
    %69 = vector.multi_reduction <add>, %68, %cst_48 [1] : vector<17x17xf32> to vector<17xf32>
    %70 = vector.shape_cast %69 : vector<17xf32> to vector<17x1xf32>
    %71 = tpu.reciprocal %70 {approx = true} : vector<17x1xf32> -> vector<17x1xf32>
    %72 = vector.broadcast %71 : vector<17x1xf32> to vector<17x17xf32>
    %73 = arith.mulf %68, %72 : vector<17x17xf32>
    %cst_49 = arith.constant dense<0.000000e+00> : vector<17x8xf32>
    %74 = tpu.matmul %73, %62, %cst_49 {dimension_numbers = #tpu.dot_dimension_numbers<[1], [0], [0], [1], [0, 0, 1, 1], [], []>} : vector<17x17xf32>, vector<17x8xf32>, vector<17x8xf32> -> vector<17x8xf32>
    %75 = vector.extract_strided_slice %12 {offsets = [0, 0], sizes = [8, 32], strides = [1, 1]} : vector<32x32xf32> to vector<8x32xf32>
    %cst_50 = arith.constant dense<0.000000e+00> : vector<17x32xf32>
    %76 = tpu.matmul %74, %75, %cst_50 {dimension_numbers = #tpu.dot_dimension_numbers<[1], [0], [0], [1], [0, 0, 1, 1], [], []>} : vector<17x8xf32>, vector<8x32xf32>, vector<17x32xf32> -> vector<17x32xf32>
    %77 = arith.addf %59, %76 : vector<17x32xf32>
    %78 = vector.extract_strided_slice %56 {offsets = [0, 8], sizes = [17, 8], strides = [1, 1]} : vector<17x32xf32> to vector<17x8xf32>
    %79 = vector.extract_strided_slice %57 {offsets = [0, 8], sizes = [17, 8], strides = [1, 1]} : vector<17x32xf32> to vector<17x8xf32>
    %80 = vector.extract_strided_slice %58 {offsets = [0, 8], sizes = [17, 8], strides = [1, 1]} : vector<17x32xf32> to vector<17x8xf32>
    %cst_51 = arith.constant dense<0.000000e+00> : vector<17x17xf32>
    %81 = tpu.matmul %78, %79, %cst_51 {dimension_numbers = #tpu.dot_dimension_numbers<[1], [1], [0], [0], [0, 0, 1, 0], [], []>} : vector<17x8xf32>, vector<17x8xf32>, vector<17x17xf32> -> vector<17x17xf32>
    %cst_52 = arith.constant dense<0xFF800000> : vector<17xf32>
    %82 = vector.multi_reduction <maximumf>, %81, %cst_52 [1] : vector<17x17xf32> to vector<17xf32>
    %83 = vector.shape_cast %82 : vector<17xf32> to vector<17x1xf32>
    %84 = vector.broadcast %83 : vector<17x1xf32> to vector<17x17xf32>
    %85 = arith.subf %81, %84 : vector<17x17xf32>
    %86 = math.exp %85 : vector<17x17xf32>
    %cst_53 = arith.constant dense<0.000000e+00> : vector<17xf32>
    %87 = vector.multi_reduction <add>, %86, %cst_53 [1] : vector<17x17xf32> to vector<17xf32>
    %88 = vector.shape_cast %87 : vector<17xf32> to vector<17x1xf32>
    %89 = tpu.reciprocal %88 {approx = true} : vector<17x1xf32> -> vector<17x1xf32>
    %90 = vector.broadcast %89 : vector<17x1xf32> to vector<17x17xf32>
    %91 = arith.mulf %86, %90 : vector<17x17xf32>
    %cst_54 = arith.constant dense<0.000000e+00> : vector<17x8xf32>
    %92 = tpu.matmul %91, %80, %cst_54 {dimension_numbers = #tpu.dot_dimension_numbers<[1], [0], [0], [1], [0, 0, 1, 1], [], []>} : vector<17x17xf32>, vector<17x8xf32>, vector<17x8xf32> -> vector<17x8xf32>
    %93 = vector.extract_strided_slice %12 {offsets = [8, 0], sizes = [8, 32], strides = [1, 1]} : vector<32x32xf32> to vector<8x32xf32>
    %cst_55 = arith.constant dense<0.000000e+00> : vector<17x32xf32>
    %94 = tpu.matmul %92, %93, %cst_55 {dimension_numbers = #tpu.dot_dimension_numbers<[1], [0], [0], [1], [0, 0, 1, 1], [], []>} : vector<17x8xf32>, vector<8x32xf32>, vector<17x32xf32> -> vector<17x32xf32>
    %95 = arith.addf %77, %94 : vector<17x32xf32>
    %96 = vector.extract_strided_slice %56 {offsets = [0, 16], sizes = [17, 8], strides = [1, 1]} : vector<17x32xf32> to vector<17x8xf32>
    %97 = vector.extract_strided_slice %57 {offsets = [0, 16], sizes = [17, 8], strides = [1, 1]} : vector<17x32xf32> to vector<17x8xf32>
    %98 = vector.extract_strided_slice %58 {offsets = [0, 16], sizes = [17, 8], strides = [1, 1]} : vector<17x32xf32> to vector<17x8xf32>
    %cst_56 = arith.constant dense<0.000000e+00> : vector<17x17xf32>
    %99 = tpu.matmul %96, %97, %cst_56 {dimension_numbers = #tpu.dot_dimension_numbers<[1], [1], [0], [0], [0, 0, 1, 0], [], []>} : vector<17x8xf32>, vector<17x8xf32>, vector<17x17xf32> -> vector<17x17xf32>
    %cst_57 = arith.constant dense<0xFF800000> : vector<17xf32>
    %100 = vector.multi_reduction <maximumf>, %99, %cst_57 [1] : vector<17x17xf32> to vector<17xf32>
    %101 = vector.shape_cast %100 : vector<17xf32> to vector<17x1xf32>
    %102 = vector.broadcast %101 : vector<17x1xf32> to vector<17x17xf32>
    %103 = arith.subf %99, %102 : vector<17x17xf32>
    %104 = math.exp %103 : vector<17x17xf32>
    %cst_58 = arith.constant dense<0.000000e+00> : vector<17xf32>
    %105 = vector.multi_reduction <add>, %104, %cst_58 [1] : vector<17x17xf32> to vector<17xf32>
    %106 = vector.shape_cast %105 : vector<17xf32> to vector<17x1xf32>
    %107 = tpu.reciprocal %106 {approx = true} : vector<17x1xf32> -> vector<17x1xf32>
    %108 = vector.broadcast %107 : vector<17x1xf32> to vector<17x17xf32>
    %109 = arith.mulf %104, %108 : vector<17x17xf32>
    %cst_59 = arith.constant dense<0.000000e+00> : vector<17x8xf32>
    %110 = tpu.matmul %109, %98, %cst_59 {dimension_numbers = #tpu.dot_dimension_numbers<[1], [0], [0], [1], [0, 0, 1, 1], [], []>} : vector<17x17xf32>, vector<17x8xf32>, vector<17x8xf32> -> vector<17x8xf32>
    %111 = vector.extract_strided_slice %12 {offsets = [16, 0], sizes = [8, 32], strides = [1, 1]} : vector<32x32xf32> to vector<8x32xf32>
    %cst_60 = arith.constant dense<0.000000e+00> : vector<17x32xf32>
    %112 = tpu.matmul %110, %111, %cst_60 {dimension_numbers = #tpu.dot_dimension_numbers<[1], [0], [0], [1], [0, 0, 1, 1], [], []>} : vector<17x8xf32>, vector<8x32xf32>, vector<17x32xf32> -> vector<17x32xf32>
    %113 = arith.addf %95, %112 : vector<17x32xf32>
    %114 = vector.extract_strided_slice %56 {offsets = [0, 24], sizes = [17, 8], strides = [1, 1]} : vector<17x32xf32> to vector<17x8xf32>
    %115 = vector.extract_strided_slice %57 {offsets = [0, 24], sizes = [17, 8], strides = [1, 1]} : vector<17x32xf32> to vector<17x8xf32>
    %116 = vector.extract_strided_slice %58 {offsets = [0, 24], sizes = [17, 8], strides = [1, 1]} : vector<17x32xf32> to vector<17x8xf32>
    %cst_61 = arith.constant dense<0.000000e+00> : vector<17x17xf32>
    %117 = tpu.matmul %114, %115, %cst_61 {dimension_numbers = #tpu.dot_dimension_numbers<[1], [1], [0], [0], [0, 0, 1, 0], [], []>} : vector<17x8xf32>, vector<17x8xf32>, vector<17x17xf32> -> vector<17x17xf32>
    %cst_62 = arith.constant dense<0xFF800000> : vector<17xf32>
    %118 = vector.multi_reduction <maximumf>, %117, %cst_62 [1] : vector<17x17xf32> to vector<17xf32>
    %119 = vector.shape_cast %118 : vector<17xf32> to vector<17x1xf32>
    %120 = vector.broadcast %119 : vector<17x1xf32> to vector<17x17xf32>
    %121 = arith.subf %117, %120 : vector<17x17xf32>
    %122 = math.exp %121 : vector<17x17xf32>
    %cst_63 = arith.constant dense<0.000000e+00> : vector<17xf32>
    %123 = vector.multi_reduction <add>, %122, %cst_63 [1] : vector<17x17xf32> to vector<17xf32>
    %124 = vector.shape_cast %123 : vector<17xf32> to vector<17x1xf32>
    %125 = tpu.reciprocal %124 {approx = true} : vector<17x1xf32> -> vector<17x1xf32>
    %126 = vector.broadcast %125 : vector<17x1xf32> to vector<17x17xf32>
    %127 = arith.mulf %122, %126 : vector<17x17xf32>
    %cst_64 = arith.constant dense<0.000000e+00> : vector<17x8xf32>
    %128 = tpu.matmul %127, %116, %cst_64 {dimension_numbers = #tpu.dot_dimension_numbers<[1], [0], [0], [1], [0, 0, 1, 1], [], []>} : vector<17x17xf32>, vector<17x8xf32>, vector<17x8xf32> -> vector<17x8xf32>
    %129 = vector.extract_strided_slice %12 {offsets = [24, 0], sizes = [8, 32], strides = [1, 1]} : vector<32x32xf32> to vector<8x32xf32>
    %cst_65 = arith.constant dense<0.000000e+00> : vector<17x32xf32>
    %130 = tpu.matmul %128, %129, %cst_65 {dimension_numbers = #tpu.dot_dimension_numbers<[1], [0], [0], [1], [0, 0, 1, 1], [], []>} : vector<17x8xf32>, vector<8x32xf32>, vector<17x32xf32> -> vector<17x32xf32>
    %131 = arith.addf %113, %130 : vector<17x32xf32>
    %132 = arith.addf %28, %131 : vector<17x32xf32>
    %133 = vector.broadcast %14 : vector<1x32xf32> to vector<17x32xf32>
    %134 = arith.addf %132, %133 : vector<17x32xf32>
    %cst_66 = arith.constant dense<0.000000e+00> : vector<17xf32>
    %135 = vector.multi_reduction <add>, %134, %cst_66 [1] : vector<17x32xf32> to vector<17xf32>
    %136 = vector.shape_cast %135 : vector<17xf32> to vector<17x1xf32>
    %cst_67 = arith.constant 3.200000e+01 : f32
    %137 = vector.broadcast %cst_67 : f32 to vector<17x1xf32>
    %138 = arith.divf %136, %137 : vector<17x1xf32>
    %139 = vector.broadcast %138 : vector<17x1xf32> to vector<17x32xf32>
    %140 = arith.subf %134, %139 : vector<17x32xf32>
    %141 = arith.mulf %140, %140 : vector<17x32xf32>
    %cst_68 = arith.constant dense<0.000000e+00> : vector<17xf32>
    %142 = vector.multi_reduction <add>, %141, %cst_68 [1] : vector<17x32xf32> to vector<17xf32>
    %143 = vector.shape_cast %142 : vector<17xf32> to vector<17x1xf32>
    %cst_69 = arith.constant 3.200000e+01 : f32
    %144 = vector.broadcast %cst_69 : f32 to vector<17x1xf32>
    %145 = arith.divf %143, %144 : vector<17x1xf32>
    %146 = vector.broadcast %138 : vector<17x1xf32> to vector<17x32xf32>
    %147 = arith.subf %134, %146 : vector<17x32xf32>
    %cst_70 = arith.constant 9.99999974E-6 : f32
    %148 = vector.broadcast %cst_70 : f32 to vector<17x1xf32>
    %149 = arith.addf %145, %148 : vector<17x1xf32>
    %150 = math.rsqrt %149 : vector<17x1xf32>
    %151 = vector.broadcast %150 : vector<17x1xf32> to vector<17x32xf32>
    %152 = arith.mulf %147, %151 : vector<17x32xf32>
    %153 = vector.broadcast %16 : vector<1x32xf32> to vector<17x32xf32>
    %154 = arith.mulf %152, %153 : vector<17x32xf32>
    %155 = vector.broadcast %18 : vector<1x32xf32> to vector<17x32xf32>
    %156 = arith.addf %154, %155 : vector<17x32xf32>
    %cst_71 = arith.constant dense<0.000000e+00> : vector<17x64xf32>
    %157 = tpu.matmul %156, %20, %cst_71 {dimension_numbers = #tpu.dot_dimension_numbers<[1], [0], [0], [1], [0, 0, 1, 1], [], []>} : vector<17x32xf32>, vector<32x64xf32>, vector<17x64xf32> -> vector<17x64xf32>
    %158 = vector.broadcast %22 : vector<1x64xf32> to vector<17x64xf32>
    %159 = arith.addf %157, %158 : vector<17x64xf32>
    %cst_72 = arith.constant 0.000000e+00 : f32
    %160 = vector.broadcast %cst_72 : f32 to vector<17x64xf32>
    %161 = arith.maximumf %159, %160 : vector<17x64xf32>
    %cst_73 = arith.constant dense<0.000000e+00> : vector<17x32xf32>
    %162 = tpu.matmul %161, %24, %cst_73 {dimension_numbers = #tpu.dot_dimension_numbers<[1], [0], [0], [1], [0, 0, 1, 1], [], []>} : vector<17x64xf32>, vector<64x32xf32>, vector<17x32xf32> -> vector<17x32xf32>
    %163 = arith.addf %134, %162 : vector<17x32xf32>
    %164 = vector.broadcast %26 : vector<1x32xf32> to vector<17x32xf32>
    %165 = arith.addf %163, %164 : vector<17x32xf32>
    %c0_74 = arith.constant 0 : index
    %c0_75 = arith.constant 0 : index
    %c0_76 = arith.constant 0 : index
    %166 = vector.load %arg24[%c0_74, %c0_75, %c0_76] : memref<2x17x32xf32, #tpu.memory_space<vmem>>, vector<1x17x32xf32>
    %167 = vector.shape_cast %166 : vector<1x17x32xf32> to vector<17x32xf32>
    %168 = vector.shape_cast %165 : vector<17x32xf32> to vector<1x17x32xf32>
    tpu.vector_store %arg24[%c0_74, %c0_75, %c0_76], %168 {strides = array<i32>} : memref<2x17x32xf32, #tpu.memory_space<vmem>>, vector<1x17x32xf32>,
    %c1 = arith.constant 1 : index
    %c0_77 = arith.constant 0 : index
    %c0_78 = arith.constant 0 : index
    %169 = vector.load %arg24[%c1, %c0_77, %c0_78] : memref<2x17x32xf32, #tpu.memory_space<vmem>>, vector<1x17x32xf32>
    %170 = vector.shape_cast %169 : vector<1x17x32xf32> to vector<17x32xf32>
    %cst_79 = arith.constant dense<0.000000e+00> : vector<17xf32>
    %171 = vector.multi_reduction <add>, %170, %cst_79 [1] : vector<17x32xf32> to vector<17xf32>
    %172 = vector.shape_cast %171 : vector<17xf32> to vector<17x1xf32>
    %cst_80 = arith.constant 3.200000e+01 : f32
    %173 = vector.broadcast %cst_80 : f32 to vector<17x1xf32>
    %174 = arith.divf %172, %173 : vector<17x1xf32>
    %175 = vector.broadcast %174 : vector<17x1xf32> to vector<17x32xf32>
    %176 = arith.subf %170, %175 : vector<17x32xf32>
    %177 = arith.mulf %176, %176 : vector<17x32xf32>
    %cst_81 = arith.constant dense<0.000000e+00> : vector<17xf32>
    %178 = vector.multi_reduction <add>, %177, %cst_81 [1] : vector<17x32xf32> to vector<17xf32>
    %179 = vector.shape_cast %178 : vector<17xf32> to vector<17x1xf32>
    %cst_82 = arith.constant 3.200000e+01 : f32
    %180 = vector.broadcast %cst_82 : f32 to vector<17x1xf32>
    %181 = arith.divf %179, %180 : vector<17x1xf32>
    %182 = vector.broadcast %174 : vector<17x1xf32> to vector<17x32xf32>
    %183 = arith.subf %170, %182 : vector<17x32xf32>
    %cst_83 = arith.constant 9.99999974E-6 : f32
    %184 = vector.broadcast %cst_83 : f32 to vector<17x1xf32>
    %185 = arith.addf %181, %184 : vector<17x1xf32>
    %186 = math.rsqrt %185 : vector<17x1xf32>
    %187 = vector.broadcast %186 : vector<17x1xf32> to vector<17x32xf32>
    %188 = arith.mulf %183, %187 : vector<17x32xf32>
    %189 = vector.broadcast %4 : vector<1x32xf32> to vector<17x32xf32>
    %190 = arith.mulf %188, %189 : vector<17x32xf32>
    %191 = vector.broadcast %6 : vector<1x32xf32> to vector<17x32xf32>
    %192 = arith.addf %190, %191 : vector<17x32xf32>
    %cst_84 = arith.constant dense<0.000000e+00> : vector<17x96xf32>
    %193 = tpu.matmul %192, %8, %cst_84 {dimension_numbers = #tpu.dot_dimension_numbers<[1], [0], [0], [1], [0, 0, 1, 1], [], []>} : vector<17x32xf32>, vector<32x96xf32>, vector<17x96xf32> -> vector<17x96xf32>
    %194 = vector.broadcast %10 : vector<1x96xf32> to vector<17x96xf32>
    %195 = arith.addf %193, %194 : vector<17x96xf32>
    %196 = vector.extract_strided_slice %195 {offsets = [0, 0], sizes = [17, 32], strides = [1, 1]} : vector<17x96xf32> to vector<17x32xf32>
    %cst_85 = arith.constant 0.353553385 : f32
    %197 = vector.broadcast %cst_85 : f32 to vector<17x32xf32>
    %198 = arith.mulf %196, %197 : vector<17x32xf32>
    %199 = vector.extract_strided_slice %195 {offsets = [0, 32], sizes = [17, 32], strides = [1, 1]} : vector<17x96xf32> to vector<17x32xf32>
    %200 = vector.extract_strided_slice %195 {offsets = [0, 64], sizes = [17, 32], strides = [1, 1]} : vector<17x96xf32> to vector<17x32xf32>
    %cst_86 = arith.constant 0.000000e+00 : f32
    %201 = vector.broadcast %cst_86 : f32 to vector<17x32xf32>
    %202 = vector.extract_strided_slice %198 {offsets = [0, 0], sizes = [17, 8], strides = [1, 1]} : vector<17x32xf32> to vector<17x8xf32>
    %203 = vector.extract_strided_slice %199 {offsets = [0, 0], sizes = [17, 8], strides = [1, 1]} : vector<17x32xf32> to vector<17x8xf32>
    %204 = vector.extract_strided_slice %200 {offsets = [0, 0], sizes = [17, 8], strides = [1, 1]} : vector<17x32xf32> to vector<17x8xf32>
    %cst_87 = arith.constant dense<0.000000e+00> : vector<17x17xf32>
    %205 = tpu.matmul %202, %203, %cst_87 {dimension_numbers = #tpu.dot_dimension_numbers<[1], [1], [0], [0], [0, 0, 1, 0], [], []>} : vector<17x8xf32>, vector<17x8xf32>, vector<17x17xf32> -> vector<17x17xf32>
    %cst_88 = arith.constant dense<0xFF800000> : vector<17xf32>
    %206 = vector.multi_reduction <maximumf>, %205, %cst_88 [1] : vector<17x17xf32> to vector<17xf32>
    %207 = vector.shape_cast %206 : vector<17xf32> to vector<17x1xf32>
    %208 = vector.broadcast %207 : vector<17x1xf32> to vector<17x17xf32>
    %209 = arith.subf %205, %208 : vector<17x17xf32>
    %210 = math.exp %209 : vector<17x17xf32>
    %cst_89 = arith.constant dense<0.000000e+00> : vector<17xf32>
    %211 = vector.multi_reduction <add>, %210, %cst_89 [1] : vector<17x17xf32> to vector<17xf32>
    %212 = vector.shape_cast %211 : vector<17xf32> to vector<17x1xf32>
    %213 = tpu.reciprocal %212 {approx = true} : vector<17x1xf32> -> vector<17x1xf32>
    %214 = vector.broadcast %213 : vector<17x1xf32> to vector<17x17xf32>
    %215 = arith.mulf %210, %214 : vector<17x17xf32>
    %cst_90 = arith.constant dense<0.000000e+00> : vector<17x8xf32>
    %216 = tpu.matmul %215, %204, %cst_90 {dimension_numbers = #tpu.dot_dimension_numbers<[1], [0], [0], [1], [0, 0, 1, 1], [], []>} : vector<17x17xf32>, vector<17x8xf32>, vector<17x8xf32> -> vector<17x8xf32>
    %217 = vector.extract_strided_slice %12 {offsets = [0, 0], sizes = [8, 32], strides = [1, 1]} : vector<32x32xf32> to vector<8x32xf32>
    %cst_91 = arith.constant dense<0.000000e+00> : vector<17x32xf32>
    %218 = tpu.matmul %216, %217, %cst_91 {dimension_numbers = #tpu.dot_dimension_numbers<[1], [0], [0], [1], [0, 0, 1, 1], [], []>} : vector<17x8xf32>, vector<8x32xf32>, vector<17x32xf32> -> vector<17x32xf32>
    %219 = arith.addf %201, %218 : vector<17x32xf32>
    %220 = vector.extract_strided_slice %198 {offsets = [0, 8], sizes = [17, 8], strides = [1, 1]} : vector<17x32xf32> to vector<17x8xf32>
    %221 = vector.extract_strided_slice %199 {offsets = [0, 8], sizes = [17, 8], strides = [1, 1]} : vector<17x32xf32> to vector<17x8xf32>
    %222 = vector.extract_strided_slice %200 {offsets = [0, 8], sizes = [17, 8], strides = [1, 1]} : vector<17x32xf32> to vector<17x8xf32>
    %cst_92 = arith.constant dense<0.000000e+00> : vector<17x17xf32>
    %223 = tpu.matmul %220, %221, %cst_92 {dimension_numbers = #tpu.dot_dimension_numbers<[1], [1], [0], [0], [0, 0, 1, 0], [], []>} : vector<17x8xf32>, vector<17x8xf32>, vector<17x17xf32> -> vector<17x17xf32>
    %cst_93 = arith.constant dense<0xFF800000> : vector<17xf32>
    %224 = vector.multi_reduction <maximumf>, %223, %cst_93 [1] : vector<17x17xf32> to vector<17xf32>
    %225 = vector.shape_cast %224 : vector<17xf32> to vector<17x1xf32>
    %226 = vector.broadcast %225 : vector<17x1xf32> to vector<17x17xf32>
    %227 = arith.subf %223, %226 : vector<17x17xf32>
    %228 = math.exp %227 : vector<17x17xf32>
    %cst_94 = arith.constant dense<0.000000e+00> : vector<17xf32>
    %229 = vector.multi_reduction <add>, %228, %cst_94 [1] : vector<17x17xf32> to vector<17xf32>
    %230 = vector.shape_cast %229 : vector<17xf32> to vector<17x1xf32>
    %231 = tpu.reciprocal %230 {approx = true} : vector<17x1xf32> -> vector<17x1xf32>
    %232 = vector.broadcast %231 : vector<17x1xf32> to vector<17x17xf32>
    %233 = arith.mulf %228, %232 : vector<17x17xf32>
    %cst_95 = arith.constant dense<0.000000e+00> : vector<17x8xf32>
    %234 = tpu.matmul %233, %222, %cst_95 {dimension_numbers = #tpu.dot_dimension_numbers<[1], [0], [0], [1], [0, 0, 1, 1], [], []>} : vector<17x17xf32>, vector<17x8xf32>, vector<17x8xf32> -> vector<17x8xf32>
    %235 = vector.extract_strided_slice %12 {offsets = [8, 0], sizes = [8, 32], strides = [1, 1]} : vector<32x32xf32> to vector<8x32xf32>
    %cst_96 = arith.constant dense<0.000000e+00> : vector<17x32xf32>
    %236 = tpu.matmul %234, %235, %cst_96 {dimension_numbers = #tpu.dot_dimension_numbers<[1], [0], [0], [1], [0, 0, 1, 1], [], []>} : vector<17x8xf32>, vector<8x32xf32>, vector<17x32xf32> -> vector<17x32xf32>
    %237 = arith.addf %219, %236 : vector<17x32xf32>
    %238 = vector.extract_strided_slice %198 {offsets = [0, 16], sizes = [17, 8], strides = [1, 1]} : vector<17x32xf32> to vector<17x8xf32>
    %239 = vector.extract_strided_slice %199 {offsets = [0, 16], sizes = [17, 8], strides = [1, 1]} : vector<17x32xf32> to vector<17x8xf32>
    %240 = vector.extract_strided_slice %200 {offsets = [0, 16], sizes = [17, 8], strides = [1, 1]} : vector<17x32xf32> to vector<17x8xf32>
    %cst_97 = arith.constant dense<0.000000e+00> : vector<17x17xf32>
    %241 = tpu.matmul %238, %239, %cst_97 {dimension_numbers = #tpu.dot_dimension_numbers<[1], [1], [0], [0], [0, 0, 1, 0], [], []>} : vector<17x8xf32>, vector<17x8xf32>, vector<17x17xf32> -> vector<17x17xf32>
    %cst_98 = arith.constant dense<0xFF800000> : vector<17xf32>
    %242 = vector.multi_reduction <maximumf>, %241, %cst_98 [1] : vector<17x17xf32> to vector<17xf32>
    %243 = vector.shape_cast %242 : vector<17xf32> to vector<17x1xf32>
    %244 = vector.broadcast %243 : vector<17x1xf32> to vector<17x17xf32>
    %245 = arith.subf %241, %244 : vector<17x17xf32>
    %246 = math.exp %245 : vector<17x17xf32>
    %cst_99 = arith.constant dense<0.000000e+00> : vector<17xf32>
    %247 = vector.multi_reduction <add>, %246, %cst_99 [1] : vector<17x17xf32> to vector<17xf32>
    %248 = vector.shape_cast %247 : vector<17xf32> to vector<17x1xf32>
    %249 = tpu.reciprocal %248 {approx = true} : vector<17x1xf32> -> vector<17x1xf32>
    %250 = vector.broadcast %249 : vector<17x1xf32> to vector<17x17xf32>
    %251 = arith.mulf %246, %250 : vector<17x17xf32>
    %cst_100 = arith.constant dense<0.000000e+00> : vector<17x8xf32>
    %252 = tpu.matmul %251, %240, %cst_100 {dimension_numbers = #tpu.dot_dimension_numbers<[1], [0], [0], [1], [0, 0, 1, 1], [], []>} : vector<17x17xf32>, vector<17x8xf32>, vector<17x8xf32> -> vector<17x8xf32>
    %253 = vector.extract_strided_slice %12 {offsets = [16, 0], sizes = [8, 32], strides = [1, 1]} : vector<32x32xf32> to vector<8x32xf32>
    %cst_101 = arith.constant dense<0.000000e+00> : vector<17x32xf32>
    %254 = tpu.matmul %252, %253, %cst_101 {dimension_numbers = #tpu.dot_dimension_numbers<[1], [0], [0], [1], [0, 0, 1, 1], [], []>} : vector<17x8xf32>, vector<8x32xf32>, vector<17x32xf32> -> vector<17x32xf32>
    %255 = arith.addf %237, %254 : vector<17x32xf32>
    %256 = vector.extract_strided_slice %198 {offsets = [0, 24], sizes = [17, 8], strides = [1, 1]} : vector<17x32xf32> to vector<17x8xf32>
    %257 = vector.extract_strided_slice %199 {offsets = [0, 24], sizes = [17, 8], strides = [1, 1]} : vector<17x32xf32> to vector<17x8xf32>
    %258 = vector.extract_strided_slice %200 {offsets = [0, 24], sizes = [17, 8], strides = [1, 1]} : vector<17x32xf32> to vector<17x8xf32>
    %cst_102 = arith.constant dense<0.000000e+00> : vector<17x17xf32>
    %259 = tpu.matmul %256, %257, %cst_102 {dimension_numbers = #tpu.dot_dimension_numbers<[1], [1], [0], [0], [0, 0, 1, 0], [], []>} : vector<17x8xf32>, vector<17x8xf32>, vector<17x17xf32> -> vector<17x17xf32>
    %cst_103 = arith.constant dense<0xFF800000> : vector<17xf32>
    %260 = vector.multi_reduction <maximumf>, %259, %cst_103 [1] : vector<17x17xf32> to vector<17xf32>
    %261 = vector.shape_cast %260 : vector<17xf32> to vector<17x1xf32>
    %262 = vector.broadcast %261 : vector<17x1xf32> to vector<17x17xf32>
    %263 = arith.subf %259, %262 : vector<17x17xf32>
    %264 = math.exp %263 : vector<17x17xf32>
    %cst_104 = arith.constant dense<0.000000e+00> : vector<17xf32>
    %265 = vector.multi_reduction <add>, %264, %cst_104 [1] : vector<17x17xf32> to vector<17xf32>
    %266 = vector.shape_cast %265 : vector<17xf32> to vector<17x1xf32>
    %267 = tpu.reciprocal %266 {approx = true} : vector<17x1xf32> -> vector<17x1xf32>
    %268 = vector.broadcast %267 : vector<17x1xf32> to vector<17x17xf32>
    %269 = arith.mulf %264, %268 : vector<17x17xf32>
    %cst_105 = arith.constant dense<0.000000e+00> : vector<17x8xf32>
    %270 = tpu.matmul %269, %258, %cst_105 {dimension_numbers = #tpu.dot_dimension_numbers<[1], [0], [0], [1], [0, 0, 1, 1], [], []>} : vector<17x17xf32>, vector<17x8xf32>, vector<17x8xf32> -> vector<17x8xf32>
    %271 = vector.extract_strided_slice %12 {offsets = [24, 0], sizes = [8, 32], strides = [1, 1]} : vector<32x32xf32> to vector<8x32xf32>
    %cst_106 = arith.constant dense<0.000000e+00> : vector<17x32xf32>
    %272 = tpu.matmul %270, %271, %cst_106 {dimension_numbers = #tpu.dot_dimension_numbers<[1], [0], [0], [1], [0, 0, 1, 1], [], []>} : vector<17x8xf32>, vector<8x32xf32>, vector<17x32xf32> -> vector<17x32xf32>
    %273 = arith.addf %255, %272 : vector<17x32xf32>
    %274 = arith.addf %170, %273 : vector<17x32xf32>
    %275 = vector.broadcast %14 : vector<1x32xf32> to vector<17x32xf32>
    %276 = arith.addf %274, %275 : vector<17x32xf32>
    %cst_107 = arith.constant dense<0.000000e+00> : vector<17xf32>
    %277 = vector.multi_reduction <add>, %276, %cst_107 [1] : vector<17x32xf32> to vector<17xf32>
    %278 = vector.shape_cast %277 : vector<17xf32> to vector<17x1xf32>
    %cst_108 = arith.constant 3.200000e+01 : f32
    %279 = vector.broadcast %cst_108 : f32 to vector<17x1xf32>
    %280 = arith.divf %278, %279 : vector<17x1xf32>
    %281 = vector.broadcast %280 : vector<17x1xf32> to vector<17x32xf32>
    %282 = arith.subf %276, %281 : vector<17x32xf32>
    %283 = arith.mulf %282, %282 : vector<17x32xf32>
    %cst_109 = arith.constant dense<0.000000e+00> : vector<17xf32>
    %284 = vector.multi_reduction <add>, %283, %cst_109 [1] : vector<17x32xf32> to vector<17xf32>
    %285 = vector.shape_cast %284 : vector<17xf32> to vector<17x1xf32>
    %cst_110 = arith.constant 3.200000e+01 : f32
    %286 = vector.broadcast %cst_110 : f32 to vector<17x1xf32>
    %287 = arith.divf %285, %286 : vector<17x1xf32>
    %288 = vector.broadcast %280 : vector<17x1xf32> to vector<17x32xf32>
    %289 = arith.subf %276, %288 : vector<17x32xf32>
    %cst_111 = arith.constant 9.99999974E-6 : f32
    %290 = vector.broadcast %cst_111 : f32 to vector<17x1xf32>
    %291 = arith.addf %287, %290 : vector<17x1xf32>
    %292 = math.rsqrt %291 : vector<17x1xf32>
    %293 = vector.broadcast %292 : vector<17x1xf32> to vector<17x32xf32>
    %294 = arith.mulf %289, %293 : vector<17x32xf32>
    %295 = vector.broadcast %16 : vector<1x32xf32> to vector<17x32xf32>
    %296 = arith.mulf %294, %295 : vector<17x32xf32>
    %297 = vector.broadcast %18 : vector<1x32xf32> to vector<17x32xf32>
    %298 = arith.addf %296, %297 : vector<17x32xf32>
    %cst_112 = arith.constant dense<0.000000e+00> : vector<17x64xf32>
    %299 = tpu.matmul %298, %20, %cst_112 {dimension_numbers = #tpu.dot_dimension_numbers<[1], [0], [0], [1], [0, 0, 1, 1], [], []>} : vector<17x32xf32>, vector<32x64xf32>, vector<17x64xf32> -> vector<17x64xf32>
    %300 = vector.broadcast %22 : vector<1x64xf32> to vector<17x64xf32>
    %301 = arith.addf %299, %300 : vector<17x64xf32>
    %cst_113 = arith.constant 0.000000e+00 : f32
    %302 = vector.broadcast %cst_113 : f32 to vector<17x64xf32>
    %303 = arith.maximumf %301, %302 : vector<17x64xf32>
    %cst_114 = arith.constant dense<0.000000e+00> : vector<17x32xf32>
    %304 = tpu.matmul %303, %24, %cst_114 {dimension_numbers = #tpu.dot_dimension_numbers<[1], [0], [0], [1], [0, 0, 1, 1], [], []>} : vector<17x64xf32>, vector<64x32xf32>, vector<17x32xf32> -> vector<17x32xf32>
    %305 = arith.addf %276, %304 : vector<17x32xf32>
    %306 = vector.broadcast %26 : vector<1x32xf32> to vector<17x32xf32>
    %307 = arith.addf %305, %306 : vector<17x32xf32>
    %c1_115 = arith.constant 1 : index
    %c0_116 = arith.constant 0 : index
    %c0_117 = arith.constant 0 : index
    %308 = vector.load %arg24[%c1_115, %c0_116, %c0_117] : memref<2x17x32xf32, #tpu.memory_space<vmem>>, vector<1x17x32xf32>
    %309 = vector.shape_cast %308 : vector<1x17x32xf32> to vector<17x32xf32>
    %310 = vector.shape_cast %307 : vector<17x32xf32> to vector<1x17x32xf32>
    tpu.vector_store %arg24[%c1_115, %c0_116, %c0_117], %310 {strides = array<i32>} : memref<2x17x32xf32, #tpu.memory_space<vmem>>, vector<1x17x32xf32>,
    %c1_i32 = arith.constant 1 : i32
    %311 = arith.cmpi eq, %arg1, %c1_i32 : i32
    %312 = arith.extui %311 : i1 to i32
    %c0_i32_118 = arith.constant 0 : i32
    %313 = arith.cmpi ne, %312, %c0_i32_118 : i32
    scf.if %313 {
      %c0_119 = arith.constant 0 : index
      %c0_120 = arith.constant 0 : index
      %314 = vector.load %arg19[%c0_119, %c0_120] : memref<1x32xf32, #tpu.memory_space<vmem>>, vector<1x32xf32>
      %c0_121 = arith.constant 0 : index
      %c0_122 = arith.constant 0 : index
      %315 = vector.load %arg20[%c0_121, %c0_122] : memref<1x32xf32, #tpu.memory_space<vmem>>, vector<1x32xf32>
      %c0_123 = arith.constant 0 : index
      %c0_124 = arith.constant 0 : index
      %316 = vector.load %arg21[%c0_123, %c0_124] : memref<32x10xf32, #tpu.memory_space<vmem>>, vector<32x10xf32>
      %c0_125 = arith.constant 0 : index
      %c0_126 = arith.constant 0 : index
      %317 = vector.load %arg22[%c0_125, %c0_126] : memref<1x10xf32, #tpu.memory_space<vmem>>, vector<1x10xf32>
      %c0_127 = arith.constant 0 : index
      %c0_128 = arith.constant 0 : index
      %c0_129 = arith.constant 0 : index
      %318 = vector.load %arg24[%c0_127, %c0_128, %c0_129] : memref<2x17x32xf32, #tpu.memory_space<vmem>>, vector<1x1x32xf32>
      %319 = vector.shape_cast %318 : vector<1x1x32xf32> to vector<1x32xf32>
      %cst_130 = arith.constant dense<0.000000e+00> : vector<1xf32>
      %320 = vector.multi_reduction <add>, %319, %cst_130 [1] : vector<1x32xf32> to vector<1xf32>
      %321 = vector.shape_cast %320 : vector<1xf32> to vector<1x1xf32>
      %cst_131 = arith.constant 3.200000e+01 : f32
      %322 = vector.broadcast %cst_131 : f32 to vector<1x1xf32>
      %323 = arith.divf %321, %322 : vector<1x1xf32>
      %324 = vector.broadcast %323 : vector<1x1xf32> to vector<1x32xf32>
      %325 = arith.subf %319, %324 : vector<1x32xf32>
      %326 = arith.mulf %325, %325 : vector<1x32xf32>
      %cst_132 = arith.constant dense<0.000000e+00> : vector<1xf32>
      %327 = vector.multi_reduction <add>, %326, %cst_132 [1] : vector<1x32xf32> to vector<1xf32>
      %328 = vector.shape_cast %327 : vector<1xf32> to vector<1x1xf32>
      %cst_133 = arith.constant 3.200000e+01 : f32
      %329 = vector.broadcast %cst_133 : f32 to vector<1x1xf32>
      %330 = arith.divf %328, %329 : vector<1x1xf32>
      %331 = vector.broadcast %323 : vector<1x1xf32> to vector<1x32xf32>
      %332 = arith.subf %319, %331 : vector<1x32xf32>
      %cst_134 = arith.constant 9.99999974E-6 : f32
      %333 = vector.broadcast %cst_134 : f32 to vector<1x1xf32>
      %334 = arith.addf %330, %333 : vector<1x1xf32>
      %335 = math.rsqrt %334 : vector<1x1xf32>
      %336 = vector.broadcast %335 : vector<1x1xf32> to vector<1x32xf32>
      %337 = arith.mulf %332, %336 : vector<1x32xf32>
      %338 = arith.mulf %337, %314 : vector<1x32xf32>
      %339 = arith.addf %338, %315 : vector<1x32xf32>
      %cst_135 = arith.constant dense<0.000000e+00> : vector<1x10xf32>
      %340 = tpu.matmul %339, %316, %cst_135 {dimension_numbers = #tpu.dot_dimension_numbers<[1], [0], [0], [1], [0, 0, 1, 1], [], []>} : vector<1x32xf32>, vector<32x10xf32>, vector<1x10xf32> -> vector<1x10xf32>
      %341 = arith.addf %340, %317 : vector<1x10xf32>
      %c0_136 = arith.constant 0 : index
      %c0_137 = arith.constant 0 : index
      %342 = vector.load %arg23[%c0_136, %c0_137] : memref<2x10xf32, #tpu.memory_space<vmem>>, vector<1x10xf32>
      tpu.vector_store %arg23[%c0_136, %c0_137], %341 {strides = array<i32>} : memref<2x10xf32, #tpu.memory_space<vmem>>, vector<1x10xf32>,
      %c1_138 = arith.constant 1 : index
      %c0_139 = arith.constant 0 : index
      %c0_140 = arith.constant 0 : index
      %343 = vector.load %arg24[%c1_138, %c0_139, %c0_140] : memref<2x17x32xf32, #tpu.memory_space<vmem>>, vector<1x1x32xf32>
      %344 = vector.shape_cast %343 : vector<1x1x32xf32> to vector<1x32xf32>
      %cst_141 = arith.constant dense<0.000000e+00> : vector<1xf32>
      %345 = vector.multi_reduction <add>, %344, %cst_141 [1] : vector<1x32xf32> to vector<1xf32>
      %346 = vector.shape_cast %345 : vector<1xf32> to vector<1x1xf32>
      %cst_142 = arith.constant 3.200000e+01 : f32
      %347 = vector.broadcast %cst_142 : f32 to vector<1x1xf32>
      %348 = arith.divf %346, %347 : vector<1x1xf32>
      %349 = vector.broadcast %348 : vector<1x1xf32> to vector<1x32xf32>
      %350 = arith.subf %344, %349 : vector<1x32xf32>
      %351 = arith.mulf %350, %350 : vector<1x32xf32>
      %cst_143 = arith.constant dense<0.000000e+00> : vector<1xf32>
      %352 = vector.multi_reduction <add>, %351, %cst_143 [1] : vector<1x32xf32> to vector<1xf32>
      %353 = vector.shape_cast %352 : vector<1xf32> to vector<1x1xf32>
      %cst_144 = arith.constant 3.200000e+01 : f32
      %354 = vector.broadcast %cst_144 : f32 to vector<1x1xf32>
      %355 = arith.divf %353, %354 : vector<1x1xf32>
      %356 = vector.broadcast %348 : vector<1x1xf32> to vector<1x32xf32>
      %357 = arith.subf %344, %356 : vector<1x32xf32>
      %cst_145 = arith.constant 9.99999974E-6 : f32
      %358 = vector.broadcast %cst_145 : f32 to vector<1x1xf32>
      %359 = arith.addf %355, %358 : vector<1x1xf32>
      %360 = math.rsqrt %359 : vector<1x1xf32>
      %361 = vector.broadcast %360 : vector<1x1xf32> to vector<1x32xf32>
      %362 = arith.mulf %357, %361 : vector<1x32xf32>
      %363 = arith.mulf %362, %314 : vector<1x32xf32>
      %364 = arith.addf %363, %315 : vector<1x32xf32>
      %cst_146 = arith.constant dense<0.000000e+00> : vector<1x10xf32>
      %365 = tpu.matmul %364, %316, %cst_146 {dimension_numbers = #tpu.dot_dimension_numbers<[1], [0], [0], [1], [0, 0, 1, 1], [], []>} : vector<1x32xf32>, vector<32x10xf32>, vector<1x10xf32> -> vector<1x10xf32>
      %366 = arith.addf %365, %317 : vector<1x10xf32>
      %c1_147 = arith.constant 1 : index
      %c0_148 = arith.constant 0 : index
      %367 = vector.load %arg23[%c1_147, %c0_148] : memref<2x10xf32, #tpu.memory_space<vmem>>, vector<1x10xf32>
      tpu.vector_store %arg23[%c1_147, %c0_148], %366 {strides = array<i32>} : memref<2x10xf32, #tpu.memory_space<vmem>>, vector<1x10xf32>,
    } else {
    }
    return
  }
  func.func @transform_0(%arg0: i32, %arg1: i32) -> (i32, i32, i32) {
    %c0_i32 = arith.constant 0 : i32
    %c0_i32_0 = arith.constant 0 : i32
    %c0_i32_1 = arith.constant 0 : i32
    return %arg0, %c0_i32, %c0_i32_0 : i32, i32, i32
  }
  func.func @transform_1(%arg0: i32, %arg1: i32) -> (i32, i32) {
    %c0_i32 = arith.constant 0 : i32
    %c0_i32_0 = arith.constant 0 : i32
    %c0_i32_1 = arith.constant 0 : i32
    return %c0_i32, %c0_i32_0 : i32, i32
  }
  func.func @transform_2(%arg0: i32, %arg1: i32) -> (i32, i32) {
    %c0_i32 = arith.constant 0 : i32
    %c0_i32_0 = arith.constant 0 : i32
    %c0_i32_1 = arith.constant 0 : i32
    return %c0_i32, %c0_i32_0 : i32, i32
  }
  func.func @transform_3(%arg0: i32, %arg1: i32) -> (i32, i32) {
    %c0_i32 = arith.constant 0 : i32
    %c0_i32_0 = arith.constant 0 : i32
    %c0_i32_1 = arith.constant 0 : i32
    return %c0_i32, %c0_i32_0 : i32, i32
  }
  func.func @transform_4(%arg0: i32, %arg1: i32) -> (i32, i32) {
    %c0_i32 = arith.constant 0 : i32
    %c0_i32_0 = arith.constant 0 : i32
    %c0_i32_1 = arith.constant 0 : i32
    return %c0_i32, %c0_i32_0 : i32, i32
  }
  func.func @transform_5(%arg0: i32, %arg1: i32) -> (i32, i32, i32) {
    %c0_i32 = arith.constant 0 : i32
    %c0_i32_0 = arith.constant 0 : i32
    %c0_i32_1 = arith.constant 0 : i32
    return %arg1, %c0_i32, %c0_i32_0 : i32, i32, i32
  }
  func.func @transform_6(%arg0: i32, %arg1: i32) -> (i32, i32, i32) {
    %c0_i32 = arith.constant 0 : i32
    %c0_i32_0 = arith.constant 0 : i32
    %c0_i32_1 = arith.constant 0 : i32
    return %arg1, %c0_i32, %c0_i32_0 : i32, i32, i32
  }
  func.func @transform_7(%arg0: i32, %arg1: i32) -> (i32, i32, i32) {
    %c0_i32 = arith.constant 0 : i32
    %c0_i32_0 = arith.constant 0 : i32
    %c0_i32_1 = arith.constant 0 : i32
    return %arg1, %c0_i32, %c0_i32_0 : i32, i32, i32
  }
  func.func @transform_8(%arg0: i32, %arg1: i32) -> (i32, i32, i32) {
    %c0_i32 = arith.constant 0 : i32
    %c0_i32_0 = arith.constant 0 : i32
    %c0_i32_1 = arith.constant 0 : i32
    return %arg1, %c0_i32, %c0_i32_0 : i32, i32, i32
  }
  func.func @transform_9(%arg0: i32, %arg1: i32) -> (i32, i32, i32) {
    %c0_i32 = arith.constant 0 : i32
    %c0_i32_0 = arith.constant 0 : i32
    %c0_i32_1 = arith.constant 0 : i32
    return %arg1, %c0_i32, %c0_i32_0 : i32, i32, i32
  }
  func.func @transform_10(%arg0: i32, %arg1: i32) -> (i32, i32, i32) {
    %c0_i32 = arith.constant 0 : i32
    %c0_i32_0 = arith.constant 0 : i32
    %c0_i32_1 = arith.constant 0 : i32
    return %arg1, %c0_i32, %c0_i32_0 : i32, i32, i32
  }
  func.func @transform_11(%arg0: i32, %arg1: i32) -> (i32, i32, i32) {
    %c0_i32 = arith.constant 0 : i32
    %c0_i32_0 = arith.constant 0 : i32
    %c0_i32_1 = arith.constant 0 : i32
    return %arg1, %c0_i32, %c0_i32_0 : i32, i32, i32
  }
  func.func @transform_12(%arg0: i32, %arg1: i32) -> (i32, i32, i32) {
    %c0_i32 = arith.constant 0 : i32
    %c0_i32_0 = arith.constant 0 : i32
    %c0_i32_1 = arith.constant 0 : i32
    return %arg1, %c0_i32, %c0_i32_0 : i32, i32, i32
  }
  func.func @transform_13(%arg0: i32, %arg1: i32) -> (i32, i32, i32) {
    %c0_i32 = arith.constant 0 : i32
    %c0_i32_0 = arith.constant 0 : i32
    %c0_i32_1 = arith.constant 0 : i32
    return %arg1, %c0_i32, %c0_i32_0 : i32, i32, i32
  }
  func.func @transform_14(%arg0: i32, %arg1: i32) -> (i32, i32, i32) {
    %c0_i32 = arith.constant 0 : i32
    %c0_i32_0 = arith.constant 0 : i32
    %c0_i32_1 = arith.constant 0 : i32
    return %arg1, %c0_i32, %c0_i32_0 : i32, i32, i32
  }
  func.func @transform_15(%arg0: i32, %arg1: i32) -> (i32, i32, i32) {
    %c0_i32 = arith.constant 0 : i32
    %c0_i32_0 = arith.constant 0 : i32
    %c0_i32_1 = arith.constant 0 : i32
    return %arg1, %c0_i32, %c0_i32_0 : i32, i32, i32
  }
  func.func @transform_16(%arg0: i32, %arg1: i32) -> (i32, i32, i32) {
    %c0_i32 = arith.constant 0 : i32
    %c0_i32_0 = arith.constant 0 : i32
    %c0_i32_1 = arith.constant 0 : i32
    return %arg1, %c0_i32, %c0_i32_0 : i32, i32, i32
  }
  func.func @transform_17(%arg0: i32, %arg1: i32) -> (i32, i32) {
    %c0_i32 = arith.constant 0 : i32
    %c0_i32_0 = arith.constant 0 : i32
    %c0_i32_1 = arith.constant 0 : i32
    return %c0_i32, %c0_i32_0 : i32, i32
  }
  func.func @transform_18(%arg0: i32, %arg1: i32) -> (i32, i32) {
    %c0_i32 = arith.constant 0 : i32
    %c0_i32_0 = arith.constant 0 : i32
    %c0_i32_1 = arith.constant 0 : i32
    return %c0_i32, %c0_i32_0 : i32, i32
  }
  func.func @transform_19(%arg0: i32, %arg1: i32) -> (i32, i32) {
    %c0_i32 = arith.constant 0 : i32
    %c0_i32_0 = arith.constant 0 : i32
    %c0_i32_1 = arith.constant 0 : i32
    return %c0_i32, %c0_i32_0 : i32, i32
  }
  func.func @transform_20(%arg0: i32, %arg1: i32) -> (i32, i32) {
    %c0_i32 = arith.constant 0 : i32
    %c0_i32_0 = arith.constant 0 : i32
    %c0_i32_1 = arith.constant 0 : i32
    return %c0_i32, %c0_i32_0 : i32, i32
  }
  func.func @transform_21(%arg0: i32, %arg1: i32) -> (i32, i32) {
    %c0_i32 = arith.constant 0 : i32
    %c0_i32_0 = arith.constant 0 : i32
    return %arg0, %c0_i32 : i32, i32
  }
}

</mosaic_0001>

<llo_original>
// kernel: vit_forward.1
$region0: #{vit_forward.1}
  #allocation0 [shape = 'u32[]', space=smem, size = 0x4, offset = 0x4, fixed_abs, tag = 'smem constant byte address 0x4 - core index']
  #allocation1 [shape = 'u32[144,128]{1,0:T(1,128)}', space=vmem, size = 0x12000, scoped, tag = 'internal scratch']
  #allocation2 [shape = 'f32[2,17,32]{2,1,0:T(8,128)}', space=vmem, size = 0x6000, scoped, tag = 'scratch operand']
  %s0 = inlined_call_operand.vmem [shape: f32[2,16,64], index: 0, kind: input, shape index: {}]
  %s1 = inlined_call_operand.vmem [shape: f32[64,32], index: 1, kind: input, shape index: {}]
  %s2 = inlined_call_operand.vmem [shape: f32[1,32], index: 2, kind: input, shape index: {}]
  %s3 = inlined_call_operand.vmem [shape: f32[1,32], index: 3, kind: input, shape index: {}]
  %s4 = inlined_call_operand.vmem [shape: f32[17,32], index: 4, kind: input, shape index: {}]
  %s5 = inlined_call_operand.vmem [shape: f32[2,1,32], index: 5, kind: input, shape index: {}]
  %s6 = inlined_call_operand.vmem [shape: f32[2,1,32], index: 6, kind: input, shape index: {}]
  %s7 = inlined_call_operand.vmem [shape: f32[2,32,96], index: 7, kind: input, shape index: {}]
  %s8 = inlined_call_operand.vmem [shape: f32[2,1,96], index: 8, kind: input, shape index: {}]
  %s9 = inlined_call_operand.vmem [shape: f32[2,32,32], index: 9, kind: input, shape index: {}]
  %s10 = inlined_call_operand.vmem [shape: f32[2,1,32], index: 10, kind: input, shape index: {}]
  %s11 = inlined_call_operand.vmem [shape: f32[2,1,32], index: 11, kind: input, shape index: {}]
  %s12 = inlined_call_operand.vmem [shape: f32[2,1,32], index: 12, kind: input, shape index: {}]
  %s13 = inlined_call_operand.vmem [shape: f32[2,32,64], index: 13, kind: input, shape index: {}]
  %s14 = inlined_call_operand.vmem [shape: f32[2,1,64], index: 14, kind: input, shape index: {}]
  %s15 = inlined_call_operand.vmem [shape: f32[2,64,32], index: 15, kind: input, shape index: {}]
  %s16 = inlined_call_operand.vmem [shape: f32[2,1,32], index: 16, kind: input, shape index: {}]
  %s17 = inlined_call_operand.vmem [shape: f32[1,32], index: 17, kind: input, shape index: {}]
  %s18 = inlined_call_operand.vmem [shape: f32[1,32], index: 18, kind: input, shape index: {}]
  %s19 = inlined_call_operand.vmem [shape: f32[32,10], index: 19, kind: input, shape index: {}]
  %s20 = inlined_call_operand.vmem [shape: f32[1,10], index: 20, kind: input, shape index: {}]
  %s21 = inlined_call_operand.hbm [shape: f32[2,10], index: 21, kind: output, shape index: {}]
  %s22 = sld [smem:[#allocation0]]
  $region125: #{vit_forward.1} parent=0
    _
  %s24 = ssub.s32 1, %s22
  %s25 = scalar_select 0, %s24, %s22
  $region1: #{vit_forward.1} parent=0
    #allocation3 [shape = 'u8[1024]{0}', space=vmem, size = 0x400, scoped, tag = 'output window, operand 0, single buffered']
    #allocation4 [shape = 's32[2]{0}', space=sflag, size = 0x8, scoped, tag = 'scoped memory for vit_forward.1']
    %26 = vsyncpa [#allocation4], 0
    loop: start=0, step=1, limit=4
    $region2: #{vit_forward.1} parent=1 // loop_pre_header
      _
    $region3: #{vit_forward.1} parent=1 // loop_header
      %s28 = sphi 0, %s32
      %p29 = scmp.ge.s32.totalorder %s28, 4
      %s35 = sphi 0, %s47
      %s36 = sphi 0, %s43
      %s37 = sphi 0, %s35
      %s38 = sphi 0, %s36
      %s39 = sphi 0, %s37
      %s40 = sphi 0, %s38
      %s50 = sphi 0, %s52
      %s53 = sphi 0, %s50
      %s54 = sphi 0, %s53
      %s70 = sphi 0, %s54
      %s74 = sphi 0, %s74
      %s76 = sphi 0, %s74
      %s77 = sphi 0, %s76
      %s91 = sphi 0, %s77
      %s95 = sphi 0, %s95
      %s97 = sphi 0, %s95
      %s98 = sphi 0, %s97
      %s112 = sphi 0, %s98
      %s116 = sphi 0, %s116
      %s118 = sphi 0, %s116
      %s119 = sphi 0, %s118
      %s133 = sphi 0, %s119
      %s137 = sphi 0, %s137
      %s139 = sphi 0, %s137
      %s140 = sphi 0, %s139
      %s154 = sphi 0, %s140
      %s160 = sphi 0, %s162
      %s163 = sphi 0, %s160
      %s164 = sphi 0, %s163
      %s180 = sphi 0, %s164
      %s186 = sphi 0, %s188
      %s189 = sphi 0, %s186
      %s190 = sphi 0, %s189
      %s206 = sphi 0, %s190
      %s212 = sphi 0, %s214
      %s215 = sphi 0, %s212
      %s216 = sphi 0, %s215
      %s232 = sphi 0, %s216
      %s238 = sphi 0, %s240
      %s241 = sphi 0, %s238
      %s242 = sphi 0, %s241
      %s258 = sphi 0, %s242
      %s264 = sphi 0, %s266
      %s267 = sphi 0, %s264
      %s268 = sphi 0, %s267
      %s284 = sphi 0, %s268
      %s290 = sphi 0, %s292
      %s293 = sphi 0, %s290
      %s294 = sphi 0, %s293
      %s310 = sphi 0, %s294
      %s316 = sphi 0, %s318
      %s319 = sphi 0, %s316
      %s320 = sphi 0, %s319
      %s336 = sphi 0, %s320
      %s342 = sphi 0, %s344
      %s345 = sphi 0, %s342
      %s346 = sphi 0, %s345
      %s362 = sphi 0, %s346
      %s368 = sphi 0, %s370
      %s371 = sphi 0, %s368
      %s372 = sphi 0, %s371
      %s388 = sphi 0, %s372
      %s394 = sphi 0, %s396
      %s397 = sphi 0, %s394
      %s398 = sphi 0, %s397
      %s414 = sphi 0, %s398
      %s420 = sphi 0, %s422
      %s423 = sphi 0, %s420
      %s424 = sphi 0, %s423
      %s440 = sphi 0, %s424
      %s446 = sphi 0, %s448
      %s449 = sphi 0, %s446
      %s450 = sphi 0, %s449
      %s466 = sphi 0, %s450
      %s470 = sphi 0, %s470
      %s472 = sphi 0, %s470
      %s473 = sphi 0, %s472
      %s487 = sphi 0, %s473
      %s491 = sphi 0, %s491
      %s493 = sphi 0, %s491
      %s494 = sphi 0, %s493
      %s508 = sphi 0, %s494
      %s512 = sphi 0, %s512
      %s514 = sphi 0, %s512
      %s515 = sphi 0, %s514
      %s529 = sphi 0, %s515
      %s533 = sphi 0, %s533
      %s535 = sphi 0, %s533
      %s536 = sphi 0, %s535
      %s550 = sphi 0, %s536
      %s556 = sphi 0, %s558
      %s559 = sphi 0, %s556
      %s560 = sphi 0, %s559
      %s576 = sphi 0, %s560
    $region4: #{vit_forward.1} parent=1 // loop_header_branch
      %31 = sbr.rel (%p29) target = $region8
    $region5: #{vit_forward.1} parent=1 // loop_body
      %s33 = ssub.s32 %s28, 1
      %s34 = ssub.s32 %s28, 2
      %s41 = sadd.s32 1, %s36
      %p42 = scmp.ge.s32.totalorder %s41, 2
      %s43 = scalar_select %p42, 0, %s41
      %s44 = sadd.s32 1, %s35
      %s45 = scalar_select %p42, %s44, %s35
      %p46 = scmp.ge.s32.totalorder %s45, 1
      %s47 = scalar_select %p46, 0, %s45
      %s48 = ssub.s32 %s35, %s47
      %p49 = scmp.eq.s32.totalorder %s48, 0
      %s51 = sadd.s32 %s50, 1
      %s52 = scalar_select %p49, %s50, %s51
      %p55 = pneg %p49
      %p56 = scmp.eq.s32.totalorder %s28, 1
      %p57 = por %p55, %p56
      %p58 = scmp.ne.s32.totalorder %s50, %s53
      %p59 = scmp.eq.s32.totalorder %s28, 0
      %p60 = por %p58, %p59
      %p61 = scmp.ne.s32.totalorder %s50, %s53
      %p62 = scmp.eq.s32.totalorder %s33, 1
      %p63 = por %p61, %p62
      %p64 = scmp.ne.s32.totalorder %s53, %s54
      %p65 = scmp.eq.s32.totalorder %s33, 0
      %p66 = por %p64, %p65
      %p67 = scmp.ne.s32.totalorder %s53, %s54
      %p68 = scmp.eq.s32.totalorder %s34, 1
      %p69 = por %p67, %p68
      %p71 = scmp.ne.s32.totalorder %s54, %s70
      %p72 = scmp.eq.s32.totalorder %s34, 0
      %p73 = por %p71, %p72
      %s75 = sadd.s32 %s74, 1
      %p78 = scmp.eq.s32.totalorder %s28, 1
      %p79 = scmp.ne.s32.totalorder %s74, %s76
      %p80 = scmp.eq.s32.totalorder %s28, 0
      %p81 = por %p79, %p80
      %p82 = scmp.ne.s32.totalorder %s74, %s76
      %p83 = scmp.eq.s32.totalorder %s33, 1
      %p84 = por %p82, %p83
      %p85 = scmp.ne.s32.totalorder %s76, %s77
      %p86 = scmp.eq.s32.totalorder %s33, 0
      %p87 = por %p85, %p86
      %p88 = scmp.ne.s32.totalorder %s76, %s77
      %p89 = scmp.eq.s32.totalorder %s34, 1
      %p90 = por %p88, %p89
      %p92 = scmp.ne.s32.totalorder %s77, %s91
      %p93 = scmp.eq.s32.totalorder %s34, 0
      %p94 = por %p92, %p93
      %s96 = sadd.s32 %s95, 1
      %p99 = scmp.eq.s32.totalorder %s28, 1
      %p100 = scmp.ne.s32.totalorder %s95, %s97
      %p101 = scmp.eq.s32.totalorder %s28, 0
      %p102 = por %p100, %p101
      %p103 = scmp.ne.s32.totalorder %s95, %s97
      %p104 = scmp.eq.s32.totalorder %s33, 1
      %p105 = por %p103, %p104
      %p106 = scmp.ne.s32.totalorder %s97, %s98
      %p107 = scmp.eq.s32.totalorder %s33, 0
      %p108 = por %p106, %p107
      %p109 = scmp.ne.s32.totalorder %s97, %s98
      %p110 = scmp.eq.s32.totalorder %s34, 1
      %p111 = por %p109, %p110
      %p113 = scmp.ne.s32.totalorder %s98, %s112
      %p114 = scmp.eq.s32.totalorder %s34, 0
      %p115 = por %p113, %p114
      %s117 = sadd.s32 %s116, 1
      %p120 = scmp.eq.s32.totalorder %s28, 1
      %p121 = scmp.ne.s32.totalorder %s116, %s118
      %p122 = scmp.eq.s32.totalorder %s28, 0
      %p123 = por %p121, %p122
      %p124 = scmp.ne.s32.totalorder %s116, %s118
      %p125 = scmp.eq.s32.totalorder %s33, 1
      %p126 = por %p124, %p125
      %p127 = scmp.ne.s32.totalorder %s118, %s119
      %p128 = scmp.eq.s32.totalorder %s33, 0
      %p129 = por %p127, %p128
      %p130 = scmp.ne.s32.totalorder %s118, %s119
      %p131 = scmp.eq.s32.totalorder %s34, 1
      %p132 = por %p130, %p131
      %p134 = scmp.ne.s32.totalorder %s119, %s133
      %p135 = scmp.eq.s32.totalorder %s34, 0
      %p136 = por %p134, %p135
      %s138 = sadd.s32 %s137, 1
      %p141 = scmp.eq.s32.totalorder %s28, 1
      %p142 = scmp.ne.s32.totalorder %s137, %s139
      %p143 = scmp.eq.s32.totalorder %s28, 0
      %p144 = por %p142, %p143
      %p145 = scmp.ne.s32.totalorder %s137, %s139
      %p146 = scmp.eq.s32.totalorder %s33, 1
      %p147 = por %p145, %p146
      %p148 = scmp.ne.s32.totalorder %s139, %s140
      %p149 = scmp.eq.s32.totalorder %s33, 0
      %p150 = por %p148, %p149
      %p151 = scmp.ne.s32.totalorder %s139, %s140
      %p152 = scmp.eq.s32.totalorder %s34, 1
      %p153 = por %p151, %p152
      %p155 = scmp.ne.s32.totalorder %s140, %s154
      %p156 = scmp.eq.s32.totalorder %s34, 0
      %p157 = por %p155, %p156
      %s158 = ssub.s32 %s36, %s43
      %p159 = scmp.eq.s32.totalorder %s158, 0
      %s161 = sadd.s32 %s160, 1
      %s162 = scalar_select %p159, %s160, %s161
      %p165 = pneg %p159
      %p166 = scmp.eq.s32.totalorder %s28, 1
      %p167 = por %p165, %p166
      %p168 = scmp.ne.s32.totalorder %s160, %s163
      %p169 = scmp.eq.s32.totalorder %s28, 0
      %p170 = por %p168, %p169
      %p171 = scmp.ne.s32.totalorder %s160, %s163
      %p172 = scmp.eq.s32.totalorder %s33, 1
      %p173 = por %p171, %p172
      %p174 = scmp.ne.s32.totalorder %s163, %s164
      %p175 = scmp.eq.s32.totalorder %s33, 0
      %p176 = por %p174, %p175
      %p177 = scmp.ne.s32.totalorder %s163, %s164
      %p178 = scmp.eq.s32.totalorder %s34, 1
      %p179 = por %p177, %p178
      %p181 = scmp.ne.s32.totalorder %s164, %s180
      %p182 = scmp.eq.s32.totalorder %s34, 0
      %p183 = por %p181, %p182
      %s184 = ssub.s32 %s36, %s43
      %p185 = scmp.eq.s32.totalorder %s184, 0
      %s187 = sadd.s32 %s186, 1
      %s188 = scalar_select %p185, %s186, %s187
      %p191 = pneg %p185
      %p192 = scmp.eq.s32.totalorder %s28, 1
      %p193 = por %p191, %p192
      %p194 = scmp.ne.s32.totalorder %s186, %s189
      %p195 = scmp.eq.s32.totalorder %s28, 0
      %p196 = por %p194, %p195
      %p197 = scmp.ne.s32.totalorder %s186, %s189
      %p198 = scmp.eq.s32.totalorder %s33, 1
      %p199 = por %p197, %p198
      %p200 = scmp.ne.s32.totalorder %s189, %s190
      %p201 = scmp.eq.s32.totalorder %s33, 0
      %p202 = por %p200, %p201
      %p203 = scmp.ne.s32.totalorder %s189, %s190
      %p204 = scmp.eq.s32.totalorder %s34, 1
      %p205 = por %p203, %p204
      %p207 = scmp.ne.s32.totalorder %s190, %s206
      %p208 = scmp.eq.s32.totalorder %s34, 0
      %p209 = por %p207, %p208
      %s210 = ssub.s32 %s36, %s43
      %p211 = scmp.eq.s32.totalorder %s210, 0
      %s213 = sadd.s32 %s212, 1
      %s214 = scalar_select %p211, %s212, %s213
      %p217 = pneg %p211
      %p218 = scmp.eq.s32.totalorder %s28, 1
      %p219 = por %p217, %p218
      %p220 = scmp.ne.s32.totalorder %s212, %s215
      %p221 = scmp.eq.s32.totalorder %s28, 0
      %p222 = por %p220, %p221
      %p223 = scmp.ne.s32.totalorder %s212, %s215
      %p224 = scmp.eq.s32.totalorder %s33, 1
      %p225 = por %p223, %p224
      %p226 = scmp.ne.s32.totalorder %s215, %s216
      %p227 = scmp.eq.s32.totalorder %s33, 0
      %p228 = por %p226, %p227
      %p229 = scmp.ne.s32.totalorder %s215, %s216
      %p230 = scmp.eq.s32.totalorder %s34, 1
      %p231 = por %p229, %p230
      %p233 = scmp.ne.s32.totalorder %s216, %s232
      %p234 = scmp.eq.s32.totalorder %s34, 0
      %p235 = por %p233, %p234
      %s236 = ssub.s32 %s36, %s43
      %p237 = scmp.eq.s32.totalorder %s236, 0
      %s239 = sadd.s32 %s238, 1
      %s240 = scalar_select %p237, %s238, %s239
      %p243 = pneg %p237
      %p244 = scmp.eq.s32.totalorder %s28, 1
      %p245 = por %p243, %p244
      %p246 = scmp.ne.s32.totalorder %s238, %s241
      %p247 = scmp.eq.s32.totalorder %s28, 0
      %p248 = por %p246, %p247
      %p249 = scmp.ne.s32.totalorder %s238, %s241
      %p250 = scmp.eq.s32.totalorder %s33, 1
      %p251 = por %p249, %p250
      %p252 = scmp.ne.s32.totalorder %s241, %s242
      %p253 = scmp.eq.s32.totalorder %s33, 0
      %p254 = por %p252, %p253
      %p255 = scmp.ne.s32.totalorder %s241, %s242
      %p256 = scmp.eq.s32.totalorder %s34, 1
      %p257 = por %p255, %p256
      %p259 = scmp.ne.s32.totalorder %s242, %s258
      %p260 = scmp.eq.s32.totalorder %s34, 0
      %p261 = por %p259, %p260
      %s262 = ssub.s32 %s36, %s43
      %p263 = scmp.eq.s32.totalorder %s262, 0
      %s265 = sadd.s32 %s264, 1
      %s266 = scalar_select %p263, %s264, %s265
      %p269 = pneg %p263
      %p270 = scmp.eq.s32.totalorder %s28, 1
      %p271 = por %p269, %p270
      %p272 = scmp.ne.s32.totalorder %s264, %s267
      %p273 = scmp.eq.s32.totalorder %s28, 0
      %p274 = por %p272, %p273
      %p275 = scmp.ne.s32.totalorder %s264, %s267
      %p276 = scmp.eq.s32.totalorder %s33, 1
      %p277 = por %p275, %p276
      %p278 = scmp.ne.s32.totalorder %s267, %s268
      %p279 = scmp.eq.s32.totalorder %s33, 0
      %p280 = por %p278, %p279
      %p281 = scmp.ne.s32.totalorder %s267, %s268
      %p282 = scmp.eq.s32.totalorder %s34, 1
      %p283 = por %p281, %p282
      %p285 = scmp.ne.s32.totalorder %s268, %s284
      %p286 = scmp.eq.s32.totalorder %s34, 0
      %p287 = por %p285, %p286
      %s288 = ssub.s32 %s36, %s43
      %p289 = scmp.eq.s32.totalorder %s288, 0
      %s291 = sadd.s32 %s290, 1
      %s292 = scalar_select %p289, %s290, %s291
      %p295 = pneg %p289
      %p296 = scmp.eq.s32.totalorder %s28, 1
      %p297 = por %p295, %p296
      %p298 = scmp.ne.s32.totalorder %s290, %s293
      %p299 = scmp.eq.s32.totalorder %s28, 0
      %p300 = por %p298, %p299
      %p301 = scmp.ne.s32.totalorder %s290, %s293
      %p302 = scmp.eq.s32.totalorder %s33, 1
      %p303 = por %p301, %p302
      %p304 = scmp.ne.s32.totalorder %s293, %s294
      %p305 = scmp.eq.s32.totalorder %s33, 0
      %p306 = por %p304, %p305
      %p307 = scmp.ne.s32.totalorder %s293, %s294
      %p308 = scmp.eq.s32.totalorder %s34, 1
      %p309 = por %p307, %p308
      %p311 = scmp.ne.s32.totalorder %s294, %s310
      %p312 = scmp.eq.s32.totalorder %s34, 0
      %p313 = por %p311, %p312
      %s314 = ssub.s32 %s36, %s43
      %p315 = scmp.eq.s32.totalorder %s314, 0
      %s317 = sadd.s32 %s316, 1
      %s318 = scalar_select %p315, %s316, %s317
      %p321 = pneg %p315
      %p322 = scmp.eq.s32.totalorder %s28, 1
      %p323 = por %p321, %p322
      %p324 = scmp.ne.s32.totalorder %s316, %s319
      %p325 = scmp.eq.s32.totalorder %s28, 0
      %p326 = por %p324, %p325
      %p327 = scmp.ne.s32.totalorder %s316, %s319
      %p328 = scmp.eq.s32.totalorder %s33, 1
      %p329 = por %p327, %p328
      %p330 = scmp.ne.s32.totalorder %s319, %s320
      %p331 = scmp.eq.s32.totalorder %s33, 0
      %p332 = por %p330, %p331
      %p333 = scmp.ne.s32.totalorder %s319, %s320
      %p334 = scmp.eq.s32.totalorder %s34, 1
      %p335 = por %p333, %p334
      %p337 = scmp.ne.s32.totalorder %s320, %s336
      %p338 = scmp.eq.s32.totalorder %s34, 0
      %p339 = por %p337, %p338
      %s340 = ssub.s32 %s36, %s43
      %p341 = scmp.eq.s32.totalorder %s340, 0
      %s343 = sadd.s32 %s342, 1
      %s344 = scalar_select %p341, %s342, %s343
      %p347 = pneg %p341
      %p348 = scmp.eq.s32.totalorder %s28, 1
      %p349 = por %p347, %p348
      %p350 = scmp.ne.s32.totalorder %s342, %s345
      %p351 = scmp.eq.s32.totalorder %s28, 0
      %p352 = por %p350, %p351
      %p353 = scmp.ne.s32.totalorder %s342, %s345
      %p354 = scmp.eq.s32.totalorder %s33, 1
      %p355 = por %p353, %p354
      %p356 = scmp.ne.s32.totalorder %s345, %s346
      %p357 = scmp.eq.s32.totalorder %s33, 0
      %p358 = por %p356, %p357
      %p359 = scmp.ne.s32.totalorder %s345, %s346
      %p360 = scmp.eq.s32.totalorder %s34, 1
      %p361 = por %p359, %p360
      %p363 = scmp.ne.s32.totalorder %s346, %s362
      %p364 = scmp.eq.s32.totalorder %s34, 0
      %p365 = por %p363, %p364
      %s366 = ssub.s32 %s36, %s43
      %p367 = scmp.eq.s32.totalorder %s366, 0
      %s369 = sadd.s32 %s368, 1
      %s370 = scalar_select %p367, %s368, %s369
      %p373 = pneg %p367
      %p374 = scmp.eq.s32.totalorder %s28, 1
      %p375 = por %p373, %p374
      %p376 = scmp.ne.s32.totalorder %s368, %s371
      %p377 = scmp.eq.s32.totalorder %s28, 0
      %p378 = por %p376, %p377
      %p379 = scmp.ne.s32.totalorder %s368, %s371
      %p380 = scmp.eq.s32.totalorder %s33, 1
      %p381 = por %p379, %p380
      %p382 = scmp.ne.s32.totalorder %s371, %s372
      %p383 = scmp.eq.s32.totalorder %s33, 0
      %p384 = por %p382, %p383
      %p385 = scmp.ne.s32.totalorder %s371, %s372
      %p386 = scmp.eq.s32.totalorder %s34, 1
      %p387 = por %p385, %p386
      %p389 = scmp.ne.s32.totalorder %s372, %s388
      %p390 = scmp.eq.s32.totalorder %s34, 0
      %p391 = por %p389, %p390
      %s392 = ssub.s32 %s36, %s43
      %p393 = scmp.eq.s32.totalorder %s392, 0
      %s395 = sadd.s32 %s394, 1
      %s396 = scalar_select %p393, %s394, %s395
      %p399 = pneg %p393
      %p400 = scmp.eq.s32.totalorder %s28, 1
      %p401 = por %p399, %p400
      %p402 = scmp.ne.s32.totalorder %s394, %s397
      %p403 = scmp.eq.s32.totalorder %s28, 0
      %p404 = por %p402, %p403
      %p405 = scmp.ne.s32.totalorder %s394, %s397
      %p406 = scmp.eq.s32.totalorder %s33, 1
      %p407 = por %p405, %p406
      %p408 = scmp.ne.s32.totalorder %s397, %s398
      %p409 = scmp.eq.s32.totalorder %s33, 0
      %p410 = por %p408, %p409
      %p411 = scmp.ne.s32.totalorder %s397, %s398
      %p412 = scmp.eq.s32.totalorder %s34, 1
      %p413 = por %p411, %p412
      %p415 = scmp.ne.s32.totalorder %s398, %s414
      %p416 = scmp.eq.s32.totalorder %s34, 0
      %p417 = por %p415, %p416
      %s418 = ssub.s32 %s36, %s43
      %p419 = scmp.eq.s32.totalorder %s418, 0
      %s421 = sadd.s32 %s420, 1
      %s422 = scalar_select %p419, %s420, %s421
      %p425 = pneg %p419
      %p426 = scmp.eq.s32.totalorder %s28, 1
      %p427 = por %p425, %p426
      %p428 = scmp.ne.s32.totalorder %s420, %s423
      %p429 = scmp.eq.s32.totalorder %s28, 0
      %p430 = por %p428, %p429
      %p431 = scmp.ne.s32.totalorder %s420, %s423
      %p432 = scmp.eq.s32.totalorder %s33, 1
      %p433 = por %p431, %p432
      %p434 = scmp.ne.s32.totalorder %s423, %s424
      %p435 = scmp.eq.s32.totalorder %s33, 0
      %p436 = por %p434, %p435
      %p437 = scmp.ne.s32.totalorder %s423, %s424
      %p438 = scmp.eq.s32.totalorder %s34, 1
      %p439 = por %p437, %p438
      %p441 = scmp.ne.s32.totalorder %s424, %s440
      %p442 = scmp.eq.s32.totalorder %s34, 0
      %p443 = por %p441, %p442
      %s444 = ssub.s32 %s36, %s43
      %p445 = scmp.eq.s32.totalorder %s444, 0
      %s447 = sadd.s32 %s446, 1
      %s448 = scalar_select %p445, %s446, %s447
      %p451 = pneg %p445
      %p452 = scmp.eq.s32.totalorder %s28, 1
      %p453 = por %p451, %p452
      %p454 = scmp.ne.s32.totalorder %s446, %s449
      %p455 = scmp.eq.s32.totalorder %s28, 0
      %p456 = por %p454, %p455
      %p457 = scmp.ne.s32.totalorder %s446, %s449
      %p458 = scmp.eq.s32.totalorder %s33, 1
      %p459 = por %p457, %p458
      %p460 = scmp.ne.s32.totalorder %s449, %s450
      %p461 = scmp.eq.s32.totalorder %s33, 0
      %p462 = por %p460, %p461
      %p463 = scmp.ne.s32.totalorder %s449, %s450
      %p464 = scmp.eq.s32.totalorder %s34, 1
      %p465 = por %p463, %p464
      %p467 = scmp.ne.s32.totalorder %s450, %s466
      %p468 = scmp.eq.s32.totalorder %s34, 0
      %p469 = por %p467, %p468
      %s471 = sadd.s32 %s470, 1
      %p474 = scmp.eq.s32.totalorder %s28, 1
      %p475 = scmp.ne.s32.totalorder %s470, %s472
      %p476 = scmp.eq.s32.totalorder %s28, 0
      %p477 = por %p475, %p476
      %p478 = scmp.ne.s32.totalorder %s470, %s472
      %p479 = scmp.eq.s32.totalorder %s33, 1
      %p480 = por %p478, %p479
      %p481 = scmp.ne.s32.totalorder %s472, %s473
      %p482 = scmp.eq.s32.totalorder %s33, 0
      %p483 = por %p481, %p482
      %p484 = scmp.ne.s32.totalorder %s472, %s473
      %p485 = scmp.eq.s32.totalorder %s34, 1
      %p486 = por %p484, %p485
      %p488 = scmp.ne.s32.totalorder %s473, %s487
      %p489 = scmp.eq.s32.totalorder %s34, 0
      %p490 = por %p488, %p489
      %s492 = sadd.s32 %s491, 1
      %p495 = scmp.eq.s32.totalorder %s28, 1
      %p496 = scmp.ne.s32.totalorder %s491, %s493
      %p497 = scmp.eq.s32.totalorder %s28, 0
      %p498 = por %p496, %p497
      %p499 = scmp.ne.s32.totalorder %s491, %s493
      %p500 = scmp.eq.s32.totalorder %s33, 1
      %p501 = por %p499, %p500
      %p502 = scmp.ne.s32.totalorder %s493, %s494
      %p503 = scmp.eq.s32.totalorder %s33, 0
      %p504 = por %p502, %p503
      %p505 = scmp.ne.s32.totalorder %s493, %s494
      %p506 = scmp.eq.s32.totalorder %s34, 1
      %p507 = por %p505, %p506
      %p509 = scmp.ne.s32.totalorder %s494, %s508
      %p510 = scmp.eq.s32.totalorder %s34, 0
      %p511 = por %p509, %p510
      %s513 = sadd.s32 %s512, 1
      %p516 = scmp.eq.s32.totalorder %s28, 1
      %p517 = scmp.ne.s32.totalorder %s512, %s514
      %p518 = scmp.eq.s32.totalorder %s28, 0
      %p519 = por %p517, %p518
      %p520 = scmp.ne.s32.totalorder %s512, %s514
      %p521 = scmp.eq.s32.totalorder %s33, 1
      %p522 = por %p520, %p521
      %p523 = scmp.ne.s32.totalorder %s514, %s515
      %p524 = scmp.eq.s32.totalorder %s33, 0
      %p525 = por %p523, %p524
      %p526 = scmp.ne.s32.totalorder %s514, %s515
      %p527 = scmp.eq.s32.totalorder %s34, 1
      %p528 = por %p526, %p527
      %p530 = scmp.ne.s32.totalorder %s515, %s529
      %p531 = scmp.eq.s32.totalorder %s34, 0
      %p532 = por %p530, %p531
      %s534 = sadd.s32 %s533, 1
      %p537 = scmp.eq.s32.totalorder %s28, 1
      %p538 = scmp.ne.s32.totalorder %s533, %s535
      %p539 = scmp.eq.s32.totalorder %s28, 0
      %p540 = por %p538, %p539
      %p541 = scmp.ne.s32.totalorder %s533, %s535
      %p542 = scmp.eq.s32.totalorder %s33, 1
      %p543 = por %p541, %p542
      %p544 = scmp.ne.s32.totalorder %s535, %s536
      %p545 = scmp.eq.s32.totalorder %s33, 0
      %p546 = por %p544, %p545
      %p547 = scmp.ne.s32.totalorder %s535, %s536
      %p548 = scmp.eq.s32.totalorder %s34, 1
      %p549 = por %p547, %p548
      %p551 = scmp.ne.s32.totalorder %s536, %s550
      %p552 = scmp.eq.s32.totalorder %s34, 0
      %p553 = por %p551, %p552
      %s554 = ssub.s32 %s35, %s47
      %p555 = scmp.eq.s32.totalorder %s554, 0
      %s557 = sadd.s32 %s556, 1
      %s558 = scalar_select %p555, %s556, %s557
      %p561 = pneg %p555
      %p562 = scmp.eq.s32.totalorder %s28, 1
      %p563 = por %p561, %p562
      %p564 = scmp.ne.s32.totalorder %s556, %s559
      %p565 = scmp.eq.s32.totalorder %s28, 0
      %p566 = por %p564, %p565
      %p567 = scmp.ne.s32.totalorder %s556, %s559
      %p568 = scmp.eq.s32.totalorder %s33, 1
      %p569 = por %p567, %p568
      %p570 = scmp.ne.s32.totalorder %s559, %s560
      %p571 = scmp.eq.s32.totalorder %s33, 0
      %p572 = por %p570, %p571
      %p573 = scmp.ne.s32.totalorder %s559, %s560
      %p574 = scmp.eq.s32.totalorder %s34, 1
      %p575 = por %p573, %p574
      %p577 = scmp.ne.s32.totalorder %s560, %s576
      %p578 = scmp.eq.s32.totalorder %s34, 0
      %p579 = por %p577, %p578
      %p580 = scmp.le.s32.totalorder 1, %s28
      %p581 = scmp.lt.s32.totalorder %s28, 3
      %p582 = pnand %p580, %p581
      %p583 = pneg %p582
      // Predicated region
      $region9: #{vit_forward.1} parent=5 // pred_check
        _
      $region10: #{vit_forward.1} parent=5 // pred_check_branch
        %585 = sbr.rel (%p582) target = $region12
      $region11: #{vit_forward.1} parent=5 // pred_region
        %s586 = ssub.s32 %s28, 1
        // Predicated region
        $region13: #{vit_forward.1} parent=11 // pred_check
          %p587 = pneg %p66
        $region14: #{vit_forward.1} parent=11 // pred_check_branch
          %589 = sbr.rel (%p587) target = $region16
        $region15: #{vit_forward.1} parent=11 // pred_region
          %s590 = smul.u32 2, %s37
          %p591 = scmp.lt.s32.totalorder %s590, 1
          %s592 = scalar_select %p591, %s590, 1
          %s593 = smul.addr %s592, 2
          %s594 = smul.addr %s593, 8
          %s595 = scalar_lea.vmem %s0, %s594
          %s596 = smul.u32 2, %s37
        $region16: #{vit_forward.1} parent=11 // pred_fallthru
          _
        // Predicated region
        $region17: #{vit_forward.1} parent=11 // pred_check
          %p597 = pneg %p87
        $region18: #{vit_forward.1} parent=11 // pred_check_branch
          %599 = sbr.rel (%p597) target = $region20
        $region19: #{vit_forward.1} parent=11 // pred_region
          _
        $region20: #{vit_forward.1} parent=11 // pred_fallthru
          _
        // Predicated region
        $region21: #{vit_forward.1} parent=11 // pred_check
          %p600 = pneg %p108
        $region22: #{vit_forward.1} parent=11 // pred_check_branch
          %602 = sbr.rel (%p600) target = $region24
        $region23: #{vit_forward.1} parent=11 // pred_region
          _
        $region24: #{vit_forward.1} parent=11 // pred_fallthru
          _
        // Predicated region
        $region25: #{vit_forward.1} parent=11 // pred_check
          %p603 = pneg %p129
        $region26: #{vit_forward.1} parent=11 // pred_check_branch
          %605 = sbr.rel (%p603) target = $region28
        $region27: #{vit_forward.1} parent=11 // pred_region
          _
        $region28: #{vit_forward.1} parent=11 // pred_fallthru
          _
        // Predicated region
        $region29: #{vit_forward.1} parent=11 // pred_check
          %p606 = pneg %p150
        $region30: #{vit_forward.1} parent=11 // pred_check_branch
          %608 = sbr.rel (%p606) target = $region32
        $region31: #{vit_forward.1} parent=11 // pred_region
          _
        $region32: #{vit_forward.1} parent=11 // pred_fallthru
          _
        // Predicated region
        $region33: #{vit_forward.1} parent=11 // pred_check
          %p609 = pneg %p483
        $region34: #{vit_forward.1} parent=11 // pred_check_branch
          %611 = sbr.rel (%p609) target = $region36
        $region35: #{vit_forward.1} parent=11 // pred_region
          _
        $region36: #{vit_forward.1} parent=11 // pred_fallthru
          _
        // Predicated region
        $region37: #{vit_forward.1} parent=11 // pred_check
          %p612 = pneg %p504
        $region38: #{vit_forward.1} parent=11 // pred_check_branch
          %614 = sbr.rel (%p612) target = $region40
        $region39: #{vit_forward.1} parent=11 // pred_region
          _
        $region40: #{vit_forward.1} parent=11 // pred_fallthru
          _
        // Predicated region
        $region41: #{vit_forward.1} parent=11 // pred_check
          %p615 = pneg %p525
        $region42: #{vit_forward.1} parent=11 // pred_check_branch
          %617 = sbr.rel (%p615) target = $region44
        $region43: #{vit_forward.1} parent=11 // pred_region
          _
        $region44: #{vit_forward.1} parent=11 // pred_fallthru
          _
        // Predicated region
        $region45: #{vit_forward.1} parent=11 // pred_check
          %p618 = pneg %p546
        $region46: #{vit_forward.1} parent=11 // pred_check_branch
          %620 = sbr.rel (%p618) target = $region48
        $region47: #{vit_forward.1} parent=11 // pred_region
          _
        $region48: #{vit_forward.1} parent=11 // pred_fallthru
          _
      $region12: #{vit_forward.1} parent=5 // pred_fallthru
        _
      %p621 = scmp.lt.s32.totalorder %s28, 2
      // Predicated region
      $region49: #{vit_forward.1} parent=5 // pred_check
        %p622 = pneg %p621
      $region50: #{vit_forward.1} parent=5 // pred_check_branch
        %624 = sbr.rel (%p622) target = $region52
      $region51: #{vit_forward.1} parent=5 // pred_region
        // Predicated region
        $region53: #{vit_forward.1} parent=51 // pred_check
          %p625 = pneg %p170
        $region54: #{vit_forward.1} parent=51 // pred_check_branch
          %627 = sbr.rel (%p625) target = $region56
        $region55: #{vit_forward.1} parent=51 // pred_region
          %p628 = scmp.lt.s32.totalorder %s36, 1
          %s629 = scalar_select %p628, %s36, 1
          %s630 = scalar_lea.vmem %s5, %s629
        $region56: #{vit_forward.1} parent=51 // pred_fallthru
          _
        // Predicated region
        $region57: #{vit_forward.1} parent=51 // pred_check
          %p631 = pneg %p196
        $region58: #{vit_forward.1} parent=51 // pred_check_branch
          %633 = sbr.rel (%p631) target = $region60
        $region59: #{vit_forward.1} parent=51 // pred_region
          %p634 = scmp.lt.s32.totalorder %s36, 1
          %s635 = scalar_select %p634, %s36, 1
          %s636 = scalar_lea.vmem %s6, %s635
        $region60: #{vit_forward.1} parent=51 // pred_fallthru
          _
        // Predicated region
        $region61: #{vit_forward.1} parent=51 // pred_check
          %p637 = pneg %p222
        $region62: #{vit_forward.1} parent=51 // pred_check_branch
          %639 = sbr.rel (%p637) target = $region64
        $region63: #{vit_forward.1} parent=51 // pred_region
          %p640 = scmp.lt.s32.totalorder %s36, 1
          %s641 = scalar_select %p640, %s36, 1
          %s642 = smul.addr %s641, 4
          %s643 = smul.addr %s642, 8
          %s644 = scalar_lea.vmem %s7, %s643
        $region64: #{vit_forward.1} parent=51 // pred_fallthru
          _
        // Predicated region
        $region65: #{vit_forward.1} parent=51 // pred_check
          %p645 = pneg %p248
        $region66: #{vit_forward.1} parent=51 // pred_check_branch
          %647 = sbr.rel (%p645) target = $region68
        $region67: #{vit_forward.1} parent=51 // pred_region
          %p648 = scmp.lt.s32.totalorder %s36, 1
          %s649 = scalar_select %p648, %s36, 1
          %s650 = scalar_lea.vmem %s8, %s649
        $region68: #{vit_forward.1} parent=51 // pred_fallthru
          _
        // Predicated region
        $region69: #{vit_forward.1} parent=51 // pred_check
          %p651 = pneg %p274
        $region70: #{vit_forward.1} parent=51 // pred_check_branch
          %653 = sbr.rel (%p651) target = $region72
        $region71: #{vit_forward.1} parent=51 // pred_region
          %p654 = scmp.lt.s32.totalorder %s36, 1
          %s655 = scalar_select %p654, %s36, 1
          %s656 = smul.addr %s655, 4
          %s657 = smul.addr %s656, 8
          %s658 = scalar_lea.vmem %s9, %s657
        $region72: #{vit_forward.1} parent=51 // pred_fallthru
          _
        // Predicated region
        $region73: #{vit_forward.1} parent=51 // pred_check
          %p659 = pneg %p300
        $region74: #{vit_forward.1} parent=51 // pred_check_branch
          %661 = sbr.rel (%p659) target = $region76
        $region75: #{vit_forward.1} parent=51 // pred_region
          %p662 = scmp.lt.s32.totalorder %s36, 1
          %s663 = scalar_select %p662, %s36, 1
          %s664 = scalar_lea.vmem %s10, %s663
        $region76: #{vit_forward.1} parent=51 // pred_fallthru
          _
        // Predicated region
        $region77: #{vit_forward.1} parent=51 // pred_check
          %p665 = pneg %p326
        $region78: #{vit_forward.1} parent=51 // pred_check_branch
          %667 = sbr.rel (%p665) target = $region80
        $region79: #{vit_forward.1} parent=51 // pred_region
          %p668 = scmp.lt.s32.totalorder %s36, 1
          %s669 = scalar_select %p668, %s36, 1
          %s670 = scalar_lea.vmem %s11, %s669
        $region80: #{vit_forward.1} parent=51 // pred_fallthru
          _
        // Predicated region
        $region81: #{vit_forward.1} parent=51 // pred_check
          %p671 = pneg %p352
        $region82: #{vit_forward.1} parent=51 // pred_check_branch
          %673 = sbr.rel (%p671) target = $region84
        $region83: #{vit_forward.1} parent=51 // pred_region
          %p674 = scmp.lt.s32.totalorder %s36, 1
          %s675 = scalar_select %p674, %s36, 1
          %s676 = scalar_lea.vmem %s12, %s675
        $region84: #{vit_forward.1} parent=51 // pred_fallthru
          _
        // Predicated region
        $region85: #{vit_forward.1} parent=51 // pred_check
          %p677 = pneg %p378
        $region86: #{vit_forward.1} parent=51 // pred_check_branch
          %679 = sbr.rel (%p677) target = $region88
        $region87: #{vit_forward.1} parent=51 // pred_region
          %p680 = scmp.lt.s32.totalorder %s36, 1
          %s681 = scalar_select %p680, %s36, 1
          %s682 = smul.addr %s681, 4
          %s683 = smul.addr %s682, 8
          %s684 = scalar_lea.vmem %s13, %s683
        $region88: #{vit_forward.1} parent=51 // pred_fallthru
          _
        // Predicated region
        $region89: #{vit_forward.1} parent=51 // pred_check
          %p685 = pneg %p404
        $region90: #{vit_forward.1} parent=51 // pred_check_branch
          %687 = sbr.rel (%p685) target = $region92
        $region91: #{vit_forward.1} parent=51 // pred_region
          %p688 = scmp.lt.s32.totalorder %s36, 1
          %s689 = scalar_select %p688, %s36, 1
          %s690 = scalar_lea.vmem %s14, %s689
        $region92: #{vit_forward.1} parent=51 // pred_fallthru
          _
        // Predicated region
        $region93: #{vit_forward.1} parent=51 // pred_check
          %p691 = pneg %p430
        $region94: #{vit_forward.1} parent=51 // pred_check_branch
          %693 = sbr.rel (%p691) target = $region96
        $region95: #{vit_forward.1} parent=51 // pred_region
          %p694 = scmp.lt.s32.totalorder %s36, 1
          %s695 = scalar_select %p694, %s36, 1
          %s696 = smul.addr %s695, 8
          %s697 = smul.addr %s696, 8
          %s698 = scalar_lea.vmem %s15, %s697
        $region96: #{vit_forward.1} parent=51 // pred_fallthru
          _
        // Predicated region
        $region97: #{vit_forward.1} parent=51 // pred_check
          %p699 = pneg %p456
        $region98: #{vit_forward.1} parent=51 // pred_check_branch
          %701 = sbr.rel (%p699) target = $region100
        $region99: #{vit_forward.1} parent=51 // pred_region
          %p702 = scmp.lt.s32.totalorder %s36, 1
          %s703 = scalar_select %p702, %s36, 1
          %s704 = scalar_lea.vmem %s16, %s703
        $region100: #{vit_forward.1} parent=51 // pred_fallthru
          _
      $region52: #{vit_forward.1} parent=5 // pred_fallthru
        _
      %p705 = scmp.le.s32.totalorder 1, %s28
      %p706 = scmp.lt.s32.totalorder %s28, 3
      %p707 = pnand %p705, %p706
      %p708 = pneg %p707
      // Predicated region
      $region101: #{vit_forward.1} parent=5 // pred_check
        _
      $region102: #{vit_forward.1} parent=5 // pred_check_branch
        %710 = sbr.rel (%p707) target = $region104
      $region103: #{vit_forward.1} parent=5 // pred_region
        %s711 = ssub.s32 %s28, 1
        %s712 = smul.u32 2, %s37
        %p713 = scmp.lt.s32.totalorder %s712, 1
        %s714 = scalar_select %p713, %s712, 1
        %s715 = smul.addr %s714, 2
        %s716 = smul.addr %s715, 8
        %s717 = scalar_lea.vmem %s0, %s716
        %p718 = pneg %p66
        %p719 = pneg %p63
        %p720 = pneg %p87
        %p721 = pneg %p84
        %p722 = pneg %p108
        %p723 = pneg %p105
        %p724 = pneg %p129
        %p725 = pneg %p126
        %p726 = pneg %p150
        %p727 = pneg %p147
        %p728 = scmp.lt.s32.totalorder %s38, 1
        %s729 = scalar_select %p728, %s38, 1
        %s730 = scalar_lea.vmem %s5, %s729
        %p731 = pneg %p176
        %p732 = pneg %p173
        %p733 = scmp.lt.s32.totalorder %s38, 1
        %s734 = scalar_select %p733, %s38, 1
        %s735 = scalar_lea.vmem %s6, %s734
        %p736 = pneg %p202
        %p737 = pneg %p199
        %p738 = scmp.lt.s32.totalorder %s38, 1
        %s739 = scalar_select %p738, %s38, 1
        %s740 = smul.addr %s739, 4
        %s741 = smul.addr %s740, 8
        %s742 = scalar_lea.vmem %s7, %s741
        %p743 = pneg %p228
        %p744 = pneg %p225
        %p745 = scmp.lt.s32.totalorder %s38, 1
        %s746 = scalar_select %p745, %s38, 1
        %s747 = scalar_lea.vmem %s8, %s746
        %p748 = pneg %p254
        %p749 = pneg %p251
        %p750 = scmp.lt.s32.totalorder %s38, 1
        %s751 = scalar_select %p750, %s38, 1
        %s752 = smul.addr %s751, 4
        %s753 = smul.addr %s752, 8
        %s754 = scalar_lea.vmem %s9, %s753
        %p755 = pneg %p280
        %p756 = pneg %p277
        %p757 = scmp.lt.s32.totalorder %s38, 1
        %s758 = scalar_select %p757, %s38, 1
        %s759 = scalar_lea.vmem %s10, %s758
        %p760 = pneg %p306
        %p761 = pneg %p303
        %p762 = scmp.lt.s32.totalorder %s38, 1
        %s763 = scalar_select %p762, %s38, 1
        %s764 = scalar_lea.vmem %s11, %s763
        %p765 = pneg %p332
        %p766 = pneg %p329
        %p767 = scmp.lt.s32.totalorder %s38, 1
        %s768 = scalar_select %p767, %s38, 1
        %s769 = scalar_lea.vmem %s12, %s768
        %p770 = pneg %p358
        %p771 = pneg %p355
        %p772 = scmp.lt.s32.totalorder %s38, 1
        %s773 = scalar_select %p772, %s38, 1
        %s774 = smul.addr %s773, 4
        %s775 = smul.addr %s774, 8
        %s776 = scalar_lea.vmem %s13, %s775
        %p777 = pneg %p384
        %p778 = pneg %p381
        %p779 = scmp.lt.s32.totalorder %s38, 1
        %s780 = scalar_select %p779, %s38, 1
        %s781 = scalar_lea.vmem %s14, %s780
        %p782 = pneg %p410
        %p783 = pneg %p407
        %p784 = scmp.lt.s32.totalorder %s38, 1
        %s785 = scalar_select %p784, %s38, 1
        %s786 = smul.addr %s785, 8
        %s787 = smul.addr %s786, 8
        %s788 = scalar_lea.vmem %s15, %s787
        %p789 = pneg %p436
        %p790 = pneg %p433
        %p791 = scmp.lt.s32.totalorder %s38, 1
        %s792 = scalar_select %p791, %s38, 1
        %s793 = scalar_lea.vmem %s16, %s792
        %p794 = pneg %p462
        %p795 = pneg %p459
        %p796 = pneg %p483
        %p797 = pneg %p480
        %p798 = pneg %p504
        %p799 = pneg %p501
        %p800 = pneg %p525
        %p801 = pneg %p522
        %p802 = pneg %p546
        %p803 = pneg %p543
        %p804 = pneg %p572
        %p805 = pneg %p569
        %s806 = smul.u32 2, %s37
        %p807 = scmp.lt.s32.totalorder %s806, 1
        %s808 = scalar_select %p807, %s806, 1
        %s809 = smul.addr %s808, 2
        %s810 = smul.addr %s809, 8
        %s811 = scalar_lea.vmem %s0, %s810
        %s812 = smul.u32 2, %s37
        %p813 = scmp.lt.s32.totalorder %s38, 1
        %s814 = scalar_select %p813, %s38, 1
        %s815 = scalar_lea.vmem %s5, %s814
        %p816 = scmp.lt.s32.totalorder %s38, 1
        %s817 = scalar_select %p816, %s38, 1
        %s818 = scalar_lea.vmem %s6, %s817
        %p819 = scmp.lt.s32.totalorder %s38, 1
        %s820 = scalar_select %p819, %s38, 1
        %s821 = smul.addr %s820, 4
        %s822 = smul.addr %s821, 8
        %s823 = scalar_lea.vmem %s7, %s822
        %p824 = scmp.lt.s32.totalorder %s38, 1
        %s825 = scalar_select %p824, %s38, 1
        %s826 = scalar_lea.vmem %s8, %s825
        %p827 = scmp.lt.s32.totalorder %s38, 1
        %s828 = scalar_select %p827, %s38, 1
        %s829 = smul.addr %s828, 4
        %s830 = smul.addr %s829, 8
        %s831 = scalar_lea.vmem %s9, %s830
        %p832 = scmp.lt.s32.totalorder %s38, 1
        %s833 = scalar_select %p832, %s38, 1
        %s834 = scalar_lea.vmem %s10, %s833
        %p835 = scmp.lt.s32.totalorder %s38, 1
        %s836 = scalar_select %p835, %s38, 1
        %s837 = scalar_lea.vmem %s11, %s836
        %p838 = scmp.lt.s32.totalorder %s38, 1
        %s839 = scalar_select %p838, %s38, 1
        %s840 = scalar_lea.vmem %s12, %s839
        %p841 = scmp.lt.s32.totalorder %s38, 1
        %s842 = scalar_select %p841, %s38, 1
        %s843 = smul.addr %s842, 4
        %s844 = smul.addr %s843, 8
        %s845 = scalar_lea.vmem %s13, %s844
        %p846 = scmp.lt.s32.totalorder %s38, 1
        %s847 = scalar_select %p846, %s38, 1
        %s848 = scalar_lea.vmem %s14, %s847
        %p849 = scmp.lt.s32.totalorder %s38, 1
        %s850 = scalar_select %p849, %s38, 1
        %s851 = smul.addr %s850, 8
        %s852 = smul.addr %s851, 8
        %s853 = scalar_lea.vmem %s15, %s852
        %p854 = scmp.lt.s32.totalorder %s38, 1
        %s855 = scalar_select %p854, %s38, 1
        %s856 = scalar_lea.vmem %s16, %s855
        %p857 = scmp.eq.s32.totalorder %s38, 0
        // Predicated region
        $region105: #{vit_forward.1} parent=103 // pred_check
          %p858 = pneg %p857
        $region106: #{vit_forward.1} parent=103 // pred_check_branch
          %860 = sbr.rel (%p858) target = $region108
        $region107: #{vit_forward.1} parent=103 // pred_region
          %v861 = vld [vmem:[%s1] sm:$0xff]
          %v862 = vld [vmem:[%s1 + $0x8] sm:$0xff]
          %v863 = vld [vmem:[%s1 + $0x10] sm:$0xff]
          %v864 = vld [vmem:[%s1 + $0x18] sm:$0xff]
          %v865 = vld [vmem:[%s1 + $0x20] sm:$0xff]
          %v866 = vld [vmem:[%s1 + $0x28] sm:$0xff]
          %v867 = vld [vmem:[%s1 + $0x30] sm:$0xff]
          %v868 = vld [vmem:[%s1 + $0x38] sm:$0xff]
          %v869 = vld [vmem:[%s2] sm:$0x1]
          %v870 = vld [vmem:[%s4] sm:$0xff]
          %v871 = vld [vmem:[%s4 + $0x8] sm:$0xff]
          %v872 = vld [vmem:[%s4 + $0x10] sm:$0x1]
          %v873 = vld [vmem:[%s3] sm:$0x1]
          %v874 = vadd.f32 %v873, %v870
          %v875 = vld [vmem:[%s811] sm:$0xff]
          %v876 = vld [vmem:[%s811 + $0x8] sm:$0xff]
          %v878 = vlaneseq
          %v879 = vshrl.u32 %v878, 7
          %v880 = vsub.s32 0, %v879
          %v881 = vrot.slane %v869, %v880
          %vm883 = vcmask 523264
          %v885 = vsel %vm883, %v875, 0
          %v888 = vsel %vm883, %v876, 0
          %890 = vmatprep.subr.mxu0 0.0
          %891 = vmatpush1.msra.mxu0 0.0
          %892 = vmatprep.subr.mxu0 0.0
          %893 = vmatpush1.msra.mxu0 0.0
          %894 = vmatprep.subr.mxu0 0.0
          %895 = vmatpush1.msra.mxu0 0.0
          %896 = vmatprep.subr.mxu0 0.0
          %897 = vmatpush1.msra.mxu0 0.0
          %898 = vmatprep.subr.mxu0 0.0
          %899 = vmatpush1.msra.mxu0 0.0
          %900 = vmatprep.subr.mxu0 0.0
          %901 = vmatpush1.msra.mxu0 0.0
          %902 = vmatprep.subr.mxu0 0.0
          %903 = vmatpush1.msra.mxu0 0.0
          %904 = vmatprep.subr.mxu0 0.0
          %905 = vmatpush1.msra.mxu0 0.0
          %906 = vmatprep.subr.mxu0 0.0
          %907 = vmatpush1.msra.mxu0 %v868
          %908 = vmatprep.subr.mxu0 0.0
          %909 = vmatpush1.msra.mxu0 %v867
          %910 = vmatprep.subr.mxu0 0.0
          %911 = vmatpush1.msra.mxu0 %v866
          %912 = vmatprep.subr.mxu0 0.0
          %913 = vmatpush1.msra.mxu0 %v865
          %914 = vmatprep.subr.mxu0 0.0
          %915 = vmatpush1.msra.mxu0 %v864
          %916 = vmatprep.subr.mxu0 0.0
          %917 = vmatpush1.msra.mxu0 %v863
          %918 = vmatprep.subr.mxu0 0.0
          %919 = vmatpush1.msra.mxu0 %v862
          %920 = vmatprep.subr.mxu0 0.0
          %921 = vmatpush1.msra.mxu0 %v861
          %922 = vmatprep.subr.mxu0 0.0
          %923 = vmatpush2.msra.mxu0 0.0
          %924 = vmatprep.subr.mxu0 0.0
          %925 = vmatpush2.msra.mxu0 0.0
          %926 = vmatprep.subr.mxu0 0.0
          %927 = vmatpush2.msra.mxu0 0.0
          %928 = vmatprep.subr.mxu0 0.0
          %929 = vmatpush2.msra.mxu0 0.0
          %930 = vmatprep.subr.mxu0 0.0
          %931 = vmatpush2.msra.mxu0 0.0
          %932 = vmatprep.subr.mxu0 0.0
          %933 = vmatpush2.msra.mxu0 0.0
          %934 = vmatprep.subr.mxu0 0.0
          %935 = vmatpush2.msra.mxu0 0.0
          %936 = vmatprep.subr.mxu0 0.0
          %937 = vmatpush2.msra.mxu0 0.0
          %938 = vmatprep.subr.mxu0 0.0
          %939 = vmatpush2.msra.mxu0 0.0
          %940 = vmatprep.subr.mxu0 0.0
          %941 = vmatpush2.msra.mxu0 0.0
          %942 = vmatprep.subr.mxu0 0.0
          %943 = vmatpush2.msra.mxu0 0.0
          %944 = vmatprep.subr.mxu0 0.0
          %945 = vmatpush2.msra.mxu0 0.0
          %946 = vmatprep.subr.mxu0 0.0
          %947 = vmatpush2.msra.mxu0 0.0
          %948 = vmatprep.subr.mxu0 0.0
          %949 = vmatpush2.msra.mxu0 0.0
          %950 = vmatprep.subr.mxu0 0.0
          %951 = vmatpush2.msra.mxu0 0.0
          %952 = vmatprep.subr.mxu0 0.0
          %953 = vmatpush2.msra.mxu0 0.0
          %954 = vmatprep.mubr.f32.mxu0 0.0
          %955 = vmatmul.mubr.f32.gmra.mxu0 %v885
          %v956 = vpop.f32.mrf.mxu0
          %v957 = vadd.f32 %v881, %v956
          %v958 = vpop.f32.mrf.mxu0
          %959 = vmatprep.mubr.f32.mxu0 0.0
          %960 = vmatmul.mubr.f32.gmra.mxu0 %v888
          %v961 = vpop.f32.mrf.mxu0
          %v962 = vadd.f32 %v881, %v961
          %v963 = vpop.f32.mrf.mxu0
          %964 = vdwg.mxu0
          %vm965 = vcmask 253952
          %966 = vst.msk [vmem:[#allocation2] sm:$0x1] %vm965, %v874
          %vm970 = vcmask 1046528
          %v971 = vrot.slane %v870, 1
          %v972 = vrot.slane %v871, 1
          %v973 = vsel %vm970, %v971, %v972
          %v974 = vrot.slane %v872, 1
          %v975 = vsel %vm970, %v972, %v974
          %v978 = vadd.f32 %v957, %v973
          %v979 = vadd.f32 %v962, %v975
          %vm980 = vcmask 261120
          %981 = vst.msk [vmem:[#allocation2 + $0x1] sm:$0xff] %vm980, %v978
          %982 = vst.msk [vmem:[#allocation2 + $0x9] sm:$0xff] %vm980, %v979
          %s983 = scalar_lea.vmem %s811, 16
          %v984 = vld [vmem:[%s983] sm:$0xff]
          %v985 = vld [vmem:[%s983 + $0x8] sm:$0xff]
          %v987 = vsel %vm883, %v984, 0
          %v990 = vsel %vm883, %v985, 0
          %992 = vmatprep.subr.mxu0 0.0
          %993 = vmatpush1.msra.mxu0 0.0
          %994 = vmatprep.subr.mxu0 0.0
          %995 = vmatpush1.msra.mxu0 0.0
          %996 = vmatprep.subr.mxu0 0.0
          %997 = vmatpush1.msra.mxu0 0.0
          %998 = vmatprep.subr.mxu0 0.0
          %999 = vmatpush1.msra.mxu0 0.0
          %1000 = vmatprep.subr.mxu0 0.0
          %1001 = vmatpush1.msra.mxu0 0.0
          %1002 = vmatprep.subr.mxu0 0.0
          %1003 = vmatpush1.msra.mxu0 0.0
          %1004 = vmatprep.subr.mxu0 0.0
          %1005 = vmatpush1.msra.mxu0 0.0
          %1006 = vmatprep.subr.mxu0 0.0
          %1007 = vmatpush1.msra.mxu0 0.0
          %1008 = vmatprep.subr.mxu0 0.0
          %1009 = vmatpush1.msra.mxu0 %v868
          %1010 = vmatprep.subr.mxu0 0.0
          %1011 = vmatpush1.msra.mxu0 %v867
          %1012 = vmatprep.subr.mxu0 0.0
          %1013 = vmatpush1.msra.mxu0 %v866
          %1014 = vmatprep.subr.mxu0 0.0
          %1015 = vmatpush1.msra.mxu0 %v865
          %1016 = vmatprep.subr.mxu0 0.0
          %1017 = vmatpush1.msra.mxu0 %v864
          %1018 = vmatprep.subr.mxu0 0.0
          %1019 = vmatpush1.msra.mxu0 %v863
          %1020 = vmatprep.subr.mxu0 0.0
          %1021 = vmatpush1.msra.mxu0 %v862
          %1022 = vmatprep.subr.mxu0 0.0
          %1023 = vmatpush1.msra.mxu0 %v861
          %1024 = vmatprep.subr.mxu0 0.0
          %1025 = vmatpush2.msra.mxu0 0.0
          %1026 = vmatprep.subr.mxu0 0.0
          %1027 = vmatpush2.msra.mxu0 0.0
          %1028 = vmatprep.subr.mxu0 0.0
          %1029 = vmatpush2.msra.mxu0 0.0
          %1030 = vmatprep.subr.mxu0 0.0
          %1031 = vmatpush2.msra.mxu0 0.0
          %1032 = vmatprep.subr.mxu0 0.0
          %1033 = vmatpush2.msra.mxu0 0.0
          %1034 = vmatprep.subr.mxu0 0.0
          %1035 = vmatpush2.msra.mxu0 0.0
          %1036 = vmatprep.subr.mxu0 0.0
          %1037 = vmatpush2.msra.mxu0 0.0
          %1038 = vmatprep.subr.mxu0 0.0
          %1039 = vmatpush2.msra.mxu0 0.0
          %1040 = vmatprep.subr.mxu0 0.0
          %1041 = vmatpush2.msra.mxu0 0.0
          %1042 = vmatprep.subr.mxu0 0.0
          %1043 = vmatpush2.msra.mxu0 0.0
          %1044 = vmatprep.subr.mxu0 0.0
          %1045 = vmatpush2.msra.mxu0 0.0
          %1046 = vmatprep.subr.mxu0 0.0
          %1047 = vmatpush2.msra.mxu0 0.0
          %1048 = vmatprep.subr.mxu0 0.0
          %1049 = vmatpush2.msra.mxu0 0.0
          %1050 = vmatprep.subr.mxu0 0.0
          %1051 = vmatpush2.msra.mxu0 0.0
          %1052 = vmatprep.subr.mxu0 0.0
          %1053 = vmatpush2.msra.mxu0 0.0
          %1054 = vmatprep.subr.mxu0 0.0
          %1055 = vmatpush2.msra.mxu0 0.0
          %1056 = vmatprep.mubr.f32.mxu0 0.0
          %1057 = vmatmul.mubr.f32.gmra.mxu0 %v987
          %v1058 = vpop.f32.mrf.mxu0
          %v1059 = vadd.f32 %v881, %v1058
          %v1060 = vpop.f32.mrf.mxu0
          %1061 = vmatprep.mubr.f32.mxu0 0.0
          %1062 = vmatmul.mubr.f32.gmra.mxu0 %v990
          %v1063 = vpop.f32.mrf.mxu0
          %v1064 = vadd.f32 %v881, %v1063
          %v1065 = vpop.f32.mrf.mxu0
          %1066 = vdwg.mxu0
          %s1067 = scalar_lea.vmem [#allocation2], 24
          %1068 = vst.msk [vmem:[%s1067] sm:$0x1] %vm965, %v874
          %v1069 = vadd.f32 %v1059, %v973
          %v1070 = vadd.f32 %v1064, %v975
          %1071 = vst.msk [vmem:[%s1067 + $0x1] sm:$0xff] %vm980, %v1069
          %1072 = vst.msk [vmem:[%s1067 + $0x9] sm:$0xff] %vm980, %v1070
        $region108: #{vit_forward.1} parent=103 // pred_fallthru
          _
        %v1073 = vld [vmem:[%s815] sm:$0x1]
        %v1074 = vld [vmem:[%s818] sm:$0x1]
        %v1075 = vld [vmem:[%s823] sm:$0xff]
        %v1076 = vld [vmem:[%s823 + $0x8] sm:$0xff]
        %v1077 = vld [vmem:[%s823 + $0x10] sm:$0xff]
        %v1078 = vld [vmem:[%s823 + $0x18] sm:$0xff]
        %v1079 = vld [vmem:[%s826] sm:$0x1]
        %v1080 = vld [vmem:[%s831] sm:$0xff]
        %v1081 = vld [vmem:[%s831 + $0x8] sm:$0xff]
        %v1082 = vld [vmem:[%s831 + $0x10] sm:$0xff]
        %v1083 = vld [vmem:[%s831 + $0x18] sm:$0xff]
        %v1084 = vld [vmem:[%s834] sm:$0x1]
        %v1085 = vld [vmem:[%s837] sm:$0x1]
        %v1086 = vld [vmem:[%s840] sm:$0x1]
        %v1087 = vld [vmem:[%s845] sm:$0xff]
        %v1088 = vld [vmem:[%s845 + $0x8] sm:$0xff]
        %v1089 = vld [vmem:[%s845 + $0x10] sm:$0xff]
        %v1090 = vld [vmem:[%s845 + $0x18] sm:$0xff]
        %v1091 = vld [vmem:[%s848] sm:$0x1]
        %v1092 = vld [vmem:[%s853] sm:$0xff]
        %v1093 = vld [vmem:[%s853 + $0x8] sm:$0xff]
        %v1094 = vld [vmem:[%s853 + $0x10] sm:$0xff]
        %v1095 = vld [vmem:[%s853 + $0x18] sm:$0xff]
        %v1096 = vld [vmem:[%s853 + $0x20] sm:$0xff]
        %v1097 = vld [vmem:[%s853 + $0x28] sm:$0xff]
        %v1098 = vld [vmem:[%s853 + $0x30] sm:$0xff]
        %v1099 = vld [vmem:[%s853 + $0x38] sm:$0xff]
        %v1100 = vld [vmem:[%s856] sm:$0x1]
        %v1101 = vld [vmem:[#allocation2] sm:$0xff]
        %v1102 = vld [vmem:[#allocation2 + $0x8] sm:$0xff]
        %v1103 = vld [vmem:[#allocation2 + $0x10] sm:$0x1]
        %vm1104 = vcmask 261120
        %v1105 = vsel %vm1104, %v1101, 0.0
        %1106 = vadd.xlane.f32.xlu0 %v1105
        %v1107 = vpop.xlane.xlu0 %1106
        %v1108 = vsel %vm1104, %v1102, 0.0
        %1109 = vadd.xlane.f32.xlu0 %v1108
        %v1110 = vpop.xlane.xlu0 %1109
        %vm1111 = vcmask 253952
        %v1112 = vsel %vm1111, %v1103, 0.0
        %1113 = vadd.xlane.f32.xlu0 %v1112
        %v1114 = vpop.xlane.xlu0 %1113
        %v1115 = vrcp.pop 32.0
        %v1116 = vmul.f32 %v1107, %v1115
        %v1117 = vmul.f32 %v1110, %v1115
        %v1118 = vmul.f32 %v1114, %v1115
        %v1119 = vsub.f32 %v1101, %v1116
        %v1120 = vsub.f32 %v1102, %v1117
        %v1121 = vsub.f32 %v1103, %v1118
        %v1122 = vmul.f32 %v1119, %v1119
        %v1123 = vmul.f32 %v1120, %v1120
        %v1124 = vmul.f32 %v1121, %v1121
        %v1125 = vsel %vm1104, %v1122, 0.0
        %1126 = vadd.xlane.f32.xlu0 %v1125
        %v1127 = vpop.xlane.xlu0 %1126
        %v1128 = vsel %vm1104, %v1123, 0.0
        %1129 = vadd.xlane.f32.xlu0 %v1128
        %v1130 = vpop.xlane.xlu0 %1129
        %v1131 = vsel %vm1111, %v1124, 0.0
        %1132 = vadd.xlane.f32.xlu0 %v1131
        %v1133 = vpop.xlane.xlu0 %1132
        %v1134 = vmul.f32 %v1127, %v1115
        %v1135 = vmul.f32 %v1130, %v1115
        %v1136 = vmul.f32 %v1133, %v1115
        %v1137 = vadd.f32 %v1134, 1e-05
        %v1138 = vadd.f32 %v1135, 1e-05
        %v1139 = vadd.f32 %v1136, 1e-05
        %v1140 = vrsqrt.pop %v1137
        %v1141 = vrsqrt.pop %v1138
        %v1142 = vrsqrt.pop %v1139
        %v1143 = vmul.f32 %v1119, %v1140
        %v1144 = vmul.f32 %v1120, %v1141
        %v1145 = vmul.f32 %v1121, %v1142
        %v1147 = vlaneseq
        %v1148 = vshrl.u32 %v1147, 7
        %v1149 = vsub.s32 0, %v1148
        %v1150 = vrot.slane %v1073, %v1149
        %v1152 = vmul.f32 %v1143, %v1150
        %v1153 = vmul.f32 %v1144, %v1150
        %v1154 = vmul.f32 %v1145, %v1150
        %v1156 = vlaneseq
        %v1157 = vshrl.u32 %v1156, 7
        %v1158 = vsub.s32 0, %v1157
        %v1159 = vrot.slane %v1074, %v1158
        %v1161 = vadd.f32 %v1152, %v1159
        %v1162 = vadd.f32 %v1153, %v1159
        %v1163 = vadd.f32 %v1154, %v1159
        %v1165 = vlaneseq
        %v1166 = vshrl.u32 %v1165, 7
        %v1167 = vsub.s32 0, %v1166
        %v1168 = vrot.slane %v1079, %v1167
        %v1171 = vsel %vm1104, %v1161, 0
        %v1174 = vsel %vm1104, %v1162, 0
        %v1177 = vsel %vm1104, %v1163, 0
        %1179 = vmatprep.subr.mxu0 0.0
        %1180 = vmatpush1.msra.mxu0 0.0
        %1181 = vmatprep.subr.mxu0 0.0
        %1182 = vmatpush1.msra.mxu0 0.0
        %1183 = vmatprep.subr.mxu0 0.0
        %1184 = vmatpush1.msra.mxu0 0.0
        %1185 = vmatprep.subr.mxu0 0.0
        %1186 = vmatpush1.msra.mxu0 0.0
        %1187 = vmatprep.subr.mxu0 0.0
        %1188 = vmatpush1.msra.mxu0 0.0
        %1189 = vmatprep.subr.mxu0 0.0
        %1190 = vmatpush1.msra.mxu0 0.0
        %1191 = vmatprep.subr.mxu0 0.0
        %1192 = vmatpush1.msra.mxu0 0.0
        %1193 = vmatprep.subr.mxu0 0.0
        %1194 = vmatpush1.msra.mxu0 0.0
        %1195 = vmatprep.subr.mxu0 0.0
        %1196 = vmatpush1.msra.mxu0 0.0
        %1197 = vmatprep.subr.mxu0 0.0
        %1198 = vmatpush1.msra.mxu0 0.0
        %1199 = vmatprep.subr.mxu0 0.0
        %1200 = vmatpush1.msra.mxu0 0.0
        %1201 = vmatprep.subr.mxu0 0.0
        %1202 = vmatpush1.msra.mxu0 0.0
        %1203 = vmatprep.subr.mxu0 0.0
        %1204 = vmatpush1.msra.mxu0 %v1078
        %1205 = vmatprep.subr.mxu0 0.0
        %1206 = vmatpush1.msra.mxu0 %v1077
        %1207 = vmatprep.subr.mxu0 0.0
        %1208 = vmatpush1.msra.mxu0 %v1076
        %1209 = vmatprep.subr.mxu0 0.0
        %1210 = vmatpush1.msra.mxu0 %v1075
        %1211 = vmatprep.subr.mxu0 0.0
        %1212 = vmatpush2.msra.mxu0 0.0
        %1213 = vmatprep.subr.mxu0 0.0
        %1214 = vmatpush2.msra.mxu0 0.0
        %1215 = vmatprep.subr.mxu0 0.0
        %1216 = vmatpush2.msra.mxu0 0.0
        %1217 = vmatprep.subr.mxu0 0.0
        %1218 = vmatpush2.msra.mxu0 0.0
        %1219 = vmatprep.subr.mxu0 0.0
        %1220 = vmatpush2.msra.mxu0 0.0
        %1221 = vmatprep.subr.mxu0 0.0
        %1222 = vmatpush2.msra.mxu0 0.0
        %1223 = vmatprep.subr.mxu0 0.0
        %1224 = vmatpush2.msra.mxu0 0.0
        %1225 = vmatprep.subr.mxu0 0.0
        %1226 = vmatpush2.msra.mxu0 0.0
        %1227 = vmatprep.subr.mxu0 0.0
        %1228 = vmatpush2.msra.mxu0 0.0
        %1229 = vmatprep.subr.mxu0 0.0
        %1230 = vmatpush2.msra.mxu0 0.0
        %1231 = vmatprep.subr.mxu0 0.0
        %1232 = vmatpush2.msra.mxu0 0.0
        %1233 = vmatprep.subr.mxu0 0.0
        %1234 = vmatpush2.msra.mxu0 0.0
        %1235 = vmatprep.subr.mxu0 0.0
        %1236 = vmatpush2.msra.mxu0 0.0
        %1237 = vmatprep.subr.mxu0 0.0
        %1238 = vmatpush2.msra.mxu0 0.0
        %1239 = vmatprep.subr.mxu0 0.0
        %1240 = vmatpush2.msra.mxu0 0.0
        %1241 = vmatprep.subr.mxu0 0.0
        %1242 = vmatpush2.msra.mxu0 0.0
        %1243 = vmatprep.mubr.f32.mxu0 0.0
        %1244 = vmatmul.mubr.f32.gmra.mxu0 %v1171
        %v1245 = vpop.f32.mrf.mxu0
        %v1246 = vadd.f32 %v1168, %v1245
        %v1247 = vpop.f32.mrf.mxu0
        %1248 = vmatprep.mubr.f32.mxu0 0.0
        %1249 = vmatmul.mubr.f32.gmra.mxu0 %v1174
        %v1250 = vpop.f32.mrf.mxu0
        %v1251 = vadd.f32 %v1168, %v1250
        %v1252 = vpop.f32.mrf.mxu0
        %1253 = vmatprep.mubr.f32.mxu0 0.0
        %1254 = vmatmul.mubr.f32.gmra.mxu0 %v1177
        %v1255 = vpop.f32.mrf.mxu0
        %v1256 = vadd.f32 %v1168, %v1255
        %v1257 = vpop.f32.mrf.mxu0
        %1258 = vdwg.mxu0
        %v1259 = vmul.f32 %v1246, 0.35355338
        %v1260 = vmul.f32 %v1251, 0.35355338
        %v1261 = vmul.f32 %v1256, 0.35355338
        %1265 = vrot.lane.b32.xlu0 %v1246, 96
        %v1266 = vpop.permute.xlu0 %1265
        %1267 = vrot.lane.b32.xlu0 %v1251, 96
        %v1268 = vpop.permute.xlu0 %1267
        %1269 = vrot.lane.b32.xlu0 %v1256, 96
        %v1270 = vpop.permute.xlu0 %1269
        %vm1271 = vcmask 64512
        %v1273 = vsel %vm1271, %v1259, 0
        %v1276 = vsel %vm1271, %v1260, 0
        %v1279 = vsel %vm1271, %v1261, 0
        %v1281 = vsel %vm1271, %v1266, 0
        %v1283 = vsel %vm1271, %v1268, 0
        %v1285 = vsel %vm1271, %v1270, 0
        %1287 = vmatprep.subr.mxu0 0.0
        %1288 = vmatpush1.xpose.msra.mxu0 0.0
        %1289 = vmatprep.subr.mxu0 0.0
        %1290 = vmatpush1.xpose.msra.mxu0 0.0
        %1291 = vmatprep.subr.mxu0 0.0
        %1292 = vmatpush1.xpose.msra.mxu0 0.0
        %1293 = vmatprep.subr.mxu0 0.0
        %1294 = vmatpush1.xpose.msra.mxu0 0.0
        %1295 = vmatprep.subr.mxu0 0.0
        %1296 = vmatpush1.xpose.msra.mxu0 0.0
        %1297 = vmatprep.subr.mxu0 0.0
        %1298 = vmatpush1.xpose.msra.mxu0 0.0
        %1299 = vmatprep.subr.mxu0 0.0
        %1300 = vmatpush1.xpose.msra.mxu0 0.0
        %1301 = vmatprep.subr.mxu0 0.0
        %1302 = vmatpush1.xpose.msra.mxu0 0.0
        %1303 = vmatprep.subr.mxu0 0.0
        %1304 = vmatpush1.xpose.msra.mxu0 0.0
        %1305 = vmatprep.subr.mxu0 0.0
        %1306 = vmatpush1.xpose.msra.mxu0 0.0
        %1307 = vmatprep.subr.mxu0 0.0
        %1308 = vmatpush1.xpose.msra.mxu0 0.0
        %1309 = vmatprep.subr.mxu0 0.0
        %1310 = vmatpush1.xpose.msra.mxu0 0.0
        %1311 = vmatprep.subr.mxu0 0.0
        %1312 = vmatpush1.xpose.msra.mxu0 0.0
        %1313 = vmatprep.subr.mxu0 0.0
        %1314 = vmatpush1.xpose.msra.mxu0 %v1285
        %1315 = vmatprep.subr.mxu0 0.0
        %1316 = vmatpush1.xpose.msra.mxu0 %v1283
        %1317 = vmatprep.subr.mxu0 0.0
        %1318 = vmatpush1.xpose.msra.mxu0 %v1281
        %1319 = vmatprep.subr.mxu0 0.0
        %1320 = vmatpush2.xpose.msra.mxu0 0.0
        %1321 = vmatprep.subr.mxu0 0.0
        %1322 = vmatpush2.xpose.msra.mxu0 0.0
        %1323 = vmatprep.subr.mxu0 0.0
        %1324 = vmatpush2.xpose.msra.mxu0 0.0
        %1325 = vmatprep.subr.mxu0 0.0
        %1326 = vmatpush2.xpose.msra.mxu0 0.0
        %1327 = vmatprep.subr.mxu0 0.0
        %1328 = vmatpush2.xpose.msra.mxu0 0.0
        %1329 = vmatprep.subr.mxu0 0.0
        %1330 = vmatpush2.xpose.msra.mxu0 0.0
        %1331 = vmatprep.subr.mxu0 0.0
        %1332 = vmatpush2.xpose.msra.mxu0 0.0
        %1333 = vmatprep.subr.mxu0 0.0
        %1334 = vmatpush2.xpose.msra.mxu0 0.0
        %1335 = vmatprep.subr.mxu0 0.0
        %1336 = vmatpush2.xpose.msra.mxu0 0.0
        %1337 = vmatprep.subr.mxu0 0.0
        %1338 = vmatpush2.xpose.msra.mxu0 0.0
        %1339 = vmatprep.subr.mxu0 0.0
        %1340 = vmatpush2.xpose.msra.mxu0 0.0
        %1341 = vmatprep.subr.mxu0 0.0
        %1342 = vmatpush2.xpose.msra.mxu0 0.0
        %1343 = vmatprep.subr.mxu0 0.0
        %1344 = vmatpush2.xpose.msra.mxu0 0.0
        %1345 = vmatprep.subr.mxu0 0.0
        %1346 = vmatpush2.xpose.msra.mxu0 0.0
        %1347 = vmatprep.subr.mxu0 0.0
        %1348 = vmatpush2.xpose.msra.mxu0 0.0
        %1349 = vmatprep.subr.mxu0 0.0
        %1350 = vmatpush2.xpose.msra.mxu0 0.0
        %1351 = vmatprep.mubr.f32.mxu0 0.0
        %1352 = vmatmul.mubr.f32.gmra.mxu0 %v1273
        %v1353 = vpop.f32.mrf.mxu0
        %v1354 = vadd.f32 0.0, %v1353
        %v1355 = vpop.f32.mrf.mxu0
        %1356 = vmatprep.mubr.f32.mxu0 0.0
        %1357 = vmatmul.mubr.f32.gmra.mxu0 %v1276
        %v1358 = vpop.f32.mrf.mxu0
        %v1359 = vadd.f32 0.0, %v1358
        %v1360 = vpop.f32.mrf.mxu0
        %1361 = vmatprep.mubr.f32.mxu0 0.0
        %1362 = vmatmul.mubr.f32.gmra.mxu0 %v1279
        %v1363 = vpop.f32.mrf.mxu0
        %v1364 = vadd.f32 0.0, %v1363
        %v1365 = vpop.f32.mrf.mxu0
        %1366 = vdwg.mxu0
        %vm1367 = vcmask 138240
        %v1368 = vsel %vm1367, %v1354, -inf
        %1369 = vmax.xlane.f32.xlu0 %v1368
        %v1370 = vpop.xlane.xlu0 %1369
        %v1371 = vsel %vm1367, %v1359, -inf
        %1372 = vmax.xlane.f32.xlu0 %v1371
        %v1373 = vpop.xlane.xlu0 %1372
        %vm1374 = vcmask 131072
        %v1375 = vsel %vm1374, %v1364, -inf
        %1376 = vmax.xlane.f32.xlu0 %v1375
        %v1377 = vpop.xlane.xlu0 %1376
        %v1378 = vsub.f32 %v1354, %v1370
        %v1379 = vsub.f32 %v1359, %v1373
        %v1380 = vsub.f32 %v1364, %v1377
        %v1381 = vmul.f32 %v1378, 1.442695
        %v1382 = vpow.pop %v1381
        %v1383 = vmul.f32 %v1379, 1.442695
        %v1384 = vpow.pop %v1383
        %v1385 = vmul.f32 %v1380, 1.442695
        %v1386 = vpow.pop %v1385
        %v1387 = vsel %vm1367, %v1382, 0.0
        %1388 = vadd.xlane.f32.xlu0 %v1387
        %v1389 = vpop.xlane.xlu0 %1388
        %v1390 = vsel %vm1367, %v1384, 0.0
        %1391 = vadd.xlane.f32.xlu0 %v1390
        %v1392 = vpop.xlane.xlu0 %1391
        %v1393 = vsel %vm1374, %v1386, 0.0
        %1394 = vadd.xlane.f32.xlu0 %v1393
        %v1395 = vpop.xlane.xlu0 %1394
        %v1396 = vrcp.pop %v1389
        %v1397 = vrcp.pop %v1392
        %v1398 = vrcp.pop %v1395
        %v1399 = vmul.f32 %v1382, %v1396
        %v1400 = vmul.f32 %v1384, %v1397
        %v1401 = vmul.f32 %v1386, %v1398
        %1402 = vrot.lane.b32.xlu0 %v1246, 64
        %v1403 = vpop.permute.xlu0 %1402
        %1404 = vrot.lane.b32.xlu0 %v1251, 64
        %v1405 = vpop.permute.xlu0 %1404
        %1406 = vrot.lane.b32.xlu0 %v1256, 64
        %v1407 = vpop.permute.xlu0 %1406
        %v1411 = vsel %vm1367, %v1399, 0
        %v1414 = vsel %vm1367, %v1400, 0
        %v1417 = vsel %vm1367, %v1401, 0
        %vm1419 = vcmask 1040384
        %v1420 = vsel %vm1419, %v1407, 0
        %1422 = vmatprep.subr.mxu0 0.0
        %1423 = vmatpush1.msra.mxu0 0.0
        %1424 = vmatprep.subr.mxu0 0.0
        %1425 = vmatpush1.msra.mxu0 0.0
        %1426 = vmatprep.subr.mxu0 0.0
        %1427 = vmatpush1.msra.mxu0 0.0
        %1428 = vmatprep.subr.mxu0 0.0
        %1429 = vmatpush1.msra.mxu0 0.0
        %1430 = vmatprep.subr.mxu0 0.0
        %1431 = vmatpush1.msra.mxu0 0.0
        %1432 = vmatprep.subr.mxu0 0.0
        %1433 = vmatpush1.msra.mxu0 0.0
        %1434 = vmatprep.subr.mxu0 0.0
        %1435 = vmatpush1.msra.mxu0 0.0
        %1436 = vmatprep.subr.mxu0 0.0
        %1437 = vmatpush1.msra.mxu0 0.0
        %1438 = vmatprep.subr.mxu0 0.0
        %1439 = vmatpush1.msra.mxu0 0.0
        %1440 = vmatprep.subr.mxu0 0.0
        %1441 = vmatpush1.msra.mxu0 0.0
        %1442 = vmatprep.subr.mxu0 0.0
        %1443 = vmatpush1.msra.mxu0 0.0
        %1444 = vmatprep.subr.mxu0 0.0
        %1445 = vmatpush1.msra.mxu0 0.0
        %1446 = vmatprep.subr.mxu0 0.0
        %1447 = vmatpush1.msra.mxu0 0.0
        %1448 = vmatprep.subr.mxu0 0.0
        %1449 = vmatpush1.msra.mxu0 %v1420
        %1450 = vmatprep.subr.mxu0 0.0
        %1451 = vmatpush1.msra.mxu0 %v1405
        %1452 = vmatprep.subr.mxu0 0.0
        %1453 = vmatpush1.msra.mxu0 %v1403
        %1454 = vmatprep.subr.mxu0 0.0
        %1455 = vmatpush2.msra.mxu0 0.0
        %1456 = vmatprep.subr.mxu0 0.0
        %1457 = vmatpush2.msra.mxu0 0.0
        %1458 = vmatprep.subr.mxu0 0.0
        %1459 = vmatpush2.msra.mxu0 0.0
        %1460 = vmatprep.subr.mxu0 0.0
        %1461 = vmatpush2.msra.mxu0 0.0
        %1462 = vmatprep.subr.mxu0 0.0
        %1463 = vmatpush2.msra.mxu0 0.0
        %1464 = vmatprep.subr.mxu0 0.0
        %1465 = vmatpush2.msra.mxu0 0.0
        %1466 = vmatprep.subr.mxu0 0.0
        %1467 = vmatpush2.msra.mxu0 0.0
        %1468 = vmatprep.subr.mxu0 0.0
        %1469 = vmatpush2.msra.mxu0 0.0
        %1470 = vmatprep.subr.mxu0 0.0
        %1471 = vmatpush2.msra.mxu0 0.0
        %1472 = vmatprep.subr.mxu0 0.0
        %1473 = vmatpush2.msra.mxu0 0.0
        %1474 = vmatprep.subr.mxu0 0.0
        %1475 = vmatpush2.msra.mxu0 0.0
        %1476 = vmatprep.subr.mxu0 0.0
        %1477 = vmatpush2.msra.mxu0 0.0
        %1478 = vmatprep.subr.mxu0 0.0
        %1479 = vmatpush2.msra.mxu0 0.0
        %1480 = vmatprep.subr.mxu0 0.0
        %1481 = vmatpush2.msra.mxu0 0.0
        %1482 = vmatprep.subr.mxu0 0.0
        %1483 = vmatpush2.msra.mxu0 0.0
        %1484 = vmatprep.subr.mxu0 0.0
        %1485 = vmatpush2.msra.mxu0 0.0
        %1486 = vmatprep.mubr.f32.mxu0 0.0
        %1487 = vmatmul.mubr.f32.gmra.mxu0 %v1411
        %v1488 = vpop.f32.mrf.mxu0
        %v1489 = vadd.f32 0.0, %v1488
        %v1490 = vpop.f32.mrf.mxu0
        %1491 = vmatprep.mubr.f32.mxu0 0.0
        %1492 = vmatmul.mubr.f32.gmra.mxu0 %v1414
        %v1493 = vpop.f32.mrf.mxu0
        %v1494 = vadd.f32 0.0, %v1493
        %v1495 = vpop.f32.mrf.mxu0
        %1496 = vmatprep.mubr.f32.mxu0 0.0
        %1497 = vmatmul.mubr.f32.gmra.mxu0 %v1417
        %v1498 = vpop.f32.mrf.mxu0
        %v1499 = vadd.f32 0.0, %v1498
        %v1500 = vpop.f32.mrf.mxu0
        %1501 = vdwg.mxu0
        %1502 = vrot.lane.b32.xlu0 %v1259, 120
        %v1503 = vpop.permute.xlu0 %1502
        %1504 = vrot.lane.b32.xlu0 %v1260, 120
        %v1505 = vpop.permute.xlu0 %1504
        %1506 = vrot.lane.b32.xlu0 %v1261, 120
        %v1507 = vpop.permute.xlu0 %1506
        %1508 = vrot.lane.b32.xlu0 %v1246, 88
        %v1509 = vpop.permute.xlu0 %1508
        %1510 = vrot.lane.b32.xlu0 %v1251, 88
        %v1511 = vpop.permute.xlu0 %1510
        %1512 = vrot.lane.b32.xlu0 %v1256, 88
        %v1513 = vpop.permute.xlu0 %1512
        %v1514 = vsel %vm1271, %v1503, 0
        %v1516 = vsel %vm1271, %v1505, 0
        %v1518 = vsel %vm1271, %v1507, 0
        %v1520 = vsel %vm1271, %v1509, 0
        %v1522 = vsel %vm1271, %v1511, 0
        %v1524 = vsel %vm1271, %v1513, 0
        %1526 = vmatprep.subr.mxu0 0.0
        %1527 = vmatpush1.xpose.msra.mxu0 0.0
        %1528 = vmatprep.subr.mxu0 0.0
        %1529 = vmatpush1.xpose.msra.mxu0 0.0
        %1530 = vmatprep.subr.mxu0 0.0
        %1531 = vmatpush1.xpose.msra.mxu0 0.0
        %1532 = vmatprep.subr.mxu0 0.0
        %1533 = vmatpush1.xpose.msra.mxu0 0.0
        %1534 = vmatprep.subr.mxu0 0.0
        %1535 = vmatpush1.xpose.msra.mxu0 0.0
        %1536 = vmatprep.subr.mxu0 0.0
        %1537 = vmatpush1.xpose.msra.mxu0 0.0
        %1538 = vmatprep.subr.mxu0 0.0
        %1539 = vmatpush1.xpose.msra.mxu0 0.0
        %1540 = vmatprep.subr.mxu0 0.0
        %1541 = vmatpush1.xpose.msra.mxu0 0.0
        %1542 = vmatprep.subr.mxu0 0.0
        %1543 = vmatpush1.xpose.msra.mxu0 0.0
        %1544 = vmatprep.subr.mxu0 0.0
        %1545 = vmatpush1.xpose.msra.mxu0 0.0
        %1546 = vmatprep.subr.mxu0 0.0
        %1547 = vmatpush1.xpose.msra.mxu0 0.0
        %1548 = vmatprep.subr.mxu0 0.0
        %1549 = vmatpush1.xpose.msra.mxu0 0.0
        %1550 = vmatprep.subr.mxu0 0.0
        %1551 = vmatpush1.xpose.msra.mxu0 0.0
        %1552 = vmatprep.subr.mxu0 0.0
        %1553 = vmatpush1.xpose.msra.mxu0 %v1524
        %1554 = vmatprep.subr.mxu0 0.0
        %1555 = vmatpush1.xpose.msra.mxu0 %v1522
        %1556 = vmatprep.subr.mxu0 0.0
        %1557 = vmatpush1.xpose.msra.mxu0 %v1520
        %1558 = vmatprep.subr.mxu0 0.0
        %1559 = vmatpush2.xpose.msra.mxu0 0.0
        %1560 = vmatprep.subr.mxu0 0.0
        %1561 = vmatpush2.xpose.msra.mxu0 0.0
        %1562 = vmatprep.subr.mxu0 0.0
        %1563 = vmatpush2.xpose.msra.mxu0 0.0
        %1564 = vmatprep.subr.mxu0 0.0
        %1565 = vmatpush2.xpose.msra.mxu0 0.0
        %1566 = vmatprep.subr.mxu0 0.0
        %1567 = vmatpush2.xpose.msra.mxu0 0.0
        %1568 = vmatprep.subr.mxu0 0.0
        %1569 = vmatpush2.xpose.msra.mxu0 0.0
        %1570 = vmatprep.subr.mxu0 0.0
        %1571 = vmatpush2.xpose.msra.mxu0 0.0
        %1572 = vmatprep.subr.mxu0 0.0
        %1573 = vmatpush2.xpose.msra.mxu0 0.0
        %1574 = vmatprep.subr.mxu0 0.0
        %1575 = vmatpush2.xpose.msra.mxu0 0.0
        %1576 = vmatprep.subr.mxu0 0.0
        %1577 = vmatpush2.xpose.msra.mxu0 0.0
        %1578 = vmatprep.subr.mxu0 0.0
        %1579 = vmatpush2.xpose.msra.mxu0 0.0
        %1580 = vmatprep.subr.mxu0 0.0
        %1581 = vmatpush2.xpose.msra.mxu0 0.0
        %1582 = vmatprep.subr.mxu0 0.0
        %1583 = vmatpush2.xpose.msra.mxu0 0.0
        %1584 = vmatprep.subr.mxu0 0.0
        %1585 = vmatpush2.xpose.msra.mxu0 0.0
        %1586 = vmatprep.subr.mxu0 0.0
        %1587 = vmatpush2.xpose.msra.mxu0 0.0
        %1588 = vmatprep.subr.mxu0 0.0
        %1589 = vmatpush2.xpose.msra.mxu0 0.0
        %1590 = vmatprep.mubr.f32.mxu0 0.0
        %1591 = vmatmul.mubr.f32.gmra.mxu0 %v1514
        %v1592 = vpop.f32.mrf.mxu0
        %v1593 = vadd.f32 0.0, %v1592
        %v1594 = vpop.f32.mrf.mxu0
        %1595 = vmatprep.mubr.f32.mxu0 0.0
        %1596 = vmatmul.mubr.f32.gmra.mxu0 %v1516
        %v1597 = vpop.f32.mrf.mxu0
        %v1598 = vadd.f32 0.0, %v1597
        %v1599 = vpop.f32.mrf.mxu0
        %1600 = vmatprep.mubr.f32.mxu0 0.0
        %1601 = vmatmul.mubr.f32.gmra.mxu0 %v1518
        %v1602 = vpop.f32.mrf.mxu0
        %v1603 = vadd.f32 0.0, %v1602
        %v1604 = vpop.f32.mrf.mxu0
        %1605 = vdwg.mxu0
        %v1606 = vsel %vm1367, %v1593, -inf
        %1607 = vmax.xlane.f32.xlu0 %v1606
        %v1608 = vpop.xlane.xlu0 %1607
        %v1609 = vsel %vm1367, %v1598, -inf
        %1610 = vmax.xlane.f32.xlu0 %v1609
        %v1611 = vpop.xlane.xlu0 %1610
        %v1612 = vsel %vm1374, %v1603, -inf
        %1613 = vmax.xlane.f32.xlu0 %v1612
        %v1614 = vpop.xlane.xlu0 %1613
        %v1615 = vsub.f32 %v1593, %v1608
        %v1616 = vsub.f32 %v1598, %v1611
        %v1617 = vsub.f32 %v1603, %v1614
        %v1618 = vmul.f32 %v1615, 1.442695
        %v1619 = vpow.pop %v1618
        %v1620 = vmul.f32 %v1616, 1.442695
        %v1621 = vpow.pop %v1620
        %v1622 = vmul.f32 %v1617, 1.442695
        %v1623 = vpow.pop %v1622
        %v1624 = vsel %vm1367, %v1619, 0.0
        %1625 = vadd.xlane.f32.xlu0 %v1624
        %v1626 = vpop.xlane.xlu0 %1625
        %v1627 = vsel %vm1367, %v1621, 0.0
        %1628 = vadd.xlane.f32.xlu0 %v1627
        %v1629 = vpop.xlane.xlu0 %1628
        %v1630 = vsel %vm1374, %v1623, 0.0
        %1631 = vadd.xlane.f32.xlu0 %v1630
        %v1632 = vpop.xlane.xlu0 %1631
        %v1633 = vrcp.pop %v1626
        %v1634 = vrcp.pop %v1629
        %v1635 = vrcp.pop %v1632
        %v1636 = vmul.f32 %v1619, %v1633
        %v1637 = vmul.f32 %v1621, %v1634
        %v1638 = vmul.f32 %v1623, %v1635
        %1639 = vrot.lane.b32.xlu0 %v1246, 56
        %v1640 = vpop.permute.xlu0 %1639
        %1641 = vrot.lane.b32.xlu0 %v1251, 56
        %v1642 = vpop.permute.xlu0 %1641
        %1643 = vrot.lane.b32.xlu0 %v1256, 56
        %v1644 = vpop.permute.xlu0 %1643
        %v1648 = vsel %vm1367, %v1636, 0
        %v1651 = vsel %vm1367, %v1637, 0
        %v1654 = vsel %vm1367, %v1638, 0
        %v1656 = vsel %vm1419, %v1644, 0
        %1658 = vmatprep.subr.mxu0 0.0
        %1659 = vmatpush1.msra.mxu0 0.0
        %1660 = vmatprep.subr.mxu0 0.0
        %1661 = vmatpush1.msra.mxu0 0.0
        %1662 = vmatprep.subr.mxu0 0.0
        %1663 = vmatpush1.msra.mxu0 0.0
        %1664 = vmatprep.subr.mxu0 0.0
        %1665 = vmatpush1.msra.mxu0 0.0
        %1666 = vmatprep.subr.mxu0 0.0
        %1667 = vmatpush1.msra.mxu0 0.0
        %1668 = vmatprep.subr.mxu0 0.0
        %1669 = vmatpush1.msra.mxu0 0.0
        %1670 = vmatprep.subr.mxu0 0.0
        %1671 = vmatpush1.msra.mxu0 0.0
        %1672 = vmatprep.subr.mxu0 0.0
        %1673 = vmatpush1.msra.mxu0 0.0
        %1674 = vmatprep.subr.mxu0 0.0
        %1675 = vmatpush1.msra.mxu0 0.0
        %1676 = vmatprep.subr.mxu0 0.0
        %1677 = vmatpush1.msra.mxu0 0.0
        %1678 = vmatprep.subr.mxu0 0.0
        %1679 = vmatpush1.msra.mxu0 0.0
        %1680 = vmatprep.subr.mxu0 0.0
        %1681 = vmatpush1.msra.mxu0 0.0
        %1682 = vmatprep.subr.mxu0 0.0
        %1683 = vmatpush1.msra.mxu0 0.0
        %1684 = vmatprep.subr.mxu0 0.0
        %1685 = vmatpush1.msra.mxu0 %v1656
        %1686 = vmatprep.subr.mxu0 0.0
        %1687 = vmatpush1.msra.mxu0 %v1642
        %1688 = vmatprep.subr.mxu0 0.0
        %1689 = vmatpush1.msra.mxu0 %v1640
        %1690 = vmatprep.subr.mxu0 0.0
        %1691 = vmatpush2.msra.mxu0 0.0
        %1692 = vmatprep.subr.mxu0 0.0
        %1693 = vmatpush2.msra.mxu0 0.0
        %1694 = vmatprep.subr.mxu0 0.0
        %1695 = vmatpush2.msra.mxu0 0.0
        %1696 = vmatprep.subr.mxu0 0.0
        %1697 = vmatpush2.msra.mxu0 0.0
        %1698 = vmatprep.subr.mxu0 0.0
        %1699 = vmatpush2.msra.mxu0 0.0
        %1700 = vmatprep.subr.mxu0 0.0
        %1701 = vmatpush2.msra.mxu0 0.0
        %1702 = vmatprep.subr.mxu0 0.0
        %1703 = vmatpush2.msra.mxu0 0.0
        %1704 = vmatprep.subr.mxu0 0.0
        %1705 = vmatpush2.msra.mxu0 0.0
        %1706 = vmatprep.subr.mxu0 0.0
        %1707 = vmatpush2.msra.mxu0 0.0
        %1708 = vmatprep.subr.mxu0 0.0
        %1709 = vmatpush2.msra.mxu0 0.0
        %1710 = vmatprep.subr.mxu0 0.0
        %1711 = vmatpush2.msra.mxu0 0.0
        %1712 = vmatprep.subr.mxu0 0.0
        %1713 = vmatpush2.msra.mxu0 0.0
        %1714 = vmatprep.subr.mxu0 0.0
        %1715 = vmatpush2.msra.mxu0 0.0
        %1716 = vmatprep.subr.mxu0 0.0
        %1717 = vmatpush2.msra.mxu0 0.0
        %1718 = vmatprep.subr.mxu0 0.0
        %1719 = vmatpush2.msra.mxu0 0.0
        %1720 = vmatprep.subr.mxu0 0.0
        %1721 = vmatpush2.msra.mxu0 0.0
        %1722 = vmatprep.mubr.f32.mxu0 0.0
        %1723 = vmatmul.mubr.f32.gmra.mxu0 %v1648
        %v1724 = vpop.f32.mrf.mxu0
        %v1725 = vadd.f32 0.0, %v1724
        %v1726 = vpop.f32.mrf.mxu0
        %1727 = vmatprep.mubr.f32.mxu0 0.0
        %1728 = vmatmul.mubr.f32.gmra.mxu0 %v1651
        %v1729 = vpop.f32.mrf.mxu0
        %v1730 = vadd.f32 0.0, %v1729
        %v1731 = vpop.f32.mrf.mxu0
        %1732 = vmatprep.mubr.f32.mxu0 0.0
        %1733 = vmatmul.mubr.f32.gmra.mxu0 %v1654
        %v1734 = vpop.f32.mrf.mxu0
        %v1735 = vadd.f32 0.0, %v1734
        %v1736 = vpop.f32.mrf.mxu0
        %1737 = vdwg.mxu0
        %v1739 = vsel %vm1271, %v1725, 0
        %v1742 = vsel %vm1271, %v1730, 0
        %v1745 = vsel %vm1271, %v1735, 0
        %1747 = vmatprep.subr.mxu0 0.0
        %1748 = vmatpush1.msra.mxu0 0.0
        %1749 = vmatprep.subr.mxu0 0.0
        %1750 = vmatpush1.msra.mxu0 0.0
        %1751 = vmatprep.subr.mxu0 0.0
        %1752 = vmatpush1.msra.mxu0 0.0
        %1753 = vmatprep.subr.mxu0 0.0
        %1754 = vmatpush1.msra.mxu0 0.0
        %1755 = vmatprep.subr.mxu0 0.0
        %1756 = vmatpush1.msra.mxu0 0.0
        %1757 = vmatprep.subr.mxu0 0.0
        %1758 = vmatpush1.msra.mxu0 0.0
        %1759 = vmatprep.subr.mxu0 0.0
        %1760 = vmatpush1.msra.mxu0 0.0
        %1761 = vmatprep.subr.mxu0 0.0
        %1762 = vmatpush1.msra.mxu0 0.0
        %1763 = vmatprep.subr.mxu0 0.0
        %1764 = vmatpush1.msra.mxu0 0.0
        %1765 = vmatprep.subr.mxu0 0.0
        %1766 = vmatpush1.msra.mxu0 0.0
        %1767 = vmatprep.subr.mxu0 0.0
        %1768 = vmatpush1.msra.mxu0 0.0
        %1769 = vmatprep.subr.mxu0 0.0
        %1770 = vmatpush1.msra.mxu0 0.0
        %1771 = vmatprep.subr.mxu0 0.0
        %1772 = vmatpush1.msra.mxu0 0.0
        %1773 = vmatprep.subr.mxu0 0.0
        %1774 = vmatpush1.msra.mxu0 0.0
        %1775 = vmatprep.subr.mxu0 0.0
        %1776 = vmatpush1.msra.mxu0 0.0
        %1777 = vmatprep.subr.mxu0 0.0
        %1778 = vmatpush1.msra.mxu0 %v1081
        %1779 = vmatprep.subr.mxu0 0.0
        %1780 = vmatpush2.msra.mxu0 0.0
        %1781 = vmatprep.subr.mxu0 0.0
        %1782 = vmatpush2.msra.mxu0 0.0
        %1783 = vmatprep.subr.mxu0 0.0
        %1784 = vmatpush2.msra.mxu0 0.0
        %1785 = vmatprep.subr.mxu0 0.0
        %1786 = vmatpush2.msra.mxu0 0.0
        %1787 = vmatprep.subr.mxu0 0.0
        %1788 = vmatpush2.msra.mxu0 0.0
        %1789 = vmatprep.subr.mxu0 0.0
        %1790 = vmatpush2.msra.mxu0 0.0
        %1791 = vmatprep.subr.mxu0 0.0
        %1792 = vmatpush2.msra.mxu0 0.0
        %1793 = vmatprep.subr.mxu0 0.0
        %1794 = vmatpush2.msra.mxu0 0.0
        %1795 = vmatprep.subr.mxu0 0.0
        %1796 = vmatpush2.msra.mxu0 0.0
        %1797 = vmatprep.subr.mxu0 0.0
        %1798 = vmatpush2.msra.mxu0 0.0
        %1799 = vmatprep.subr.mxu0 0.0
        %1800 = vmatpush2.msra.mxu0 0.0
        %1801 = vmatprep.subr.mxu0 0.0
        %1802 = vmatpush2.msra.mxu0 0.0
        %1803 = vmatprep.subr.mxu0 0.0
        %1804 = vmatpush2.msra.mxu0 0.0
        %1805 = vmatprep.subr.mxu0 0.0
        %1806 = vmatpush2.msra.mxu0 0.0
        %1807 = vmatprep.subr.mxu0 0.0
        %1808 = vmatpush2.msra.mxu0 0.0
        %1809 = vmatprep.subr.mxu0 0.0
        %1810 = vmatpush2.msra.mxu0 0.0
        %1811 = vmatprep.mubr.f32.mxu0 0.0
        %1812 = vmatmul.mubr.f32.gmra.mxu0 %v1739
        %v1813 = vpop.f32.mrf.mxu0
        %v1814 = vadd.f32 0.0, %v1813
        %v1815 = vpop.f32.mrf.mxu0
        %1816 = vmatprep.mubr.f32.mxu0 0.0
        %1817 = vmatmul.mubr.f32.gmra.mxu0 %v1742
        %v1818 = vpop.f32.mrf.mxu0
        %v1819 = vadd.f32 0.0, %v1818
        %v1820 = vpop.f32.mrf.mxu0
        %1821 = vmatprep.mubr.f32.mxu0 0.0
        %1822 = vmatmul.mubr.f32.gmra.mxu0 %v1745
        %v1823 = vpop.f32.mrf.mxu0
        %v1824 = vadd.f32 0.0, %v1823
        %v1825 = vpop.f32.mrf.mxu0
        %1826 = vdwg.mxu0
        %v1828 = vsel %vm1271, %v1489, 0
        %v1831 = vsel %vm1271, %v1494, 0
        %v1834 = vsel %vm1271, %v1499, 0
        %1836 = vmatprep.subr.mxu0 0.0
        %1837 = vmatpush1.msra.mxu0 0.0
        %1838 = vmatprep.subr.mxu0 0.0
        %1839 = vmatpush1.msra.mxu0 0.0
        %1840 = vmatprep.subr.mxu0 0.0
        %1841 = vmatpush1.msra.mxu0 0.0
        %1842 = vmatprep.subr.mxu0 0.0
        %1843 = vmatpush1.msra.mxu0 0.0
        %1844 = vmatprep.subr.mxu0 0.0
        %1845 = vmatpush1.msra.mxu0 0.0
        %1846 = vmatprep.subr.mxu0 0.0
        %1847 = vmatpush1.msra.mxu0 0.0
        %1848 = vmatprep.subr.mxu0 0.0
        %1849 = vmatpush1.msra.mxu0 0.0
        %1850 = vmatprep.subr.mxu0 0.0
        %1851 = vmatpush1.msra.mxu0 0.0
        %1852 = vmatprep.subr.mxu0 0.0
        %1853 = vmatpush1.msra.mxu0 0.0
        %1854 = vmatprep.subr.mxu0 0.0
        %1855 = vmatpush1.msra.mxu0 0.0
        %1856 = vmatprep.subr.mxu0 0.0
        %1857 = vmatpush1.msra.mxu0 0.0
        %1858 = vmatprep.subr.mxu0 0.0
        %1859 = vmatpush1.msra.mxu0 0.0
        %1860 = vmatprep.subr.mxu0 0.0
        %1861 = vmatpush1.msra.mxu0 0.0
        %1862 = vmatprep.subr.mxu0 0.0
        %1863 = vmatpush1.msra.mxu0 0.0
        %1864 = vmatprep.subr.mxu0 0.0
        %1865 = vmatpush1.msra.mxu0 0.0
        %1866 = vmatprep.subr.mxu0 0.0
        %1867 = vmatpush1.msra.mxu0 %v1080
        %1868 = vmatprep.subr.mxu0 0.0
        %1869 = vmatpush2.msra.mxu0 0.0
        %1870 = vmatprep.subr.mxu0 0.0
        %1871 = vmatpush2.msra.mxu0 0.0
        %1872 = vmatprep.subr.mxu0 0.0
        %1873 = vmatpush2.msra.mxu0 0.0
        %1874 = vmatprep.subr.mxu0 0.0
        %1875 = vmatpush2.msra.mxu0 0.0
        %1876 = vmatprep.subr.mxu0 0.0
        %1877 = vmatpush2.msra.mxu0 0.0
        %1878 = vmatprep.subr.mxu0 0.0
        %1879 = vmatpush2.msra.mxu0 0.0
        %1880 = vmatprep.subr.mxu0 0.0
        %1881 = vmatpush2.msra.mxu0 0.0
        %1882 = vmatprep.subr.mxu0 0.0
        %1883 = vmatpush2.msra.mxu0 0.0
        %1884 = vmatprep.subr.mxu0 0.0
        %1885 = vmatpush2.msra.mxu0 0.0
        %1886 = vmatprep.subr.mxu0 0.0
        %1887 = vmatpush2.msra.mxu0 0.0
        %1888 = vmatprep.subr.mxu0 0.0
        %1889 = vmatpush2.msra.mxu0 0.0
        %1890 = vmatprep.subr.mxu0 0.0
        %1891 = vmatpush2.msra.mxu0 0.0
        %1892 = vmatprep.subr.mxu0 0.0
        %1893 = vmatpush2.msra.mxu0 0.0
        %1894 = vmatprep.subr.mxu0 0.0
        %1895 = vmatpush2.msra.mxu0 0.0
        %1896 = vmatprep.subr.mxu0 0.0
        %1897 = vmatpush2.msra.mxu0 0.0
        %1898 = vmatprep.subr.mxu0 0.0
        %1899 = vmatpush2.msra.mxu0 0.0
        %1900 = vmatprep.mubr.f32.mxu0 0.0
        %1901 = vmatmul.mubr.f32.gmra.mxu0 %v1828
        %v1902 = vpop.f32.mrf.mxu0
        %v1903 = vadd.f32 %v1814, %v1902
        %v1904 = vpop.f32.mrf.mxu0
        %1905 = vmatprep.mubr.f32.mxu0 0.0
        %1906 = vmatmul.mubr.f32.gmra.mxu0 %v1831
        %v1907 = vpop.f32.mrf.mxu0
        %v1908 = vadd.f32 %v1819, %v1907
        %v1909 = vpop.f32.mrf.mxu0
        %1910 = vmatprep.mubr.f32.mxu0 0.0
        %1911 = vmatmul.mubr.f32.gmra.mxu0 %v1834
        %v1912 = vpop.f32.mrf.mxu0
        %v1913 = vadd.f32 %v1824, %v1912
        %v1914 = vpop.f32.mrf.mxu0
        %1915 = vdwg.mxu0
        %1916 = vrot.lane.b32.xlu0 %v1259, 112
        %v1917 = vpop.permute.xlu0 %1916
        %1918 = vrot.lane.b32.xlu0 %v1260, 112
        %v1919 = vpop.permute.xlu0 %1918
        %1920 = vrot.lane.b32.xlu0 %v1261, 112
        %v1921 = vpop.permute.xlu0 %1920
        %1922 = vrot.lane.b32.xlu0 %v1246, 80
        %v1923 = vpop.permute.xlu0 %1922
        %1924 = vrot.lane.b32.xlu0 %v1251, 80
        %v1925 = vpop.permute.xlu0 %1924
        %1926 = vrot.lane.b32.xlu0 %v1256, 80
        %v1927 = vpop.permute.xlu0 %1926
        %v1928 = vsel %vm1271, %v1917, 0
        %v1930 = vsel %vm1271, %v1919, 0
        %v1932 = vsel %vm1271, %v1921, 0
        %v1934 = vsel %vm1271, %v1923, 0
        %v1936 = vsel %vm1271, %v1925, 0
        %v1938 = vsel %vm1271, %v1927, 0
        %1940 = vmatprep.subr.mxu0 0.0
        %1941 = vmatpush1.xpose.msra.mxu0 0.0
        %1942 = vmatprep.subr.mxu0 0.0
        %1943 = vmatpush1.xpose.msra.mxu0 0.0
        %1944 = vmatprep.subr.mxu0 0.0
        %1945 = vmatpush1.xpose.msra.mxu0 0.0
        %1946 = vmatprep.subr.mxu0 0.0
        %1947 = vmatpush1.xpose.msra.mxu0 0.0
        %1948 = vmatprep.subr.mxu0 0.0
        %1949 = vmatpush1.xpose.msra.mxu0 0.0
        %1950 = vmatprep.subr.mxu0 0.0
        %1951 = vmatpush1.xpose.msra.mxu0 0.0
        %1952 = vmatprep.subr.mxu0 0.0
        %1953 = vmatpush1.xpose.msra.mxu0 0.0
        %1954 = vmatprep.subr.mxu0 0.0
        %1955 = vmatpush1.xpose.msra.mxu0 0.0
        %1956 = vmatprep.subr.mxu0 0.0
        %1957 = vmatpush1.xpose.msra.mxu0 0.0
        %1958 = vmatprep.subr.mxu0 0.0
        %1959 = vmatpush1.xpose.msra.mxu0 0.0
        %1960 = vmatprep.subr.mxu0 0.0
        %1961 = vmatpush1.xpose.msra.mxu0 0.0
        %1962 = vmatprep.subr.mxu0 0.0
        %1963 = vmatpush1.xpose.msra.mxu0 0.0
        %1964 = vmatprep.subr.mxu0 0.0
        %1965 = vmatpush1.xpose.msra.mxu0 0.0
        %1966 = vmatprep.subr.mxu0 0.0
        %1967 = vmatpush1.xpose.msra.mxu0 %v1938
        %1968 = vmatprep.subr.mxu0 0.0
        %1969 = vmatpush1.xpose.msra.mxu0 %v1936
        %1970 = vmatprep.subr.mxu0 0.0
        %1971 = vmatpush1.xpose.msra.mxu0 %v1934
        %1972 = vmatprep.subr.mxu0 0.0
        %1973 = vmatpush2.xpose.msra.mxu0 0.0
        %1974 = vmatprep.subr.mxu0 0.0
        %1975 = vmatpush2.xpose.msra.mxu0 0.0
        %1976 = vmatprep.subr.mxu0 0.0
        %1977 = vmatpush2.xpose.msra.mxu0 0.0
        %1978 = vmatprep.subr.mxu0 0.0
        %1979 = vmatpush2.xpose.msra.mxu0 0.0
        %1980 = vmatprep.subr.mxu0 0.0
        %1981 = vmatpush2.xpose.msra.mxu0 0.0
        %1982 = vmatprep.subr.mxu0 0.0
        %1983 = vmatpush2.xpose.msra.mxu0 0.0
        %1984 = vmatprep.subr.mxu0 0.0
        %1985 = vmatpush2.xpose.msra.mxu0 0.0
        %1986 = vmatprep.subr.mxu0 0.0
        %1987 = vmatpush2.xpose.msra.mxu0 0.0
        %1988 = vmatprep.subr.mxu0 0.0
        %1989 = vmatpush2.xpose.msra.mxu0 0.0
        %1990 = vmatprep.subr.mxu0 0.0
        %1991 = vmatpush2.xpose.msra.mxu0 0.0
        %1992 = vmatprep.subr.mxu0 0.0
        %1993 = vmatpush2.xpose.msra.mxu0 0.0
        %1994 = vmatprep.subr.mxu0 0.0
        %1995 = vmatpush2.xpose.msra.mxu0 0.0
        %1996 = vmatprep.subr.mxu0 0.0
        %1997 = vmatpush2.xpose.msra.mxu0 0.0
        %1998 = vmatprep.subr.mxu0 0.0
        %1999 = vmatpush2.xpose.msra.mxu0 0.0
        %2000 = vmatprep.subr.mxu0 0.0
        %2001 = vmatpush2.xpose.msra.mxu0 0.0
        %2002 = vmatprep.subr.mxu0 0.0
        %2003 = vmatpush2.xpose.msra.mxu0 0.0
        %2004 = vmatprep.mubr.f32.mxu0 0.0
        %2005 = vmatmul.mubr.f32.gmra.mxu0 %v1928
        %v2006 = vpop.f32.mrf.mxu0
        %v2007 = vadd.f32 0.0, %v2006
        %v2008 = vpop.f32.mrf.mxu0
        %2009 = vmatprep.mubr.f32.mxu0 0.0
        %2010 = vmatmul.mubr.f32.gmra.mxu0 %v1930
        %v2011 = vpop.f32.mrf.mxu0
        %v2012 = vadd.f32 0.0, %v2011
        %v2013 = vpop.f32.mrf.mxu0
        %2014 = vmatprep.mubr.f32.mxu0 0.0
        %2015 = vmatmul.mubr.f32.gmra.mxu0 %v1932
        %v2016 = vpop.f32.mrf.mxu0
        %v2017 = vadd.f32 0.0, %v2016
        %v2018 = vpop.f32.mrf.mxu0
        %2019 = vdwg.mxu0
        %v2020 = vsel %vm1367, %v2007, -inf
        %2021 = vmax.xlane.f32.xlu0 %v2020
        %v2022 = vpop.xlane.xlu0 %2021
        %v2023 = vsel %vm1367, %v2012, -inf
        %2024 = vmax.xlane.f32.xlu0 %v2023
        %v2025 = vpop.xlane.xlu0 %2024
        %v2026 = vsel %vm1374, %v2017, -inf
        %2027 = vmax.xlane.f32.xlu0 %v2026
        %v2028 = vpop.xlane.xlu0 %2027
        %v2029 = vsub.f32 %v2007, %v2022
        %v2030 = vsub.f32 %v2012, %v2025
        %v2031 = vsub.f32 %v2017, %v2028
        %v2032 = vmul.f32 %v2029, 1.442695
        %v2033 = vpow.pop %v2032
        %v2034 = vmul.f32 %v2030, 1.442695
        %v2035 = vpow.pop %v2034
        %v2036 = vmul.f32 %v2031, 1.442695
        %v2037 = vpow.pop %v2036
        %v2038 = vsel %vm1367, %v2033, 0.0
        %2039 = vadd.xlane.f32.xlu0 %v2038
        %v2040 = vpop.xlane.xlu0 %2039
        %v2041 = vsel %vm1367, %v2035, 0.0
        %2042 = vadd.xlane.f32.xlu0 %v2041
        %v2043 = vpop.xlane.xlu0 %2042
        %v2044 = vsel %vm1374, %v2037, 0.0
        %2045 = vadd.xlane.f32.xlu0 %v2044
        %v2046 = vpop.xlane.xlu0 %2045
        %v2047 = vrcp.pop %v2040
        %v2048 = vrcp.pop %v2043
        %v2049 = vrcp.pop %v2046
        %v2050 = vmul.f32 %v2033, %v2047
        %v2051 = vmul.f32 %v2035, %v2048
        %v2052 = vmul.f32 %v2037, %v2049
        %2053 = vrot.lane.b32.xlu0 %v1246, 48
        %v2054 = vpop.permute.xlu0 %2053
        %2055 = vrot.lane.b32.xlu0 %v1251, 48
        %v2056 = vpop.permute.xlu0 %2055
        %2057 = vrot.lane.b32.xlu0 %v1256, 48
        %v2058 = vpop.permute.xlu0 %2057
        %v2062 = vsel %vm1367, %v2050, 0
        %v2065 = vsel %vm1367, %v2051, 0
        %v2068 = vsel %vm1367, %v2052, 0
        %v2070 = vsel %vm1419, %v2058, 0
        %2072 = vmatprep.subr.mxu0 0.0
        %2073 = vmatpush1.msra.mxu0 0.0
        %2074 = vmatprep.subr.mxu0 0.0
        %2075 = vmatpush1.msra.mxu0 0.0
        %2076 = vmatprep.subr.mxu0 0.0
        %2077 = vmatpush1.msra.mxu0 0.0
        %2078 = vmatprep.subr.mxu0 0.0
        %2079 = vmatpush1.msra.mxu0 0.0
        %2080 = vmatprep.subr.mxu0 0.0
        %2081 = vmatpush1.msra.mxu0 0.0
        %2082 = vmatprep.subr.mxu0 0.0
        %2083 = vmatpush1.msra.mxu0 0.0
        %2084 = vmatprep.subr.mxu0 0.0
        %2085 = vmatpush1.msra.mxu0 0.0
        %2086 = vmatprep.subr.mxu0 0.0
        %2087 = vmatpush1.msra.mxu0 0.0
        %2088 = vmatprep.subr.mxu0 0.0
        %2089 = vmatpush1.msra.mxu0 0.0
        %2090 = vmatprep.subr.mxu0 0.0
        %2091 = vmatpush1.msra.mxu0 0.0
        %2092 = vmatprep.subr.mxu0 0.0
        %2093 = vmatpush1.msra.mxu0 0.0
        %2094 = vmatprep.subr.mxu0 0.0
        %2095 = vmatpush1.msra.mxu0 0.0
        %2096 = vmatprep.subr.mxu0 0.0
        %2097 = vmatpush1.msra.mxu0 0.0
        %2098 = vmatprep.subr.mxu0 0.0
        %2099 = vmatpush1.msra.mxu0 %v2070
        %2100 = vmatprep.subr.mxu0 0.0
        %2101 = vmatpush1.msra.mxu0 %v2056
        %2102 = vmatprep.subr.mxu0 0.0
        %2103 = vmatpush1.msra.mxu0 %v2054
        %2104 = vmatprep.subr.mxu0 0.0
        %2105 = vmatpush2.msra.mxu0 0.0
        %2106 = vmatprep.subr.mxu0 0.0
        %2107 = vmatpush2.msra.mxu0 0.0
        %2108 = vmatprep.subr.mxu0 0.0
        %2109 = vmatpush2.msra.mxu0 0.0
        %2110 = vmatprep.subr.mxu0 0.0
        %2111 = vmatpush2.msra.mxu0 0.0
        %2112 = vmatprep.subr.mxu0 0.0
        %2113 = vmatpush2.msra.mxu0 0.0
        %2114 = vmatprep.subr.mxu0 0.0
        %2115 = vmatpush2.msra.mxu0 0.0
        %2116 = vmatprep.subr.mxu0 0.0
        %2117 = vmatpush2.msra.mxu0 0.0
        %2118 = vmatprep.subr.mxu0 0.0
        %2119 = vmatpush2.msra.mxu0 0.0
        %2120 = vmatprep.subr.mxu0 0.0
        %2121 = vmatpush2.msra.mxu0 0.0
        %2122 = vmatprep.subr.mxu0 0.0
        %2123 = vmatpush2.msra.mxu0 0.0
        %2124 = vmatprep.subr.mxu0 0.0
        %2125 = vmatpush2.msra.mxu0 0.0
        %2126 = vmatprep.subr.mxu0 0.0
        %2127 = vmatpush2.msra.mxu0 0.0
        %2128 = vmatprep.subr.mxu0 0.0
        %2129 = vmatpush2.msra.mxu0 0.0
        %2130 = vmatprep.subr.mxu0 0.0
        %2131 = vmatpush2.msra.mxu0 0.0
        %2132 = vmatprep.subr.mxu0 0.0
        %2133 = vmatpush2.msra.mxu0 0.0
        %2134 = vmatprep.subr.mxu0 0.0
        %2135 = vmatpush2.msra.mxu0 0.0
        %2136 = vmatprep.mubr.f32.mxu0 0.0
        %2137 = vmatmul.mubr.f32.gmra.mxu0 %v2062
        %v2138 = vpop.f32.mrf.mxu0
        %v2139 = vadd.f32 0.0, %v2138
        %v2140 = vpop.f32.mrf.mxu0
        %2141 = vmatprep.mubr.f32.mxu0 0.0
        %2142 = vmatmul.mubr.f32.gmra.mxu0 %v2065
        %v2143 = vpop.f32.mrf.mxu0
        %v2144 = vadd.f32 0.0, %v2143
        %v2145 = vpop.f32.mrf.mxu0
        %2146 = vmatprep.mubr.f32.mxu0 0.0
        %2147 = vmatmul.mubr.f32.gmra.mxu0 %v2068
        %v2148 = vpop.f32.mrf.mxu0
        %v2149 = vadd.f32 0.0, %v2148
        %v2150 = vpop.f32.mrf.mxu0
        %2151 = vdwg.mxu0
        %v2153 = vsel %vm1271, %v2139, 0
        %v2156 = vsel %vm1271, %v2144, 0
        %v2159 = vsel %vm1271, %v2149, 0
        %2161 = vmatprep.subr.mxu0 0.0
        %2162 = vmatpush1.msra.mxu0 0.0
        %2163 = vmatprep.subr.mxu0 0.0
        %2164 = vmatpush1.msra.mxu0 0.0
        %2165 = vmatprep.subr.mxu0 0.0
        %2166 = vmatpush1.msra.mxu0 0.0
        %2167 = vmatprep.subr.mxu0 0.0
        %2168 = vmatpush1.msra.mxu0 0.0
        %2169 = vmatprep.subr.mxu0 0.0
        %2170 = vmatpush1.msra.mxu0 0.0
        %2171 = vmatprep.subr.mxu0 0.0
        %2172 = vmatpush1.msra.mxu0 0.0
        %2173 = vmatprep.subr.mxu0 0.0
        %2174 = vmatpush1.msra.mxu0 0.0
        %2175 = vmatprep.subr.mxu0 0.0
        %2176 = vmatpush1.msra.mxu0 0.0
        %2177 = vmatprep.subr.mxu0 0.0
        %2178 = vmatpush1.msra.mxu0 0.0
        %2179 = vmatprep.subr.mxu0 0.0
        %2180 = vmatpush1.msra.mxu0 0.0
        %2181 = vmatprep.subr.mxu0 0.0
        %2182 = vmatpush1.msra.mxu0 0.0
        %2183 = vmatprep.subr.mxu0 0.0
        %2184 = vmatpush1.msra.mxu0 0.0
        %2185 = vmatprep.subr.mxu0 0.0
        %2186 = vmatpush1.msra.mxu0 0.0
        %2187 = vmatprep.subr.mxu0 0.0
        %2188 = vmatpush1.msra.mxu0 0.0
        %2189 = vmatprep.subr.mxu0 0.0
        %2190 = vmatpush1.msra.mxu0 0.0
        %2191 = vmatprep.subr.mxu0 0.0
        %2192 = vmatpush1.msra.mxu0 %v1082
        %2193 = vmatprep.subr.mxu0 0.0
        %2194 = vmatpush2.msra.mxu0 0.0
        %2195 = vmatprep.subr.mxu0 0.0
        %2196 = vmatpush2.msra.mxu0 0.0
        %2197 = vmatprep.subr.mxu0 0.0
        %2198 = vmatpush2.msra.mxu0 0.0
        %2199 = vmatprep.subr.mxu0 0.0
        %2200 = vmatpush2.msra.mxu0 0.0
        %2201 = vmatprep.subr.mxu0 0.0
        %2202 = vmatpush2.msra.mxu0 0.0
        %2203 = vmatprep.subr.mxu0 0.0
        %2204 = vmatpush2.msra.mxu0 0.0
        %2205 = vmatprep.subr.mxu0 0.0
        %2206 = vmatpush2.msra.mxu0 0.0
        %2207 = vmatprep.subr.mxu0 0.0
        %2208 = vmatpush2.msra.mxu0 0.0
        %2209 = vmatprep.subr.mxu0 0.0
        %2210 = vmatpush2.msra.mxu0 0.0
        %2211 = vmatprep.subr.mxu0 0.0
        %2212 = vmatpush2.msra.mxu0 0.0
        %2213 = vmatprep.subr.mxu0 0.0
        %2214 = vmatpush2.msra.mxu0 0.0
        %2215 = vmatprep.subr.mxu0 0.0
        %2216 = vmatpush2.msra.mxu0 0.0
        %2217 = vmatprep.subr.mxu0 0.0
        %2218 = vmatpush2.msra.mxu0 0.0
        %2219 = vmatprep.subr.mxu0 0.0
        %2220 = vmatpush2.msra.mxu0 0.0
        %2221 = vmatprep.subr.mxu0 0.0
        %2222 = vmatpush2.msra.mxu0 0.0
        %2223 = vmatprep.subr.mxu0 0.0
        %2224 = vmatpush2.msra.mxu0 0.0
        %2225 = vmatprep.mubr.f32.mxu0 0.0
        %2226 = vmatmul.mubr.f32.gmra.mxu0 %v2153
        %v2227 = vpop.f32.mrf.mxu0
        %v2228 = vadd.f32 0.0, %v2227
        %v2229 = vpop.f32.mrf.mxu0
        %2230 = vmatprep.mubr.f32.mxu0 0.0
        %2231 = vmatmul.mubr.f32.gmra.mxu0 %v2156
        %v2232 = vpop.f32.mrf.mxu0
        %v2233 = vadd.f32 0.0, %v2232
        %v2234 = vpop.f32.mrf.mxu0
        %2235 = vmatprep.mubr.f32.mxu0 0.0
        %2236 = vmatmul.mubr.f32.gmra.mxu0 %v2159
        %v2237 = vpop.f32.mrf.mxu0
        %v2238 = vadd.f32 0.0, %v2237
        %v2239 = vpop.f32.mrf.mxu0
        %2240 = vdwg.mxu0
        %v2241 = vadd.f32 %v1903, %v2228
        %v2242 = vadd.f32 %v1908, %v2233
        %v2243 = vadd.f32 %v1913, %v2238
        %2244 = vrot.lane.b32.xlu0 %v1259, 104
        %v2245 = vpop.permute.xlu0 %2244
        %2246 = vrot.lane.b32.xlu0 %v1260, 104
        %v2247 = vpop.permute.xlu0 %2246
        %2248 = vrot.lane.b32.xlu0 %v1261, 104
        %v2249 = vpop.permute.xlu0 %2248
        %2250 = vrot.lane.b32.xlu0 %v1246, 72
        %v2251 = vpop.permute.xlu0 %2250
        %2252 = vrot.lane.b32.xlu0 %v1251, 72
        %v2253 = vpop.permute.xlu0 %2252
        %2254 = vrot.lane.b32.xlu0 %v1256, 72
        %v2255 = vpop.permute.xlu0 %2254
        %v2256 = vsel %vm1271, %v2245, 0
        %v2258 = vsel %vm1271, %v2247, 0
        %v2260 = vsel %vm1271, %v2249, 0
        %v2262 = vsel %vm1271, %v2251, 0
        %v2264 = vsel %vm1271, %v2253, 0
        %v2266 = vsel %vm1271, %v2255, 0
        %2268 = vmatprep.subr.mxu0 0.0
        %2269 = vmatpush1.xpose.msra.mxu0 0.0
        %2270 = vmatprep.subr.mxu0 0.0
        %2271 = vmatpush1.xpose.msra.mxu0 0.0
        %2272 = vmatprep.subr.mxu0 0.0
        %2273 = vmatpush1.xpose.msra.mxu0 0.0
        %2274 = vmatprep.subr.mxu0 0.0
        %2275 = vmatpush1.xpose.msra.mxu0 0.0
        %2276 = vmatprep.subr.mxu0 0.0
        %2277 = vmatpush1.xpose.msra.mxu0 0.0
        %2278 = vmatprep.subr.mxu0 0.0
        %2279 = vmatpush1.xpose.msra.mxu0 0.0
        %2280 = vmatprep.subr.mxu0 0.0
        %2281 = vmatpush1.xpose.msra.mxu0 0.0
        %2282 = vmatprep.subr.mxu0 0.0
        %2283 = vmatpush1.xpose.msra.mxu0 0.0
        %2284 = vmatprep.subr.mxu0 0.0
        %2285 = vmatpush1.xpose.msra.mxu0 0.0
        %2286 = vmatprep.subr.mxu0 0.0
        %2287 = vmatpush1.xpose.msra.mxu0 0.0
        %2288 = vmatprep.subr.mxu0 0.0
        %2289 = vmatpush1.xpose.msra.mxu0 0.0
        %2290 = vmatprep.subr.mxu0 0.0
        %2291 = vmatpush1.xpose.msra.mxu0 0.0
        %2292 = vmatprep.subr.mxu0 0.0
        %2293 = vmatpush1.xpose.msra.mxu0 0.0
        %2294 = vmatprep.subr.mxu0 0.0
        %2295 = vmatpush1.xpose.msra.mxu0 %v2266
        %2296 = vmatprep.subr.mxu0 0.0
        %2297 = vmatpush1.xpose.msra.mxu0 %v2264
        %2298 = vmatprep.subr.mxu0 0.0
        %2299 = vmatpush1.xpose.msra.mxu0 %v2262
        %2300 = vmatprep.subr.mxu0 0.0
        %2301 = vmatpush2.xpose.msra.mxu0 0.0
        %2302 = vmatprep.subr.mxu0 0.0
        %2303 = vmatpush2.xpose.msra.mxu0 0.0
        %2304 = vmatprep.subr.mxu0 0.0
        %2305 = vmatpush2.xpose.msra.mxu0 0.0
        %2306 = vmatprep.subr.mxu0 0.0
        %2307 = vmatpush2.xpose.msra.mxu0 0.0
        %2308 = vmatprep.subr.mxu0 0.0
        %2309 = vmatpush2.xpose.msra.mxu0 0.0
        %2310 = vmatprep.subr.mxu0 0.0
        %2311 = vmatpush2.xpose.msra.mxu0 0.0
        %2312 = vmatprep.subr.mxu0 0.0
        %2313 = vmatpush2.xpose.msra.mxu0 0.0
        %2314 = vmatprep.subr.mxu0 0.0
        %2315 = vmatpush2.xpose.msra.mxu0 0.0
        %2316 = vmatprep.subr.mxu0 0.0
        %2317 = vmatpush2.xpose.msra.mxu0 0.0
        %2318 = vmatprep.subr.mxu0 0.0
        %2319 = vmatpush2.xpose.msra.mxu0 0.0
        %2320 = vmatprep.subr.mxu0 0.0
        %2321 = vmatpush2.xpose.msra.mxu0 0.0
        %2322 = vmatprep.subr.mxu0 0.0
        %2323 = vmatpush2.xpose.msra.mxu0 0.0
        %2324 = vmatprep.subr.mxu0 0.0
        %2325 = vmatpush2.xpose.msra.mxu0 0.0
        %2326 = vmatprep.subr.mxu0 0.0
        %2327 = vmatpush2.xpose.msra.mxu0 0.0
        %2328 = vmatprep.subr.mxu0 0.0
        %2329 = vmatpush2.xpose.msra.mxu0 0.0
        %2330 = vmatprep.subr.mxu0 0.0
        %2331 = vmatpush2.xpose.msra.mxu0 0.0
        %2332 = vmatprep.mubr.f32.mxu0 0.0
        %2333 = vmatmul.mubr.f32.gmra.mxu0 %v2256
        %v2334 = vpop.f32.mrf.mxu0
        %v2335 = vadd.f32 0.0, %v2334
        %v2336 = vpop.f32.mrf.mxu0
        %2337 = vmatprep.mubr.f32.mxu0 0.0
        %2338 = vmatmul.mubr.f32.gmra.mxu0 %v2258
        %v2339 = vpop.f32.mrf.mxu0
        %v2340 = vadd.f32 0.0, %v2339
        %v2341 = vpop.f32.mrf.mxu0
        %2342 = vmatprep.mubr.f32.mxu0 0.0
        %2343 = vmatmul.mubr.f32.gmra.mxu0 %v2260
        %v2344 = vpop.f32.mrf.mxu0
        %v2345 = vadd.f32 0.0, %v2344
        %v2346 = vpop.f32.mrf.mxu0
        %2347 = vdwg.mxu0
        %v2348 = vsel %vm1367, %v2335, -inf
        %2349 = vmax.xlane.f32.xlu0 %v2348
        %v2350 = vpop.xlane.xlu0 %2349
        %v2351 = vsel %vm1367, %v2340, -inf
        %2352 = vmax.xlane.f32.xlu0 %v2351
        %v2353 = vpop.xlane.xlu0 %2352
        %v2354 = vsel %vm1374, %v2345, -inf
        %2355 = vmax.xlane.f32.xlu0 %v2354
        %v2356 = vpop.xlane.xlu0 %2355
        %v2357 = vsub.f32 %v2335, %v2350
        %v2358 = vsub.f32 %v2340, %v2353
        %v2359 = vsub.f32 %v2345, %v2356
        %v2360 = vmul.f32 %v2357, 1.442695
        %v2361 = vpow.pop %v2360
        %v2362 = vmul.f32 %v2358, 1.442695
        %v2363 = vpow.pop %v2362
        %v2364 = vmul.f32 %v2359, 1.442695
        %v2365 = vpow.pop %v2364
        %v2366 = vsel %vm1367, %v2361, 0.0
        %2367 = vadd.xlane.f32.xlu0 %v2366
        %v2368 = vpop.xlane.xlu0 %2367
        %v2369 = vsel %vm1367, %v2363, 0.0
        %2370 = vadd.xlane.f32.xlu0 %v2369
        %v2371 = vpop.xlane.xlu0 %2370
        %v2372 = vsel %vm1374, %v2365, 0.0
        %2373 = vadd.xlane.f32.xlu0 %v2372
        %v2374 = vpop.xlane.xlu0 %2373
        %v2375 = vrcp.pop %v2368
        %v2376 = vrcp.pop %v2371
        %v2377 = vrcp.pop %v2374
        %v2378 = vmul.f32 %v2361, %v2375
        %v2379 = vmul.f32 %v2363, %v2376
        %v2380 = vmul.f32 %v2365, %v2377
        %2381 = vrot.lane.b32.xlu0 %v1246, 40
        %v2382 = vpop.permute.xlu0 %2381
        %2383 = vrot.lane.b32.xlu0 %v1251, 40
        %v2384 = vpop.permute.xlu0 %2383
        %2385 = vrot.lane.b32.xlu0 %v1256, 40
        %v2386 = vpop.permute.xlu0 %2385
        %v2390 = vsel %vm1367, %v2378, 0
        %v2393 = vsel %vm1367, %v2379, 0
        %v2396 = vsel %vm1367, %v2380, 0
        %v2398 = vsel %vm1419, %v2386, 0
        %2400 = vmatprep.subr.mxu0 0.0
        %2401 = vmatpush1.msra.mxu0 0.0
        %2402 = vmatprep.subr.mxu0 0.0
        %2403 = vmatpush1.msra.mxu0 0.0
        %2404 = vmatprep.subr.mxu0 0.0
        %2405 = vmatpush1.msra.mxu0 0.0
        %2406 = vmatprep.subr.mxu0 0.0
        %2407 = vmatpush1.msra.mxu0 0.0
        %2408 = vmatprep.subr.mxu0 0.0
        %2409 = vmatpush1.msra.mxu0 0.0
        %2410 = vmatprep.subr.mxu0 0.0
        %2411 = vmatpush1.msra.mxu0 0.0
        %2412 = vmatprep.subr.mxu0 0.0
        %2413 = vmatpush1.msra.mxu0 0.0
        %2414 = vmatprep.subr.mxu0 0.0
        %2415 = vmatpush1.msra.mxu0 0.0
        %2416 = vmatprep.subr.mxu0 0.0
        %2417 = vmatpush1.msra.mxu0 0.0
        %2418 = vmatprep.subr.mxu0 0.0
        %2419 = vmatpush1.msra.mxu0 0.0
        %2420 = vmatprep.subr.mxu0 0.0
        %2421 = vmatpush1.msra.mxu0 0.0
        %2422 = vmatprep.subr.mxu0 0.0
        %2423 = vmatpush1.msra.mxu0 0.0
        %2424 = vmatprep.subr.mxu0 0.0
        %2425 = vmatpush1.msra.mxu0 0.0
        %2426 = vmatprep.subr.mxu0 0.0
        %2427 = vmatpush1.msra.mxu0 %v2398
        %2428 = vmatprep.subr.mxu0 0.0
        %2429 = vmatpush1.msra.mxu0 %v2384
        %2430 = vmatprep.subr.mxu0 0.0
        %2431 = vmatpush1.msra.mxu0 %v2382
        %2432 = vmatprep.subr.mxu0 0.0
        %2433 = vmatpush2.msra.mxu0 0.0
        %2434 = vmatprep.subr.mxu0 0.0
        %2435 = vmatpush2.msra.mxu0 0.0
        %2436 = vmatprep.subr.mxu0 0.0
        %2437 = vmatpush2.msra.mxu0 0.0
        %2438 = vmatprep.subr.mxu0 0.0
        %2439 = vmatpush2.msra.mxu0 0.0
        %2440 = vmatprep.subr.mxu0 0.0
        %2441 = vmatpush2.msra.mxu0 0.0
        %2442 = vmatprep.subr.mxu0 0.0
        %2443 = vmatpush2.msra.mxu0 0.0
        %2444 = vmatprep.subr.mxu0 0.0
        %2445 = vmatpush2.msra.mxu0 0.0
        %2446 = vmatprep.subr.mxu0 0.0
        %2447 = vmatpush2.msra.mxu0 0.0
        %2448 = vmatprep.subr.mxu0 0.0
        %2449 = vmatpush2.msra.mxu0 0.0
        %2450 = vmatprep.subr.mxu0 0.0
        %2451 = vmatpush2.msra.mxu0 0.0
        %2452 = vmatprep.subr.mxu0 0.0
        %2453 = vmatpush2.msra.mxu0 0.0
        %2454 = vmatprep.subr.mxu0 0.0
        %2455 = vmatpush2.msra.mxu0 0.0
        %2456 = vmatprep.subr.mxu0 0.0
        %2457 = vmatpush2.msra.mxu0 0.0
        %2458 = vmatprep.subr.mxu0 0.0
        %2459 = vmatpush2.msra.mxu0 0.0
        %2460 = vmatprep.subr.mxu0 0.0
        %2461 = vmatpush2.msra.mxu0 0.0
        %2462 = vmatprep.subr.mxu0 0.0
        %2463 = vmatpush2.msra.mxu0 0.0
        %2464 = vmatprep.mubr.f32.mxu0 0.0
        %2465 = vmatmul.mubr.f32.gmra.mxu0 %v2390
        %v2466 = vpop.f32.mrf.mxu0
        %v2467 = vadd.f32 0.0, %v2466
        %v2468 = vpop.f32.mrf.mxu0
        %2469 = vmatprep.mubr.f32.mxu0 0.0
        %2470 = vmatmul.mubr.f32.gmra.mxu0 %v2393
        %v2471 = vpop.f32.mrf.mxu0
        %v2472 = vadd.f32 0.0, %v2471
        %v2473 = vpop.f32.mrf.mxu0
        %2474 = vmatprep.mubr.f32.mxu0 0.0
        %2475 = vmatmul.mubr.f32.gmra.mxu0 %v2396
        %v2476 = vpop.f32.mrf.mxu0
        %v2477 = vadd.f32 0.0, %v2476
        %v2478 = vpop.f32.mrf.mxu0
        %2479 = vdwg.mxu0
        %v2481 = vsel %vm1271, %v2467, 0
        %v2484 = vsel %vm1271, %v2472, 0
        %v2487 = vsel %vm1271, %v2477, 0
        %2489 = vmatprep.subr.mxu0 0.0
        %2490 = vmatpush1.msra.mxu0 0.0
        %2491 = vmatprep.subr.mxu0 0.0
        %2492 = vmatpush1.msra.mxu0 0.0
        %2493 = vmatprep.subr.mxu0 0.0
        %2494 = vmatpush1.msra.mxu0 0.0
        %2495 = vmatprep.subr.mxu0 0.0
        %2496 = vmatpush1.msra.mxu0 0.0
        %2497 = vmatprep.subr.mxu0 0.0
        %2498 = vmatpush1.msra.mxu0 0.0
        %2499 = vmatprep.subr.mxu0 0.0
        %2500 = vmatpush1.msra.mxu0 0.0
        %2501 = vmatprep.subr.mxu0 0.0
        %2502 = vmatpush1.msra.mxu0 0.0
        %2503 = vmatprep.subr.mxu0 0.0
        %2504 = vmatpush1.msra.mxu0 0.0
        %2505 = vmatprep.subr.mxu0 0.0
        %2506 = vmatpush1.msra.mxu0 0.0
        %2507 = vmatprep.subr.mxu0 0.0
        %2508 = vmatpush1.msra.mxu0 0.0
        %2509 = vmatprep.subr.mxu0 0.0
        %2510 = vmatpush1.msra.mxu0 0.0
        %2511 = vmatprep.subr.mxu0 0.0
        %2512 = vmatpush1.msra.mxu0 0.0
        %2513 = vmatprep.subr.mxu0 0.0
        %2514 = vmatpush1.msra.mxu0 0.0
        %2515 = vmatprep.subr.mxu0 0.0
        %2516 = vmatpush1.msra.mxu0 0.0
        %2517 = vmatprep.subr.mxu0 0.0
        %2518 = vmatpush1.msra.mxu0 0.0
        %2519 = vmatprep.subr.mxu0 0.0
        %2520 = vmatpush1.msra.mxu0 %v1083
        %2521 = vmatprep.subr.mxu0 0.0
        %2522 = vmatpush2.msra.mxu0 0.0
        %2523 = vmatprep.subr.mxu0 0.0
        %2524 = vmatpush2.msra.mxu0 0.0
        %2525 = vmatprep.subr.mxu0 0.0
        %2526 = vmatpush2.msra.mxu0 0.0
        %2527 = vmatprep.subr.mxu0 0.0
        %2528 = vmatpush2.msra.mxu0 0.0
        %2529 = vmatprep.subr.mxu0 0.0
        %2530 = vmatpush2.msra.mxu0 0.0
        %2531 = vmatprep.subr.mxu0 0.0
        %2532 = vmatpush2.msra.mxu0 0.0
        %2533 = vmatprep.subr.mxu0 0.0
        %2534 = vmatpush2.msra.mxu0 0.0
        %2535 = vmatprep.subr.mxu0 0.0
        %2536 = vmatpush2.msra.mxu0 0.0
        %2537 = vmatprep.subr.mxu0 0.0
        %2538 = vmatpush2.msra.mxu0 0.0
        %2539 = vmatprep.subr.mxu0 0.0
        %2540 = vmatpush2.msra.mxu0 0.0
        %2541 = vmatprep.subr.mxu0 0.0
        %2542 = vmatpush2.msra.mxu0 0.0
        %2543 = vmatprep.subr.mxu0 0.0
        %2544 = vmatpush2.msra.mxu0 0.0
        %2545 = vmatprep.subr.mxu0 0.0
        %2546 = vmatpush2.msra.mxu0 0.0
        %2547 = vmatprep.subr.mxu0 0.0
        %2548 = vmatpush2.msra.mxu0 0.0
        %2549 = vmatprep.subr.mxu0 0.0
        %2550 = vmatpush2.msra.mxu0 0.0
        %2551 = vmatprep.subr.mxu0 0.0
        %2552 = vmatpush2.msra.mxu0 0.0
        %2553 = vmatprep.mubr.f32.mxu0 0.0
        %2554 = vmatmul.mubr.f32.gmra.mxu0 %v2481
        %v2555 = vpop.f32.mrf.mxu0
        %v2556 = vadd.f32 0.0, %v2555
        %v2557 = vpop.f32.mrf.mxu0
        %2558 = vmatprep.mubr.f32.mxu0 0.0
        %2559 = vmatmul.mubr.f32.gmra.mxu0 %v2484
        %v2560 = vpop.f32.mrf.mxu0
        %v2561 = vadd.f32 0.0, %v2560
        %v2562 = vpop.f32.mrf.mxu0
        %2563 = vmatprep.mubr.f32.mxu0 0.0
        %2564 = vmatmul.mubr.f32.gmra.mxu0 %v2487
        %v2565 = vpop.f32.mrf.mxu0
        %v2566 = vadd.f32 0.0, %v2565
        %v2567 = vpop.f32.mrf.mxu0
        %2568 = vdwg.mxu0
        %v2569 = vadd.f32 %v2241, %v2556
        %v2570 = vadd.f32 %v2242, %v2561
        %v2571 = vadd.f32 %v2243, %v2566
        %v2572 = vadd.f32 %v1101, %v2569
        %v2573 = vadd.f32 %v1102, %v2570
        %v2574 = vadd.f32 %v1103, %v2571
        %v2576 = vlaneseq
        %v2577 = vshrl.u32 %v2576, 7
        %v2578 = vsub.s32 0, %v2577
        %v2579 = vrot.slane %v1084, %v2578
        %v2581 = vadd.f32 %v2572, %v2579
        %v2582 = vadd.f32 %v2573, %v2579
        %v2583 = vadd.f32 %v2574, %v2579
        %v2584 = vsel %vm1104, %v2581, 0.0
        %2585 = vadd.xlane.f32.xlu0 %v2584
        %v2586 = vpop.xlane.xlu0 %2585
        %v2587 = vsel %vm1104, %v2582, 0.0
        %2588 = vadd.xlane.f32.xlu0 %v2587
        %v2589 = vpop.xlane.xlu0 %2588
        %v2590 = vsel %vm1111, %v2583, 0.0
        %2591 = vadd.xlane.f32.xlu0 %v2590
        %v2592 = vpop.xlane.xlu0 %2591
        %v2593 = vmul.f32 %v2586, %v1115
        %v2594 = vmul.f32 %v2589, %v1115
        %v2595 = vmul.f32 %v2592, %v1115
        %v2596 = vsub.f32 %v2581, %v2593
        %v2597 = vsub.f32 %v2582, %v2594
        %v2598 = vsub.f32 %v2583, %v2595
        %v2599 = vmul.f32 %v2596, %v2596
        %v2600 = vmul.f32 %v2597, %v2597
        %v2601 = vmul.f32 %v2598, %v2598
        %v2602 = vsel %vm1104, %v2599, 0.0
        %2603 = vadd.xlane.f32.xlu0 %v2602
        %v2604 = vpop.xlane.xlu0 %2603
        %v2605 = vsel %vm1104, %v2600, 0.0
        %2606 = vadd.xlane.f32.xlu0 %v2605
        %v2607 = vpop.xlane.xlu0 %2606
        %v2608 = vsel %vm1111, %v2601, 0.0
        %2609 = vadd.xlane.f32.xlu0 %v2608
        %v2610 = vpop.xlane.xlu0 %2609
        %v2611 = vmul.f32 %v2604, %v1115
        %v2612 = vmul.f32 %v2607, %v1115
        %v2613 = vmul.f32 %v2610, %v1115
        %v2614 = vadd.f32 %v2611, 1e-05
        %v2615 = vadd.f32 %v2612, 1e-05
        %v2616 = vadd.f32 %v2613, 1e-05
        %v2617 = vrsqrt.pop %v2614
        %v2618 = vrsqrt.pop %v2615
        %v2619 = vrsqrt.pop %v2616
        %v2620 = vmul.f32 %v2596, %v2617
        %v2621 = vmul.f32 %v2597, %v2618
        %v2622 = vmul.f32 %v2598, %v2619
        %v2624 = vlaneseq
        %v2625 = vshrl.u32 %v2624, 7
        %v2626 = vsub.s32 0, %v2625
        %v2627 = vrot.slane %v1085, %v2626
        %v2629 = vmul.f32 %v2620, %v2627
        %v2630 = vmul.f32 %v2621, %v2627
        %v2631 = vmul.f32 %v2622, %v2627
        %v2633 = vlaneseq
        %v2634 = vshrl.u32 %v2633, 7
        %v2635 = vsub.s32 0, %v2634
        %v2636 = vrot.slane %v1086, %v2635
        %v2638 = vadd.f32 %v2629, %v2636
        %v2639 = vadd.f32 %v2630, %v2636
        %v2640 = vadd.f32 %v2631, %v2636
        %v2642 = vlaneseq
        %v2643 = vshrl.u32 %v2642, 7
        %v2644 = vsub.s32 0, %v2643
        %v2645 = vrot.slane %v1091, %v2644
        %v2648 = vsel %vm1104, %v2638, 0
        %v2651 = vsel %vm1104, %v2639, 0
        %v2654 = vsel %vm1104, %v2640, 0
        %2656 = vmatprep.subr.mxu0 0.0
        %2657 = vmatpush1.msra.mxu0 0.0
        %2658 = vmatprep.subr.mxu0 0.0
        %2659 = vmatpush1.msra.mxu0 0.0
        %2660 = vmatprep.subr.mxu0 0.0
        %2661 = vmatpush1.msra.mxu0 0.0
        %2662 = vmatprep.subr.mxu0 0.0
        %2663 = vmatpush1.msra.mxu0 0.0
        %2664 = vmatprep.subr.mxu0 0.0
        %2665 = vmatpush1.msra.mxu0 0.0
        %2666 = vmatprep.subr.mxu0 0.0
        %2667 = vmatpush1.msra.mxu0 0.0
        %2668 = vmatprep.subr.mxu0 0.0
        %2669 = vmatpush1.msra.mxu0 0.0
        %2670 = vmatprep.subr.mxu0 0.0
        %2671 = vmatpush1.msra.mxu0 0.0
        %2672 = vmatprep.subr.mxu0 0.0
        %2673 = vmatpush1.msra.mxu0 0.0
        %2674 = vmatprep.subr.mxu0 0.0
        %2675 = vmatpush1.msra.mxu0 0.0
        %2676 = vmatprep.subr.mxu0 0.0
        %2677 = vmatpush1.msra.mxu0 0.0
        %2678 = vmatprep.subr.mxu0 0.0
        %2679 = vmatpush1.msra.mxu0 0.0
        %2680 = vmatprep.subr.mxu0 0.0
        %2681 = vmatpush1.msra.mxu0 %v1090
        %2682 = vmatprep.subr.mxu0 0.0
        %2683 = vmatpush1.msra.mxu0 %v1089
        %2684 = vmatprep.subr.mxu0 0.0
        %2685 = vmatpush1.msra.mxu0 %v1088
        %2686 = vmatprep.subr.mxu0 0.0
        %2687 = vmatpush1.msra.mxu0 %v1087
        %2688 = vmatprep.subr.mxu0 0.0
        %2689 = vmatpush2.msra.mxu0 0.0
        %2690 = vmatprep.subr.mxu0 0.0
        %2691 = vmatpush2.msra.mxu0 0.0
        %2692 = vmatprep.subr.mxu0 0.0
        %2693 = vmatpush2.msra.mxu0 0.0
        %2694 = vmatprep.subr.mxu0 0.0
        %2695 = vmatpush2.msra.mxu0 0.0
        %2696 = vmatprep.subr.mxu0 0.0
        %2697 = vmatpush2.msra.mxu0 0.0
        %2698 = vmatprep.subr.mxu0 0.0
        %2699 = vmatpush2.msra.mxu0 0.0
        %2700 = vmatprep.subr.mxu0 0.0
        %2701 = vmatpush2.msra.mxu0 0.0
        %2702 = vmatprep.subr.mxu0 0.0
        %2703 = vmatpush2.msra.mxu0 0.0
        %2704 = vmatprep.subr.mxu0 0.0
        %2705 = vmatpush2.msra.mxu0 0.0
        %2706 = vmatprep.subr.mxu0 0.0
        %2707 = vmatpush2.msra.mxu0 0.0
        %2708 = vmatprep.subr.mxu0 0.0
        %2709 = vmatpush2.msra.mxu0 0.0
        %2710 = vmatprep.subr.mxu0 0.0
        %2711 = vmatpush2.msra.mxu0 0.0
        %2712 = vmatprep.subr.mxu0 0.0
        %2713 = vmatpush2.msra.mxu0 0.0
        %2714 = vmatprep.subr.mxu0 0.0
        %2715 = vmatpush2.msra.mxu0 0.0
        %2716 = vmatprep.subr.mxu0 0.0
        %2717 = vmatpush2.msra.mxu0 0.0
        %2718 = vmatprep.subr.mxu0 0.0
        %2719 = vmatpush2.msra.mxu0 0.0
        %2720 = vmatprep.mubr.f32.mxu0 0.0
        %2721 = vmatmul.mubr.f32.gmra.mxu0 %v2648
        %v2722 = vpop.f32.mrf.mxu0
        %v2723 = vadd.f32 %v2645, %v2722
        %v2724 = vpop.f32.mrf.mxu0
        %2725 = vmatprep.mubr.f32.mxu0 0.0
        %2726 = vmatmul.mubr.f32.gmra.mxu0 %v2651
        %v2727 = vpop.f32.mrf.mxu0
        %v2728 = vadd.f32 %v2645, %v2727
        %v2729 = vpop.f32.mrf.mxu0
        %2730 = vmatprep.mubr.f32.mxu0 0.0
        %2731 = vmatmul.mubr.f32.gmra.mxu0 %v2654
        %v2732 = vpop.f32.mrf.mxu0
        %v2733 = vadd.f32 %v2645, %v2732
        %v2734 = vpop.f32.mrf.mxu0
        %2735 = vdwg.mxu0
        %v2736 = vmax.f32 %v2723, 0.0
        %v2737 = vmax.f32 %v2728, 0.0
        %v2738 = vmax.f32 %v2733, 0.0
        %vm2739 = vcmask 523264
        %v2741 = vsel %vm2739, %v2736, 0
        %v2744 = vsel %vm2739, %v2737, 0
        %v2747 = vsel %vm2739, %v2738, 0
        %2749 = vmatprep.subr.mxu0 0.0
        %2750 = vmatpush1.msra.mxu0 0.0
        %2751 = vmatprep.subr.mxu0 0.0
        %2752 = vmatpush1.msra.mxu0 0.0
        %2753 = vmatprep.subr.mxu0 0.0
        %2754 = vmatpush1.msra.mxu0 0.0
        %2755 = vmatprep.subr.mxu0 0.0
        %2756 = vmatpush1.msra.mxu0 0.0
        %2757 = vmatprep.subr.mxu0 0.0
        %2758 = vmatpush1.msra.mxu0 0.0
        %2759 = vmatprep.subr.mxu0 0.0
        %2760 = vmatpush1.msra.mxu0 0.0
        %2761 = vmatprep.subr.mxu0 0.0
        %2762 = vmatpush1.msra.mxu0 0.0
        %2763 = vmatprep.subr.mxu0 0.0
        %2764 = vmatpush1.msra.mxu0 0.0
        %2765 = vmatprep.subr.mxu0 0.0
        %2766 = vmatpush1.msra.mxu0 %v1099
        %2767 = vmatprep.subr.mxu0 0.0
        %2768 = vmatpush1.msra.mxu0 %v1098
        %2769 = vmatprep.subr.mxu0 0.0
        %2770 = vmatpush1.msra.mxu0 %v1097
        %2771 = vmatprep.subr.mxu0 0.0
        %2772 = vmatpush1.msra.mxu0 %v1096
        %2773 = vmatprep.subr.mxu0 0.0
        %2774 = vmatpush1.msra.mxu0 %v1095
        %2775 = vmatprep.subr.mxu0 0.0
        %2776 = vmatpush1.msra.mxu0 %v1094
        %2777 = vmatprep.subr.mxu0 0.0
        %2778 = vmatpush1.msra.mxu0 %v1093
        %2779 = vmatprep.subr.mxu0 0.0
        %2780 = vmatpush1.msra.mxu0 %v1092
        %2781 = vmatprep.subr.mxu0 0.0
        %2782 = vmatpush2.msra.mxu0 0.0
        %2783 = vmatprep.subr.mxu0 0.0
        %2784 = vmatpush2.msra.mxu0 0.0
        %2785 = vmatprep.subr.mxu0 0.0
        %2786 = vmatpush2.msra.mxu0 0.0
        %2787 = vmatprep.subr.mxu0 0.0
        %2788 = vmatpush2.msra.mxu0 0.0
        %2789 = vmatprep.subr.mxu0 0.0
        %2790 = vmatpush2.msra.mxu0 0.0
        %2791 = vmatprep.subr.mxu0 0.0
        %2792 = vmatpush2.msra.mxu0 0.0
        %2793 = vmatprep.subr.mxu0 0.0
        %2794 = vmatpush2.msra.mxu0 0.0
        %2795 = vmatprep.subr.mxu0 0.0
        %2796 = vmatpush2.msra.mxu0 0.0
        %2797 = vmatprep.subr.mxu0 0.0
        %2798 = vmatpush2.msra.mxu0 0.0
        %2799 = vmatprep.subr.mxu0 0.0
        %2800 = vmatpush2.msra.mxu0 0.0
        %2801 = vmatprep.subr.mxu0 0.0
        %2802 = vmatpush2.msra.mxu0 0.0
        %2803 = vmatprep.subr.mxu0 0.0
        %2804 = vmatpush2.msra.mxu0 0.0
        %2805 = vmatprep.subr.mxu0 0.0
        %2806 = vmatpush2.msra.mxu0 0.0
        %2807 = vmatprep.subr.mxu0 0.0
        %2808 = vmatpush2.msra.mxu0 0.0
        %2809 = vmatprep.subr.mxu0 0.0
        %2810 = vmatpush2.msra.mxu0 0.0
        %2811 = vmatprep.subr.mxu0 0.0
        %2812 = vmatpush2.msra.mxu0 0.0
        %2813 = vmatprep.mubr.f32.mxu0 0.0
        %2814 = vmatmul.mubr.f32.gmra.mxu0 %v2741
        %v2815 = vpop.f32.mrf.mxu0
        %v2816 = vadd.f32 0.0, %v2815
        %v2817 = vpop.f32.mrf.mxu0
        %2818 = vmatprep.mubr.f32.mxu0 0.0
        %2819 = vmatmul.mubr.f32.gmra.mxu0 %v2744
        %v2820 = vpop.f32.mrf.mxu0
        %v2821 = vadd.f32 0.0, %v2820
        %v2822 = vpop.f32.mrf.mxu0
        %2823 = vmatprep.mubr.f32.mxu0 0.0
        %2824 = vmatmul.mubr.f32.gmra.mxu0 %v2747
        %v2825 = vpop.f32.mrf.mxu0
        %v2826 = vadd.f32 0.0, %v2825
        %v2827 = vpop.f32.mrf.mxu0
        %2828 = vdwg.mxu0
        %v2829 = vadd.f32 %v2581, %v2816
        %v2830 = vadd.f32 %v2582, %v2821
        %v2831 = vadd.f32 %v2583, %v2826
        %v2833 = vlaneseq
        %v2834 = vshrl.u32 %v2833, 7
        %v2835 = vsub.s32 0, %v2834
        %v2836 = vrot.slane %v1100, %v2835
        %v2838 = vadd.f32 %v2829, %v2836
        %v2839 = vadd.f32 %v2830, %v2836
        %v2840 = vadd.f32 %v2831, %v2836
        %2841 = vst.msk [vmem:[#allocation2] sm:$0xff] %vm1104, %v2838
        %2842 = vst.msk [vmem:[#allocation2 + $0x8] sm:$0xff] %vm1104, %v2839
        %2843 = vst.msk [vmem:[#allocation2 + $0x10] sm:$0x1] %vm1111, %v2840
        %s2844 = scalar_lea.vmem [#allocation2], 24
        %v2845 = vld [vmem:[%s2844] sm:$0xff]
        %v2846 = vld [vmem:[%s2844 + $0x8] sm:$0xff]
        %v2847 = vld [vmem:[%s2844 + $0x10] sm:$0x1]
        %v2848 = vsel %vm1104, %v2845, 0.0
        %2849 = vadd.xlane.f32.xlu0 %v2848
        %v2850 = vpop.xlane.xlu0 %2849
        %v2851 = vsel %vm1104, %v2846, 0.0
        %2852 = vadd.xlane.f32.xlu0 %v2851
        %v2853 = vpop.xlane.xlu0 %2852
        %v2854 = vsel %vm1111, %v2847, 0.0
        %2855 = vadd.xlane.f32.xlu0 %v2854
        %v2856 = vpop.xlane.xlu0 %2855
        %v2857 = vmul.f32 %v2850, %v1115
        %v2858 = vmul.f32 %v2853, %v1115
        %v2859 = vmul.f32 %v2856, %v1115
        %v2860 = vsub.f32 %v2845, %v2857
        %v2861 = vsub.f32 %v2846, %v2858
        %v2862 = vsub.f32 %v2847, %v2859
        %v2863 = vmul.f32 %v2860, %v2860
        %v2864 = vmul.f32 %v2861, %v2861
        %v2865 = vmul.f32 %v2862, %v2862
        %v2866 = vsel %vm1104, %v2863, 0.0
        %2867 = vadd.xlane.f32.xlu0 %v2866
        %v2868 = vpop.xlane.xlu0 %2867
        %v2869 = vsel %vm1104, %v2864, 0.0
        %2870 = vadd.xlane.f32.xlu0 %v2869
        %v2871 = vpop.xlane.xlu0 %2870
        %v2872 = vsel %vm1111, %v2865, 0.0
        %2873 = vadd.xlane.f32.xlu0 %v2872
        %v2874 = vpop.xlane.xlu0 %2873
        %v2875 = vmul.f32 %v2868, %v1115
        %v2876 = vmul.f32 %v2871, %v1115
        %v2877 = vmul.f32 %v2874, %v1115
        %v2878 = vadd.f32 %v2875, 1e-05
        %v2879 = vadd.f32 %v2876, 1e-05
        %v2880 = vadd.f32 %v2877, 1e-05
        %v2881 = vrsqrt.pop %v2878
        %v2882 = vrsqrt.pop %v2879
        %v2883 = vrsqrt.pop %v2880
        %v2884 = vmul.f32 %v2860, %v2881
        %v2885 = vmul.f32 %v2861, %v2882
        %v2886 = vmul.f32 %v2862, %v2883
        %v2887 = vmul.f32 %v2884, %v1150
        %v2888 = vmul.f32 %v2885, %v1150
        %v2889 = vmul.f32 %v2886, %v1150
        %v2890 = vadd.f32 %v2887, %v1159
        %v2891 = vadd.f32 %v2888, %v1159
        %v2892 = vadd.f32 %v2889, %v1159
        %v2894 = vsel %vm1104, %v2890, 0
        %v2897 = vsel %vm1104, %v2891, 0
        %v2900 = vsel %vm1104, %v2892, 0
        %2902 = vmatprep.subr.mxu0 0.0
        %2903 = vmatpush1.msra.mxu0 0.0
        %2904 = vmatprep.subr.mxu0 0.0
        %2905 = vmatpush1.msra.mxu0 0.0
        %2906 = vmatprep.subr.mxu0 0.0
        %2907 = vmatpush1.msra.mxu0 0.0
        %2908 = vmatprep.subr.mxu0 0.0
        %2909 = vmatpush1.msra.mxu0 0.0
        %2910 = vmatprep.subr.mxu0 0.0
        %2911 = vmatpush1.msra.mxu0 0.0
        %2912 = vmatprep.subr.mxu0 0.0
        %2913 = vmatpush1.msra.mxu0 0.0
        %2914 = vmatprep.subr.mxu0 0.0
        %2915 = vmatpush1.msra.mxu0 0.0
        %2916 = vmatprep.subr.mxu0 0.0
        %2917 = vmatpush1.msra.mxu0 0.0
        %2918 = vmatprep.subr.mxu0 0.0
        %2919 = vmatpush1.msra.mxu0 0.0
        %2920 = vmatprep.subr.mxu0 0.0
        %2921 = vmatpush1.msra.mxu0 0.0
        %2922 = vmatprep.subr.mxu0 0.0
        %2923 = vmatpush1.msra.mxu0 0.0
        %2924 = vmatprep.subr.mxu0 0.0
        %2925 = vmatpush1.msra.mxu0 0.0
        %2926 = vmatprep.subr.mxu0 0.0
        %2927 = vmatpush1.msra.mxu0 %v1078
        %2928 = vmatprep.subr.mxu0 0.0
        %2929 = vmatpush1.msra.mxu0 %v1077
        %2930 = vmatprep.subr.mxu0 0.0
        %2931 = vmatpush1.msra.mxu0 %v1076
        %2932 = vmatprep.subr.mxu0 0.0
        %2933 = vmatpush1.msra.mxu0 %v1075
        %2934 = vmatprep.subr.mxu0 0.0
        %2935 = vmatpush2.msra.mxu0 0.0
        %2936 = vmatprep.subr.mxu0 0.0
        %2937 = vmatpush2.msra.mxu0 0.0
        %2938 = vmatprep.subr.mxu0 0.0
        %2939 = vmatpush2.msra.mxu0 0.0
        %2940 = vmatprep.subr.mxu0 0.0
        %2941 = vmatpush2.msra.mxu0 0.0
        %2942 = vmatprep.subr.mxu0 0.0
        %2943 = vmatpush2.msra.mxu0 0.0
        %2944 = vmatprep.subr.mxu0 0.0
        %2945 = vmatpush2.msra.mxu0 0.0
        %2946 = vmatprep.subr.mxu0 0.0
        %2947 = vmatpush2.msra.mxu0 0.0
        %2948 = vmatprep.subr.mxu0 0.0
        %2949 = vmatpush2.msra.mxu0 0.0
        %2950 = vmatprep.subr.mxu0 0.0
        %2951 = vmatpush2.msra.mxu0 0.0
        %2952 = vmatprep.subr.mxu0 0.0
        %2953 = vmatpush2.msra.mxu0 0.0
        %2954 = vmatprep.subr.mxu0 0.0
        %2955 = vmatpush2.msra.mxu0 0.0
        %2956 = vmatprep.subr.mxu0 0.0
        %2957 = vmatpush2.msra.mxu0 0.0
        %2958 = vmatprep.subr.mxu0 0.0
        %2959 = vmatpush2.msra.mxu0 0.0
        %2960 = vmatprep.subr.mxu0 0.0
        %2961 = vmatpush2.msra.mxu0 0.0
        %2962 = vmatprep.subr.mxu0 0.0
        %2963 = vmatpush2.msra.mxu0 0.0
        %2964 = vmatprep.subr.mxu0 0.0
        %2965 = vmatpush2.msra.mxu0 0.0
        %2966 = vmatprep.mubr.f32.mxu0 0.0
        %2967 = vmatmul.mubr.f32.gmra.mxu0 %v2894
        %v2968 = vpop.f32.mrf.mxu0
        %v2969 = vadd.f32 %v1168, %v2968
        %v2970 = vpop.f32.mrf.mxu0
        %2971 = vmatprep.mubr.f32.mxu0 0.0
        %2972 = vmatmul.mubr.f32.gmra.mxu0 %v2897
        %v2973 = vpop.f32.mrf.mxu0
        %v2974 = vadd.f32 %v1168, %v2973
        %v2975 = vpop.f32.mrf.mxu0
        %2976 = vmatprep.mubr.f32.mxu0 0.0
        %2977 = vmatmul.mubr.f32.gmra.mxu0 %v2900
        %v2978 = vpop.f32.mrf.mxu0
        %v2979 = vadd.f32 %v1168, %v2978
        %v2980 = vpop.f32.mrf.mxu0
        %2981 = vdwg.mxu0
        %v2982 = vmul.f32 %v2969, 0.35355338
        %v2983 = vmul.f32 %v2974, 0.35355338
        %v2984 = vmul.f32 %v2979, 0.35355338
        %2988 = vrot.lane.b32.xlu0 %v2969, 96
        %v2989 = vpop.permute.xlu0 %2988
        %2990 = vrot.lane.b32.xlu0 %v2974, 96
        %v2991 = vpop.permute.xlu0 %2990
        %2992 = vrot.lane.b32.xlu0 %v2979, 96
        %v2993 = vpop.permute.xlu0 %2992
        %v2995 = vsel %vm1271, %v2982, 0
        %v2998 = vsel %vm1271, %v2983, 0
        %v3001 = vsel %vm1271, %v2984, 0
        %v3003 = vsel %vm1271, %v2989, 0
        %v3005 = vsel %vm1271, %v2991, 0
        %v3007 = vsel %vm1271, %v2993, 0
        %3009 = vmatprep.subr.mxu0 0.0
        %3010 = vmatpush1.xpose.msra.mxu0 0.0
        %3011 = vmatprep.subr.mxu0 0.0
        %3012 = vmatpush1.xpose.msra.mxu0 0.0
        %3013 = vmatprep.subr.mxu0 0.0
        %3014 = vmatpush1.xpose.msra.mxu0 0.0
        %3015 = vmatprep.subr.mxu0 0.0
        %3016 = vmatpush1.xpose.msra.mxu0 0.0
        %3017 = vmatprep.subr.mxu0 0.0
        %3018 = vmatpush1.xpose.msra.mxu0 0.0
        %3019 = vmatprep.subr.mxu0 0.0
        %3020 = vmatpush1.xpose.msra.mxu0 0.0
        %3021 = vmatprep.subr.mxu0 0.0
        %3022 = vmatpush1.xpose.msra.mxu0 0.0
        %3023 = vmatprep.subr.mxu0 0.0
        %3024 = vmatpush1.xpose.msra.mxu0 0.0
        %3025 = vmatprep.subr.mxu0 0.0
        %3026 = vmatpush1.xpose.msra.mxu0 0.0
        %3027 = vmatprep.subr.mxu0 0.0
        %3028 = vmatpush1.xpose.msra.mxu0 0.0
        %3029 = vmatprep.subr.mxu0 0.0
        %3030 = vmatpush1.xpose.msra.mxu0 0.0
        %3031 = vmatprep.subr.mxu0 0.0
        %3032 = vmatpush1.xpose.msra.mxu0 0.0
        %3033 = vmatprep.subr.mxu0 0.0
        %3034 = vmatpush1.xpose.msra.mxu0 0.0
        %3035 = vmatprep.subr.mxu0 0.0
        %3036 = vmatpush1.xpose.msra.mxu0 %v3007
        %3037 = vmatprep.subr.mxu0 0.0
        %3038 = vmatpush1.xpose.msra.mxu0 %v3005
        %3039 = vmatprep.subr.mxu0 0.0
        %3040 = vmatpush1.xpose.msra.mxu0 %v3003
        %3041 = vmatprep.subr.mxu0 0.0
        %3042 = vmatpush2.xpose.msra.mxu0 0.0
        %3043 = vmatprep.subr.mxu0 0.0
        %3044 = vmatpush2.xpose.msra.mxu0 0.0
        %3045 = vmatprep.subr.mxu0 0.0
        %3046 = vmatpush2.xpose.msra.mxu0 0.0
        %3047 = vmatprep.subr.mxu0 0.0
        %3048 = vmatpush2.xpose.msra.mxu0 0.0
        %3049 = vmatprep.subr.mxu0 0.0
        %3050 = vmatpush2.xpose.msra.mxu0 0.0
        %3051 = vmatprep.subr.mxu0 0.0
        %3052 = vmatpush2.xpose.msra.mxu0 0.0
        %3053 = vmatprep.subr.mxu0 0.0
        %3054 = vmatpush2.xpose.msra.mxu0 0.0
        %3055 = vmatprep.subr.mxu0 0.0
        %3056 = vmatpush2.xpose.msra.mxu0 0.0
        %3057 = vmatprep.subr.mxu0 0.0
        %3058 = vmatpush2.xpose.msra.mxu0 0.0
        %3059 = vmatprep.subr.mxu0 0.0
        %3060 = vmatpush2.xpose.msra.mxu0 0.0
        %3061 = vmatprep.subr.mxu0 0.0
        %3062 = vmatpush2.xpose.msra.mxu0 0.0
        %3063 = vmatprep.subr.mxu0 0.0
        %3064 = vmatpush2.xpose.msra.mxu0 0.0
        %3065 = vmatprep.subr.mxu0 0.0
        %3066 = vmatpush2.xpose.msra.mxu0 0.0
        %3067 = vmatprep.subr.mxu0 0.0
        %3068 = vmatpush2.xpose.msra.mxu0 0.0
        %3069 = vmatprep.subr.mxu0 0.0
        %3070 = vmatpush2.xpose.msra.mxu0 0.0
        %3071 = vmatprep.subr.mxu0 0.0
        %3072 = vmatpush2.xpose.msra.mxu0 0.0
        %3073 = vmatprep.mubr.f32.mxu0 0.0
        %3074 = vmatmul.mubr.f32.gmra.mxu0 %v2995
        %v3075 = vpop.f32.mrf.mxu0
        %v3076 = vadd.f32 0.0, %v3075
        %v3077 = vpop.f32.mrf.mxu0
        %3078 = vmatprep.mubr.f32.mxu0 0.0
        %3079 = vmatmul.mubr.f32.gmra.mxu0 %v2998
        %v3080 = vpop.f32.mrf.mxu0
        %v3081 = vadd.f32 0.0, %v3080
        %v3082 = vpop.f32.mrf.mxu0
        %3083 = vmatprep.mubr.f32.mxu0 0.0
        %3084 = vmatmul.mubr.f32.gmra.mxu0 %v3001
        %v3085 = vpop.f32.mrf.mxu0
        %v3086 = vadd.f32 0.0, %v3085
        %v3087 = vpop.f32.mrf.mxu0
        %3088 = vdwg.mxu0
        %v3089 = vsel %vm1367, %v3076, -inf
        %3090 = vmax.xlane.f32.xlu0 %v3089
        %v3091 = vpop.xlane.xlu0 %3090
        %v3092 = vsel %vm1367, %v3081, -inf
        %3093 = vmax.xlane.f32.xlu0 %v3092
        %v3094 = vpop.xlane.xlu0 %3093
        %v3095 = vsel %vm1374, %v3086, -inf
        %3096 = vmax.xlane.f32.xlu0 %v3095
        %v3097 = vpop.xlane.xlu0 %3096
        %v3098 = vsub.f32 %v3076, %v3091
        %v3099 = vsub.f32 %v3081, %v3094
        %v3100 = vsub.f32 %v3086, %v3097
        %v3101 = vmul.f32 %v3098, 1.442695
        %v3102 = vpow.pop %v3101
        %v3103 = vmul.f32 %v3099, 1.442695
        %v3104 = vpow.pop %v3103
        %v3105 = vmul.f32 %v3100, 1.442695
        %v3106 = vpow.pop %v3105
        %v3107 = vsel %vm1367, %v3102, 0.0
        %3108 = vadd.xlane.f32.xlu0 %v3107
        %v3109 = vpop.xlane.xlu0 %3108
        %v3110 = vsel %vm1367, %v3104, 0.0
        %3111 = vadd.xlane.f32.xlu0 %v3110
        %v3112 = vpop.xlane.xlu0 %3111
        %v3113 = vsel %vm1374, %v3106, 0.0
        %3114 = vadd.xlane.f32.xlu0 %v3113
        %v3115 = vpop.xlane.xlu0 %3114
        %v3116 = vrcp.pop %v3109
        %v3117 = vrcp.pop %v3112
        %v3118 = vrcp.pop %v3115
        %v3119 = vmul.f32 %v3102, %v3116
        %v3120 = vmul.f32 %v3104, %v3117
        %v3121 = vmul.f32 %v3106, %v3118
        %3122 = vrot.lane.b32.xlu0 %v2969, 64
        %v3123 = vpop.permute.xlu0 %3122
        %3124 = vrot.lane.b32.xlu0 %v2974, 64
        %v3125 = vpop.permute.xlu0 %3124
        %3126 = vrot.lane.b32.xlu0 %v2979, 64
        %v3127 = vpop.permute.xlu0 %3126
        %v3131 = vsel %vm1367, %v3119, 0
        %v3134 = vsel %vm1367, %v3120, 0
        %v3137 = vsel %vm1367, %v3121, 0
        %v3139 = vsel %vm1419, %v3127, 0
        %3141 = vmatprep.subr.mxu0 0.0
        %3142 = vmatpush1.msra.mxu0 0.0
        %3143 = vmatprep.subr.mxu0 0.0
        %3144 = vmatpush1.msra.mxu0 0.0
        %3145 = vmatprep.subr.mxu0 0.0
        %3146 = vmatpush1.msra.mxu0 0.0
        %3147 = vmatprep.subr.mxu0 0.0
        %3148 = vmatpush1.msra.mxu0 0.0
        %3149 = vmatprep.subr.mxu0 0.0
        %3150 = vmatpush1.msra.mxu0 0.0
        %3151 = vmatprep.subr.mxu0 0.0
        %3152 = vmatpush1.msra.mxu0 0.0
        %3153 = vmatprep.subr.mxu0 0.0
        %3154 = vmatpush1.msra.mxu0 0.0
        %3155 = vmatprep.subr.mxu0 0.0
        %3156 = vmatpush1.msra.mxu0 0.0
        %3157 = vmatprep.subr.mxu0 0.0
        %3158 = vmatpush1.msra.mxu0 0.0
        %3159 = vmatprep.subr.mxu0 0.0
        %3160 = vmatpush1.msra.mxu0 0.0
        %3161 = vmatprep.subr.mxu0 0.0
        %3162 = vmatpush1.msra.mxu0 0.0
        %3163 = vmatprep.subr.mxu0 0.0
        %3164 = vmatpush1.msra.mxu0 0.0
        %3165 = vmatprep.subr.mxu0 0.0
        %3166 = vmatpush1.msra.mxu0 0.0
        %3167 = vmatprep.subr.mxu0 0.0
        %3168 = vmatpush1.msra.mxu0 %v3139
        %3169 = vmatprep.subr.mxu0 0.0
        %3170 = vmatpush1.msra.mxu0 %v3125
        %3171 = vmatprep.subr.mxu0 0.0
        %3172 = vmatpush1.msra.mxu0 %v3123
        %3173 = vmatprep.subr.mxu0 0.0
        %3174 = vmatpush2.msra.mxu0 0.0
        %3175 = vmatprep.subr.mxu0 0.0
        %3176 = vmatpush2.msra.mxu0 0.0
        %3177 = vmatprep.subr.mxu0 0.0
        %3178 = vmatpush2.msra.mxu0 0.0
        %3179 = vmatprep.subr.mxu0 0.0
        %3180 = vmatpush2.msra.mxu0 0.0
        %3181 = vmatprep.subr.mxu0 0.0
        %3182 = vmatpush2.msra.mxu0 0.0
        %3183 = vmatprep.subr.mxu0 0.0
        %3184 = vmatpush2.msra.mxu0 0.0
        %3185 = vmatprep.subr.mxu0 0.0
        %3186 = vmatpush2.msra.mxu0 0.0
        %3187 = vmatprep.subr.mxu0 0.0
        %3188 = vmatpush2.msra.mxu0 0.0
        %3189 = vmatprep.subr.mxu0 0.0
        %3190 = vmatpush2.msra.mxu0 0.0
        %3191 = vmatprep.subr.mxu0 0.0
        %3192 = vmatpush2.msra.mxu0 0.0
        %3193 = vmatprep.subr.mxu0 0.0
        %3194 = vmatpush2.msra.mxu0 0.0
        %3195 = vmatprep.subr.mxu0 0.0
        %3196 = vmatpush2.msra.mxu0 0.0
        %3197 = vmatprep.subr.mxu0 0.0
        %3198 = vmatpush2.msra.mxu0 0.0
        %3199 = vmatprep.subr.mxu0 0.0
        %3200 = vmatpush2.msra.mxu0 0.0
        %3201 = vmatprep.subr.mxu0 0.0
        %3202 = vmatpush2.msra.mxu0 0.0
        %3203 = vmatprep.subr.mxu0 0.0
        %3204 = vmatpush2.msra.mxu0 0.0
        %3205 = vmatprep.mubr.f32.mxu0 0.0
        %3206 = vmatmul.mubr.f32.gmra.mxu0 %v3131
        %v3207 = vpop.f32.mrf.mxu0
        %v3208 = vadd.f32 0.0, %v3207
        %v3209 = vpop.f32.mrf.mxu0
        %3210 = vmatprep.mubr.f32.mxu0 0.0
        %3211 = vmatmul.mubr.f32.gmra.mxu0 %v3134
        %v3212 = vpop.f32.mrf.mxu0
        %v3213 = vadd.f32 0.0, %v3212
        %v3214 = vpop.f32.mrf.mxu0
        %3215 = vmatprep.mubr.f32.mxu0 0.0
        %3216 = vmatmul.mubr.f32.gmra.mxu0 %v3137
        %v3217 = vpop.f32.mrf.mxu0
        %v3218 = vadd.f32 0.0, %v3217
        %v3219 = vpop.f32.mrf.mxu0
        %3220 = vdwg.mxu0
        %3221 = vrot.lane.b32.xlu0 %v2982, 120
        %v3222 = vpop.permute.xlu0 %3221
        %3223 = vrot.lane.b32.xlu0 %v2983, 120
        %v3224 = vpop.permute.xlu0 %3223
        %3225 = vrot.lane.b32.xlu0 %v2984, 120
        %v3226 = vpop.permute.xlu0 %3225
        %3227 = vrot.lane.b32.xlu0 %v2969, 88
        %v3228 = vpop.permute.xlu0 %3227
        %3229 = vrot.lane.b32.xlu0 %v2974, 88
        %v3230 = vpop.permute.xlu0 %3229
        %3231 = vrot.lane.b32.xlu0 %v2979, 88
        %v3232 = vpop.permute.xlu0 %3231
        %v3233 = vsel %vm1271, %v3222, 0
        %v3235 = vsel %vm1271, %v3224, 0
        %v3237 = vsel %vm1271, %v3226, 0
        %v3239 = vsel %vm1271, %v3228, 0
        %v3241 = vsel %vm1271, %v3230, 0
        %v3243 = vsel %vm1271, %v3232, 0
        %3245 = vmatprep.subr.mxu0 0.0
        %3246 = vmatpush1.xpose.msra.mxu0 0.0
        %3247 = vmatprep.subr.mxu0 0.0
        %3248 = vmatpush1.xpose.msra.mxu0 0.0
        %3249 = vmatprep.subr.mxu0 0.0
        %3250 = vmatpush1.xpose.msra.mxu0 0.0
        %3251 = vmatprep.subr.mxu0 0.0
        %3252 = vmatpush1.xpose.msra.mxu0 0.0
        %3253 = vmatprep.subr.mxu0 0.0
        %3254 = vmatpush1.xpose.msra.mxu0 0.0
        %3255 = vmatprep.subr.mxu0 0.0
        %3256 = vmatpush1.xpose.msra.mxu0 0.0
        %3257 = vmatprep.subr.mxu0 0.0
        %3258 = vmatpush1.xpose.msra.mxu0 0.0
        %3259 = vmatprep.subr.mxu0 0.0
        %3260 = vmatpush1.xpose.msra.mxu0 0.0
        %3261 = vmatprep.subr.mxu0 0.0
        %3262 = vmatpush1.xpose.msra.mxu0 0.0
        %3263 = vmatprep.subr.mxu0 0.0
        %3264 = vmatpush1.xpose.msra.mxu0 0.0
        %3265 = vmatprep.subr.mxu0 0.0
        %3266 = vmatpush1.xpose.msra.mxu0 0.0
        %3267 = vmatprep.subr.mxu0 0.0
        %3268 = vmatpush1.xpose.msra.mxu0 0.0
        %3269 = vmatprep.subr.mxu0 0.0
        %3270 = vmatpush1.xpose.msra.mxu0 0.0
        %3271 = vmatprep.subr.mxu0 0.0
        %3272 = vmatpush1.xpose.msra.mxu0 %v3243
        %3273 = vmatprep.subr.mxu0 0.0
        %3274 = vmatpush1.xpose.msra.mxu0 %v3241
        %3275 = vmatprep.subr.mxu0 0.0
        %3276 = vmatpush1.xpose.msra.mxu0 %v3239
        %3277 = vmatprep.subr.mxu0 0.0
        %3278 = vmatpush2.xpose.msra.mxu0 0.0
        %3279 = vmatprep.subr.mxu0 0.0
        %3280 = vmatpush2.xpose.msra.mxu0 0.0
        %3281 = vmatprep.subr.mxu0 0.0
        %3282 = vmatpush2.xpose.msra.mxu0 0.0
        %3283 = vmatprep.subr.mxu0 0.0
        %3284 = vmatpush2.xpose.msra.mxu0 0.0
        %3285 = vmatprep.subr.mxu0 0.0
        %3286 = vmatpush2.xpose.msra.mxu0 0.0
        %3287 = vmatprep.subr.mxu0 0.0
        %3288 = vmatpush2.xpose.msra.mxu0 0.0
        %3289 = vmatprep.subr.mxu0 0.0
        %3290 = vmatpush2.xpose.msra.mxu0 0.0
        %3291 = vmatprep.subr.mxu0 0.0
        %3292 = vmatpush2.xpose.msra.mxu0 0.0
        %3293 = vmatprep.subr.mxu0 0.0
        %3294 = vmatpush2.xpose.msra.mxu0 0.0
        %3295 = vmatprep.subr.mxu0 0.0
        %3296 = vmatpush2.xpose.msra.mxu0 0.0
        %3297 = vmatprep.subr.mxu0 0.0
        %3298 = vmatpush2.xpose.msra.mxu0 0.0
        %3299 = vmatprep.subr.mxu0 0.0
        %3300 = vmatpush2.xpose.msra.mxu0 0.0
        %3301 = vmatprep.subr.mxu0 0.0
        %3302 = vmatpush2.xpose.msra.mxu0 0.0
        %3303 = vmatprep.subr.mxu0 0.0
        %3304 = vmatpush2.xpose.msra.mxu0 0.0
        %3305 = vmatprep.subr.mxu0 0.0
        %3306 = vmatpush2.xpose.msra.mxu0 0.0
        %3307 = vmatprep.subr.mxu0 0.0
        %3308 = vmatpush2.xpose.msra.mxu0 0.0
        %3309 = vmatprep.mubr.f32.mxu0 0.0
        %3310 = vmatmul.mubr.f32.gmra.mxu0 %v3233
        %v3311 = vpop.f32.mrf.mxu0
        %v3312 = vadd.f32 0.0, %v3311
        %v3313 = vpop.f32.mrf.mxu0
        %3314 = vmatprep.mubr.f32.mxu0 0.0
        %3315 = vmatmul.mubr.f32.gmra.mxu0 %v3235
        %v3316 = vpop.f32.mrf.mxu0
        %v3317 = vadd.f32 0.0, %v3316
        %v3318 = vpop.f32.mrf.mxu0
        %3319 = vmatprep.mubr.f32.mxu0 0.0
        %3320 = vmatmul.mubr.f32.gmra.mxu0 %v3237
        %v3321 = vpop.f32.mrf.mxu0
        %v3322 = vadd.f32 0.0, %v3321
        %v3323 = vpop.f32.mrf.mxu0
        %3324 = vdwg.mxu0
        %v3325 = vsel %vm1367, %v3312, -inf
        %3326 = vmax.xlane.f32.xlu0 %v3325
        %v3327 = vpop.xlane.xlu0 %3326
        %v3328 = vsel %vm1367, %v3317, -inf
        %3329 = vmax.xlane.f32.xlu0 %v3328
        %v3330 = vpop.xlane.xlu0 %3329
        %v3331 = vsel %vm1374, %v3322, -inf
        %3332 = vmax.xlane.f32.xlu0 %v3331
        %v3333 = vpop.xlane.xlu0 %3332
        %v3334 = vsub.f32 %v3312, %v3327
        %v3335 = vsub.f32 %v3317, %v3330
        %v3336 = vsub.f32 %v3322, %v3333
        %v3337 = vmul.f32 %v3334, 1.442695
        %v3338 = vpow.pop %v3337
        %v3339 = vmul.f32 %v3335, 1.442695
        %v3340 = vpow.pop %v3339
        %v3341 = vmul.f32 %v3336, 1.442695
        %v3342 = vpow.pop %v3341
        %v3343 = vsel %vm1367, %v3338, 0.0
        %3344 = vadd.xlane.f32.xlu0 %v3343
        %v3345 = vpop.xlane.xlu0 %3344
        %v3346 = vsel %vm1367, %v3340, 0.0
        %3347 = vadd.xlane.f32.xlu0 %v3346
        %v3348 = vpop.xlane.xlu0 %3347
        %v3349 = vsel %vm1374, %v3342, 0.0
        %3350 = vadd.xlane.f32.xlu0 %v3349
        %v3351 = vpop.xlane.xlu0 %3350
        %v3352 = vrcp.pop %v3345
        %v3353 = vrcp.pop %v3348
        %v3354 = vrcp.pop %v3351
        %v3355 = vmul.f32 %v3338, %v3352
        %v3356 = vmul.f32 %v3340, %v3353
        %v3357 = vmul.f32 %v3342, %v3354
        %3358 = vrot.lane.b32.xlu0 %v2969, 56
        %v3359 = vpop.permute.xlu0 %3358
        %3360 = vrot.lane.b32.xlu0 %v2974, 56
        %v3361 = vpop.permute.xlu0 %3360
        %3362 = vrot.lane.b32.xlu0 %v2979, 56
        %v3363 = vpop.permute.xlu0 %3362
        %v3367 = vsel %vm1367, %v3355, 0
        %v3370 = vsel %vm1367, %v3356, 0
        %v3373 = vsel %vm1367, %v3357, 0
        %v3375 = vsel %vm1419, %v3363, 0
        %3377 = vmatprep.subr.mxu0 0.0
        %3378 = vmatpush1.msra.mxu0 0.0
        %3379 = vmatprep.subr.mxu0 0.0
        %3380 = vmatpush1.msra.mxu0 0.0
        %3381 = vmatprep.subr.mxu0 0.0
        %3382 = vmatpush1.msra.mxu0 0.0
        %3383 = vmatprep.subr.mxu0 0.0
        %3384 = vmatpush1.msra.mxu0 0.0
        %3385 = vmatprep.subr.mxu0 0.0
        %3386 = vmatpush1.msra.mxu0 0.0
        %3387 = vmatprep.subr.mxu0 0.0
        %3388 = vmatpush1.msra.mxu0 0.0
        %3389 = vmatprep.subr.mxu0 0.0
        %3390 = vmatpush1.msra.mxu0 0.0
        %3391 = vmatprep.subr.mxu0 0.0
        %3392 = vmatpush1.msra.mxu0 0.0
        %3393 = vmatprep.subr.mxu0 0.0
        %3394 = vmatpush1.msra.mxu0 0.0
        %3395 = vmatprep.subr.mxu0 0.0
        %3396 = vmatpush1.msra.mxu0 0.0
        %3397 = vmatprep.subr.mxu0 0.0
        %3398 = vmatpush1.msra.mxu0 0.0
        %3399 = vmatprep.subr.mxu0 0.0
        %3400 = vmatpush1.msra.mxu0 0.0
        %3401 = vmatprep.subr.mxu0 0.0
        %3402 = vmatpush1.msra.mxu0 0.0
        %3403 = vmatprep.subr.mxu0 0.0
        %3404 = vmatpush1.msra.mxu0 %v3375
        %3405 = vmatprep.subr.mxu0 0.0
        %3406 = vmatpush1.msra.mxu0 %v3361
        %3407 = vmatprep.subr.mxu0 0.0
        %3408 = vmatpush1.msra.mxu0 %v3359
        %3409 = vmatprep.subr.mxu0 0.0
        %3410 = vmatpush2.msra.mxu0 0.0
        %3411 = vmatprep.subr.mxu0 0.0
        %3412 = vmatpush2.msra.mxu0 0.0
        %3413 = vmatprep.subr.mxu0 0.0
        %3414 = vmatpush2.msra.mxu0 0.0
        %3415 = vmatprep.subr.mxu0 0.0
        %3416 = vmatpush2.msra.mxu0 0.0
        %3417 = vmatprep.subr.mxu0 0.0
        %3418 = vmatpush2.msra.mxu0 0.0
        %3419 = vmatprep.subr.mxu0 0.0
        %3420 = vmatpush2.msra.mxu0 0.0
        %3421 = vmatprep.subr.mxu0 0.0
        %3422 = vmatpush2.msra.mxu0 0.0
        %3423 = vmatprep.subr.mxu0 0.0
        %3424 = vmatpush2.msra.mxu0 0.0
        %3425 = vmatprep.subr.mxu0 0.0
        %3426 = vmatpush2.msra.mxu0 0.0
        %3427 = vmatprep.subr.mxu0 0.0
        %3428 = vmatpush2.msra.mxu0 0.0
        %3429 = vmatprep.subr.mxu0 0.0
        %3430 = vmatpush2.msra.mxu0 0.0
        %3431 = vmatprep.subr.mxu0 0.0
        %3432 = vmatpush2.msra.mxu0 0.0
        %3433 = vmatprep.subr.mxu0 0.0
        %3434 = vmatpush2.msra.mxu0 0.0
        %3435 = vmatprep.subr.mxu0 0.0
        %3436 = vmatpush2.msra.mxu0 0.0
        %3437 = vmatprep.subr.mxu0 0.0
        %3438 = vmatpush2.msra.mxu0 0.0
        %3439 = vmatprep.subr.mxu0 0.0
        %3440 = vmatpush2.msra.mxu0 0.0
        %3441 = vmatprep.mubr.f32.mxu0 0.0
        %3442 = vmatmul.mubr.f32.gmra.mxu0 %v3367
        %v3443 = vpop.f32.mrf.mxu0
        %v3444 = vadd.f32 0.0, %v3443
        %v3445 = vpop.f32.mrf.mxu0
        %3446 = vmatprep.mubr.f32.mxu0 0.0
        %3447 = vmatmul.mubr.f32.gmra.mxu0 %v3370
        %v3448 = vpop.f32.mrf.mxu0
        %v3449 = vadd.f32 0.0, %v3448
        %v3450 = vpop.f32.mrf.mxu0
        %3451 = vmatprep.mubr.f32.mxu0 0.0
        %3452 = vmatmul.mubr.f32.gmra.mxu0 %v3373
        %v3453 = vpop.f32.mrf.mxu0
        %v3454 = vadd.f32 0.0, %v3453
        %v3455 = vpop.f32.mrf.mxu0
        %3456 = vdwg.mxu0
        %v3458 = vsel %vm1271, %v3444, 0
        %v3461 = vsel %vm1271, %v3449, 0
        %v3464 = vsel %vm1271, %v3454, 0
        %3466 = vmatprep.subr.mxu0 0.0
        %3467 = vmatpush1.msra.mxu0 0.0
        %3468 = vmatprep.subr.mxu0 0.0
        %3469 = vmatpush1.msra.mxu0 0.0
        %3470 = vmatprep.subr.mxu0 0.0
        %3471 = vmatpush1.msra.mxu0 0.0
        %3472 = vmatprep.subr.mxu0 0.0
        %3473 = vmatpush1.msra.mxu0 0.0
        %3474 = vmatprep.subr.mxu0 0.0
        %3475 = vmatpush1.msra.mxu0 0.0
        %3476 = vmatprep.subr.mxu0 0.0
        %3477 = vmatpush1.msra.mxu0 0.0
        %3478 = vmatprep.subr.mxu0 0.0
        %3479 = vmatpush1.msra.mxu0 0.0
        %3480 = vmatprep.subr.mxu0 0.0
        %3481 = vmatpush1.msra.mxu0 0.0
        %3482 = vmatprep.subr.mxu0 0.0
        %3483 = vmatpush1.msra.mxu0 0.0
        %3484 = vmatprep.subr.mxu0 0.0
        %3485 = vmatpush1.msra.mxu0 0.0
        %3486 = vmatprep.subr.mxu0 0.0
        %3487 = vmatpush1.msra.mxu0 0.0
        %3488 = vmatprep.subr.mxu0 0.0
        %3489 = vmatpush1.msra.mxu0 0.0
        %3490 = vmatprep.subr.mxu0 0.0
        %3491 = vmatpush1.msra.mxu0 0.0
        %3492 = vmatprep.subr.mxu0 0.0
        %3493 = vmatpush1.msra.mxu0 0.0
        %3494 = vmatprep.subr.mxu0 0.0
        %3495 = vmatpush1.msra.mxu0 0.0
        %3496 = vmatprep.subr.mxu0 0.0
        %3497 = vmatpush1.msra.mxu0 %v1081
        %3498 = vmatprep.subr.mxu0 0.0
        %3499 = vmatpush2.msra.mxu0 0.0
        %3500 = vmatprep.subr.mxu0 0.0
        %3501 = vmatpush2.msra.mxu0 0.0
        %3502 = vmatprep.subr.mxu0 0.0
        %3503 = vmatpush2.msra.mxu0 0.0
        %3504 = vmatprep.subr.mxu0 0.0
        %3505 = vmatpush2.msra.mxu0 0.0
        %3506 = vmatprep.subr.mxu0 0.0
        %3507 = vmatpush2.msra.mxu0 0.0
        %3508 = vmatprep.subr.mxu0 0.0
        %3509 = vmatpush2.msra.mxu0 0.0
        %3510 = vmatprep.subr.mxu0 0.0
        %3511 = vmatpush2.msra.mxu0 0.0
        %3512 = vmatprep.subr.mxu0 0.0
        %3513 = vmatpush2.msra.mxu0 0.0
        %3514 = vmatprep.subr.mxu0 0.0
        %3515 = vmatpush2.msra.mxu0 0.0
        %3516 = vmatprep.subr.mxu0 0.0
        %3517 = vmatpush2.msra.mxu0 0.0
        %3518 = vmatprep.subr.mxu0 0.0
        %3519 = vmatpush2.msra.mxu0 0.0
        %3520 = vmatprep.subr.mxu0 0.0
        %3521 = vmatpush2.msra.mxu0 0.0
        %3522 = vmatprep.subr.mxu0 0.0
        %3523 = vmatpush2.msra.mxu0 0.0
        %3524 = vmatprep.subr.mxu0 0.0
        %3525 = vmatpush2.msra.mxu0 0.0
        %3526 = vmatprep.subr.mxu0 0.0
        %3527 = vmatpush2.msra.mxu0 0.0
        %3528 = vmatprep.subr.mxu0 0.0
        %3529 = vmatpush2.msra.mxu0 0.0
        %3530 = vmatprep.mubr.f32.mxu0 0.0
        %3531 = vmatmul.mubr.f32.gmra.mxu0 %v3458
        %v3532 = vpop.f32.mrf.mxu0
        %v3533 = vadd.f32 0.0, %v3532
        %v3534 = vpop.f32.mrf.mxu0
        %3535 = vmatprep.mubr.f32.mxu0 0.0
        %3536 = vmatmul.mubr.f32.gmra.mxu0 %v3461
        %v3537 = vpop.f32.mrf.mxu0
        %v3538 = vadd.f32 0.0, %v3537
        %v3539 = vpop.f32.mrf.mxu0
        %3540 = vmatprep.mubr.f32.mxu0 0.0
        %3541 = vmatmul.mubr.f32.gmra.mxu0 %v3464
        %v3542 = vpop.f32.mrf.mxu0
        %v3543 = vadd.f32 0.0, %v3542
        %v3544 = vpop.f32.mrf.mxu0
        %3545 = vdwg.mxu0
        %v3547 = vsel %vm1271, %v3208, 0
        %v3550 = vsel %vm1271, %v3213, 0
        %v3553 = vsel %vm1271, %v3218, 0
        %3555 = vmatprep.subr.mxu0 0.0
        %3556 = vmatpush1.msra.mxu0 0.0
        %3557 = vmatprep.subr.mxu0 0.0
        %3558 = vmatpush1.msra.mxu0 0.0
        %3559 = vmatprep.subr.mxu0 0.0
        %3560 = vmatpush1.msra.mxu0 0.0
        %3561 = vmatprep.subr.mxu0 0.0
        %3562 = vmatpush1.msra.mxu0 0.0
        %3563 = vmatprep.subr.mxu0 0.0
        %3564 = vmatpush1.msra.mxu0 0.0
        %3565 = vmatprep.subr.mxu0 0.0
        %3566 = vmatpush1.msra.mxu0 0.0
        %3567 = vmatprep.subr.mxu0 0.0
        %3568 = vmatpush1.msra.mxu0 0.0
        %3569 = vmatprep.subr.mxu0 0.0
        %3570 = vmatpush1.msra.mxu0 0.0
        %3571 = vmatprep.subr.mxu0 0.0
        %3572 = vmatpush1.msra.mxu0 0.0
        %3573 = vmatprep.subr.mxu0 0.0
        %3574 = vmatpush1.msra.mxu0 0.0
        %3575 = vmatprep.subr.mxu0 0.0
        %3576 = vmatpush1.msra.mxu0 0.0
        %3577 = vmatprep.subr.mxu0 0.0
        %3578 = vmatpush1.msra.mxu0 0.0
        %3579 = vmatprep.subr.mxu0 0.0
        %3580 = vmatpush1.msra.mxu0 0.0
        %3581 = vmatprep.subr.mxu0 0.0
        %3582 = vmatpush1.msra.mxu0 0.0
        %3583 = vmatprep.subr.mxu0 0.0
        %3584 = vmatpush1.msra.mxu0 0.0
        %3585 = vmatprep.subr.mxu0 0.0
        %3586 = vmatpush1.msra.mxu0 %v1080
        %3587 = vmatprep.subr.mxu0 0.0
        %3588 = vmatpush2.msra.mxu0 0.0
        %3589 = vmatprep.subr.mxu0 0.0
        %3590 = vmatpush2.msra.mxu0 0.0
        %3591 = vmatprep.subr.mxu0 0.0
        %3592 = vmatpush2.msra.mxu0 0.0
        %3593 = vmatprep.subr.mxu0 0.0
        %3594 = vmatpush2.msra.mxu0 0.0
        %3595 = vmatprep.subr.mxu0 0.0
        %3596 = vmatpush2.msra.mxu0 0.0
        %3597 = vmatprep.subr.mxu0 0.0
        %3598 = vmatpush2.msra.mxu0 0.0
        %3599 = vmatprep.subr.mxu0 0.0
        %3600 = vmatpush2.msra.mxu0 0.0
        %3601 = vmatprep.subr.mxu0 0.0
        %3602 = vmatpush2.msra.mxu0 0.0
        %3603 = vmatprep.subr.mxu0 0.0
        %3604 = vmatpush2.msra.mxu0 0.0
        %3605 = vmatprep.subr.mxu0 0.0
        %3606 = vmatpush2.msra.mxu0 0.0
        %3607 = vmatprep.subr.mxu0 0.0
        %3608 = vmatpush2.msra.mxu0 0.0
        %3609 = vmatprep.subr.mxu0 0.0
        %3610 = vmatpush2.msra.mxu0 0.0
        %3611 = vmatprep.subr.mxu0 0.0
        %3612 = vmatpush2.msra.mxu0 0.0
        %3613 = vmatprep.subr.mxu0 0.0
        %3614 = vmatpush2.msra.mxu0 0.0
        %3615 = vmatprep.subr.mxu0 0.0
        %3616 = vmatpush2.msra.mxu0 0.0
        %3617 = vmatprep.subr.mxu0 0.0
        %3618 = vmatpush2.msra.mxu0 0.0
        %3619 = vmatprep.mubr.f32.mxu0 0.0
        %3620 = vmatmul.mubr.f32.gmra.mxu0 %v3547
        %v3621 = vpop.f32.mrf.mxu0
        %v3622 = vadd.f32 %v3533, %v3621
        %v3623 = vpop.f32.mrf.mxu0
        %3624 = vmatprep.mubr.f32.mxu0 0.0
        %3625 = vmatmul.mubr.f32.gmra.mxu0 %v3550
        %v3626 = vpop.f32.mrf.mxu0
        %v3627 = vadd.f32 %v3538, %v3626
        %v3628 = vpop.f32.mrf.mxu0
        %3629 = vmatprep.mubr.f32.mxu0 0.0
        %3630 = vmatmul.mubr.f32.gmra.mxu0 %v3553
        %v3631 = vpop.f32.mrf.mxu0
        %v3632 = vadd.f32 %v3543, %v3631
        %v3633 = vpop.f32.mrf.mxu0
        %3634 = vdwg.mxu0
        %3635 = vrot.lane.b32.xlu0 %v2982, 112
        %v3636 = vpop.permute.xlu0 %3635
        %3637 = vrot.lane.b32.xlu0 %v2983, 112
        %v3638 = vpop.permute.xlu0 %3637
        %3639 = vrot.lane.b32.xlu0 %v2984, 112
        %v3640 = vpop.permute.xlu0 %3639
        %3641 = vrot.lane.b32.xlu0 %v2969, 80
        %v3642 = vpop.permute.xlu0 %3641
        %3643 = vrot.lane.b32.xlu0 %v2974, 80
        %v3644 = vpop.permute.xlu0 %3643
        %3645 = vrot.lane.b32.xlu0 %v2979, 80
        %v3646 = vpop.permute.xlu0 %3645
        %v3647 = vsel %vm1271, %v3636, 0
        %v3649 = vsel %vm1271, %v3638, 0
        %v3651 = vsel %vm1271, %v3640, 0
        %v3653 = vsel %vm1271, %v3642, 0
        %v3655 = vsel %vm1271, %v3644, 0
        %v3657 = vsel %vm1271, %v3646, 0
        %3659 = vmatprep.subr.mxu0 0.0
        %3660 = vmatpush1.xpose.msra.mxu0 0.0
        %3661 = vmatprep.subr.mxu0 0.0
        %3662 = vmatpush1.xpose.msra.mxu0 0.0
        %3663 = vmatprep.subr.mxu0 0.0
        %3664 = vmatpush1.xpose.msra.mxu0 0.0
        %3665 = vmatprep.subr.mxu0 0.0
        %3666 = vmatpush1.xpose.msra.mxu0 0.0
        %3667 = vmatprep.subr.mxu0 0.0
        %3668 = vmatpush1.xpose.msra.mxu0 0.0
        %3669 = vmatprep.subr.mxu0 0.0
        %3670 = vmatpush1.xpose.msra.mxu0 0.0
        %3671 = vmatprep.subr.mxu0 0.0
        %3672 = vmatpush1.xpose.msra.mxu0 0.0
        %3673 = vmatprep.subr.mxu0 0.0
        %3674 = vmatpush1.xpose.msra.mxu0 0.0
        %3675 = vmatprep.subr.mxu0 0.0
        %3676 = vmatpush1.xpose.msra.mxu0 0.0
        %3677 = vmatprep.subr.mxu0 0.0
        %3678 = vmatpush1.xpose.msra.mxu0 0.0
        %3679 = vmatprep.subr.mxu0 0.0
        %3680 = vmatpush1.xpose.msra.mxu0 0.0
        %3681 = vmatprep.subr.mxu0 0.0
        %3682 = vmatpush1.xpose.msra.mxu0 0.0
        %3683 = vmatprep.subr.mxu0 0.0
        %3684 = vmatpush1.xpose.msra.mxu0 0.0
        %3685 = vmatprep.subr.mxu0 0.0
        %3686 = vmatpush1.xpose.msra.mxu0 %v3657
        %3687 = vmatprep.subr.mxu0 0.0
        %3688 = vmatpush1.xpose.msra.mxu0 %v3655
        %3689 = vmatprep.subr.mxu0 0.0
        %3690 = vmatpush1.xpose.msra.mxu0 %v3653
        %3691 = vmatprep.subr.mxu0 0.0
        %3692 = vmatpush2.xpose.msra.mxu0 0.0
        %3693 = vmatprep.subr.mxu0 0.0
        %3694 = vmatpush2.xpose.msra.mxu0 0.0
        %3695 = vmatprep.subr.mxu0 0.0
        %3696 = vmatpush2.xpose.msra.mxu0 0.0
        %3697 = vmatprep.subr.mxu0 0.0
        %3698 = vmatpush2.xpose.msra.mxu0 0.0
        %3699 = vmatprep.subr.mxu0 0.0
        %3700 = vmatpush2.xpose.msra.mxu0 0.0
        %3701 = vmatprep.subr.mxu0 0.0
        %3702 = vmatpush2.xpose.msra.mxu0 0.0
        %3703 = vmatprep.subr.mxu0 0.0
        %3704 = vmatpush2.xpose.msra.mxu0 0.0
        %3705 = vmatprep.subr.mxu0 0.0
        %3706 = vmatpush2.xpose.msra.mxu0 0.0
        %3707 = vmatprep.subr.mxu0 0.0
        %3708 = vmatpush2.xpose.msra.mxu0 0.0
        %3709 = vmatprep.subr.mxu0 0.0
        %3710 = vmatpush2.xpose.msra.mxu0 0.0
        %3711 = vmatprep.subr.mxu0 0.0
        %3712 = vmatpush2.xpose.msra.mxu0 0.0
        %3713 = vmatprep.subr.mxu0 0.0
        %3714 = vmatpush2.xpose.msra.mxu0 0.0
        %3715 = vmatprep.subr.mxu0 0.0
        %3716 = vmatpush2.xpose.msra.mxu0 0.0
        %3717 = vmatprep.subr.mxu0 0.0
        %3718 = vmatpush2.xpose.msra.mxu0 0.0
        %3719 = vmatprep.subr.mxu0 0.0
        %3720 = vmatpush2.xpose.msra.mxu0 0.0
        %3721 = vmatprep.subr.mxu0 0.0
        %3722 = vmatpush2.xpose.msra.mxu0 0.0
        %3723 = vmatprep.mubr.f32.mxu0 0.0
        %3724 = vmatmul.mubr.f32.gmra.mxu0 %v3647
        %v3725 = vpop.f32.mrf.mxu0
        %v3726 = vadd.f32 0.0, %v3725
        %v3727 = vpop.f32.mrf.mxu0
        %3728 = vmatprep.mubr.f32.mxu0 0.0
        %3729 = vmatmul.mubr.f32.gmra.mxu0 %v3649
        %v3730 = vpop.f32.mrf.mxu0
        %v3731 = vadd.f32 0.0, %v3730
        %v3732 = vpop.f32.mrf.mxu0
        %3733 = vmatprep.mubr.f32.mxu0 0.0
        %3734 = vmatmul.mubr.f32.gmra.mxu0 %v3651
        %v3735 = vpop.f32.mrf.mxu0
        %v3736 = vadd.f32 0.0, %v3735
        %v3737 = vpop.f32.mrf.mxu0
        %3738 = vdwg.mxu0
        %v3739 = vsel %vm1367, %v3726, -inf
        %3740 = vmax.xlane.f32.xlu0 %v3739
        %v3741 = vpop.xlane.xlu0 %3740
        %v3742 = vsel %vm1367, %v3731, -inf
        %3743 = vmax.xlane.f32.xlu0 %v3742
        %v3744 = vpop.xlane.xlu0 %3743
        %v3745 = vsel %vm1374, %v3736, -inf
        %3746 = vmax.xlane.f32.xlu0 %v3745
        %v3747 = vpop.xlane.xlu0 %3746
        %v3748 = vsub.f32 %v3726, %v3741
        %v3749 = vsub.f32 %v3731, %v3744
        %v3750 = vsub.f32 %v3736, %v3747
        %v3751 = vmul.f32 %v3748, 1.442695
        %v3752 = vpow.pop %v3751
        %v3753 = vmul.f32 %v3749, 1.442695
        %v3754 = vpow.pop %v3753
        %v3755 = vmul.f32 %v3750, 1.442695
        %v3756 = vpow.pop %v3755
        %v3757 = vsel %vm1367, %v3752, 0.0
        %3758 = vadd.xlane.f32.xlu0 %v3757
        %v3759 = vpop.xlane.xlu0 %3758
        %v3760 = vsel %vm1367, %v3754, 0.0
        %3761 = vadd.xlane.f32.xlu0 %v3760
        %v3762 = vpop.xlane.xlu0 %3761
        %v3763 = vsel %vm1374, %v3756, 0.0
        %3764 = vadd.xlane.f32.xlu0 %v3763
        %v3765 = vpop.xlane.xlu0 %3764
        %v3766 = vrcp.pop %v3759
        %v3767 = vrcp.pop %v3762
        %v3768 = vrcp.pop %v3765
        %v3769 = vmul.f32 %v3752, %v3766
        %v3770 = vmul.f32 %v3754, %v3767
        %v3771 = vmul.f32 %v3756, %v3768
        %3772 = vrot.lane.b32.xlu0 %v2969, 48
        %v3773 = vpop.permute.xlu0 %3772
        %3774 = vrot.lane.b32.xlu0 %v2974, 48
        %v3775 = vpop.permute.xlu0 %3774
        %3776 = vrot.lane.b32.xlu0 %v2979, 48
        %v3777 = vpop.permute.xlu0 %3776
        %v3781 = vsel %vm1367, %v3769, 0
        %v3784 = vsel %vm1367, %v3770, 0
        %v3787 = vsel %vm1367, %v3771, 0
        %v3789 = vsel %vm1419, %v3777, 0
        %3791 = vmatprep.subr.mxu0 0.0
        %3792 = vmatpush1.msra.mxu0 0.0
        %3793 = vmatprep.subr.mxu0 0.0
        %3794 = vmatpush1.msra.mxu0 0.0
        %3795 = vmatprep.subr.mxu0 0.0
        %3796 = vmatpush1.msra.mxu0 0.0
        %3797 = vmatprep.subr.mxu0 0.0
        %3798 = vmatpush1.msra.mxu0 0.0
        %3799 = vmatprep.subr.mxu0 0.0
        %3800 = vmatpush1.msra.mxu0 0.0
        %3801 = vmatprep.subr.mxu0 0.0
        %3802 = vmatpush1.msra.mxu0 0.0
        %3803 = vmatprep.subr.mxu0 0.0
        %3804 = vmatpush1.msra.mxu0 0.0
        %3805 = vmatprep.subr.mxu0 0.0
        %3806 = vmatpush1.msra.mxu0 0.0
        %3807 = vmatprep.subr.mxu0 0.0
        %3808 = vmatpush1.msra.mxu0 0.0
        %3809 = vmatprep.subr.mxu0 0.0
        %3810 = vmatpush1.msra.mxu0 0.0
        %3811 = vmatprep.subr.mxu0 0.0
        %3812 = vmatpush1.msra.mxu0 0.0
        %3813 = vmatprep.subr.mxu0 0.0
        %3814 = vmatpush1.msra.mxu0 0.0
        %3815 = vmatprep.subr.mxu0 0.0
        %3816 = vmatpush1.msra.mxu0 0.0
        %3817 = vmatprep.subr.mxu0 0.0
        %3818 = vmatpush1.msra.mxu0 %v3789
        %3819 = vmatprep.subr.mxu0 0.0
        %3820 = vmatpush1.msra.mxu0 %v3775
        %3821 = vmatprep.subr.mxu0 0.0
        %3822 = vmatpush1.msra.mxu0 %v3773
        %3823 = vmatprep.subr.mxu0 0.0
        %3824 = vmatpush2.msra.mxu0 0.0
        %3825 = vmatprep.subr.mxu0 0.0
        %3826 = vmatpush2.msra.mxu0 0.0
        %3827 = vmatprep.subr.mxu0 0.0
        %3828 = vmatpush2.msra.mxu0 0.0
        %3829 = vmatprep.subr.mxu0 0.0
        %3830 = vmatpush2.msra.mxu0 0.0
        %3831 = vmatprep.subr.mxu0 0.0
        %3832 = vmatpush2.msra.mxu0 0.0
        %3833 = vmatprep.subr.mxu0 0.0
        %3834 = vmatpush2.msra.mxu0 0.0
        %3835 = vmatprep.subr.mxu0 0.0
        %3836 = vmatpush2.msra.mxu0 0.0
        %3837 = vmatprep.subr.mxu0 0.0
        %3838 = vmatpush2.msra.mxu0 0.0
        %3839 = vmatprep.subr.mxu0 0.0
        %3840 = vmatpush2.msra.mxu0 0.0
        %3841 = vmatprep.subr.mxu0 0.0
        %3842 = vmatpush2.msra.mxu0 0.0
        %3843 = vmatprep.subr.mxu0 0.0
        %3844 = vmatpush2.msra.mxu0 0.0
        %3845 = vmatprep.subr.mxu0 0.0
        %3846 = vmatpush2.msra.mxu0 0.0
        %3847 = vmatprep.subr.mxu0 0.0
        %3848 = vmatpush2.msra.mxu0 0.0
        %3849 = vmatprep.subr.mxu0 0.0
        %3850 = vmatpush2.msra.mxu0 0.0
        %3851 = vmatprep.subr.mxu0 0.0
        %3852 = vmatpush2.msra.mxu0 0.0
        %3853 = vmatprep.subr.mxu0 0.0
        %3854 = vmatpush2.msra.mxu0 0.0
        %3855 = vmatprep.mubr.f32.mxu0 0.0
        %3856 = vmatmul.mubr.f32.gmra.mxu0 %v3781
        %v3857 = vpop.f32.mrf.mxu0
        %v3858 = vadd.f32 0.0, %v3857
        %v3859 = vpop.f32.mrf.mxu0
        %3860 = vmatprep.mubr.f32.mxu0 0.0
        %3861 = vmatmul.mubr.f32.gmra.mxu0 %v3784
        %v3862 = vpop.f32.mrf.mxu0
        %v3863 = vadd.f32 0.0, %v3862
        %v3864 = vpop.f32.mrf.mxu0
        %3865 = vmatprep.mubr.f32.mxu0 0.0
        %3866 = vmatmul.mubr.f32.gmra.mxu0 %v3787
        %v3867 = vpop.f32.mrf.mxu0
        %v3868 = vadd.f32 0.0, %v3867
        %v3869 = vpop.f32.mrf.mxu0
        %3870 = vdwg.mxu0
        %v3872 = vsel %vm1271, %v3858, 0
        %v3875 = vsel %vm1271, %v3863, 0
        %v3878 = vsel %vm1271, %v3868, 0
        %3880 = vmatprep.subr.mxu0 0.0
        %3881 = vmatpush1.msra.mxu0 0.0
        %3882 = vmatprep.subr.mxu0 0.0
        %3883 = vmatpush1.msra.mxu0 0.0
        %3884 = vmatprep.subr.mxu0 0.0
        %3885 = vmatpush1.msra.mxu0 0.0
        %3886 = vmatprep.subr.mxu0 0.0
        %3887 = vmatpush1.msra.mxu0 0.0
        %3888 = vmatprep.subr.mxu0 0.0
        %3889 = vmatpush1.msra.mxu0 0.0
        %3890 = vmatprep.subr.mxu0 0.0
        %3891 = vmatpush1.msra.mxu0 0.0
        %3892 = vmatprep.subr.mxu0 0.0
        %3893 = vmatpush1.msra.mxu0 0.0
        %3894 = vmatprep.subr.mxu0 0.0
        %3895 = vmatpush1.msra.mxu0 0.0
        %3896 = vmatprep.subr.mxu0 0.0
        %3897 = vmatpush1.msra.mxu0 0.0
        %3898 = vmatprep.subr.mxu0 0.0
        %3899 = vmatpush1.msra.mxu0 0.0
        %3900 = vmatprep.subr.mxu0 0.0
        %3901 = vmatpush1.msra.mxu0 0.0
        %3902 = vmatprep.subr.mxu0 0.0
        %3903 = vmatpush1.msra.mxu0 0.0
        %3904 = vmatprep.subr.mxu0 0.0
        %3905 = vmatpush1.msra.mxu0 0.0
        %3906 = vmatprep.subr.mxu0 0.0
        %3907 = vmatpush1.msra.mxu0 0.0
        %3908 = vmatprep.subr.mxu0 0.0
        %3909 = vmatpush1.msra.mxu0 0.0
        %3910 = vmatprep.subr.mxu0 0.0
        %3911 = vmatpush1.msra.mxu0 %v1082
        %3912 = vmatprep.subr.mxu0 0.0
        %3913 = vmatpush2.msra.mxu0 0.0
        %3914 = vmatprep.subr.mxu0 0.0
        %3915 = vmatpush2.msra.mxu0 0.0
        %3916 = vmatprep.subr.mxu0 0.0
        %3917 = vmatpush2.msra.mxu0 0.0
        %3918 = vmatprep.subr.mxu0 0.0
        %3919 = vmatpush2.msra.mxu0 0.0
        %3920 = vmatprep.subr.mxu0 0.0
        %3921 = vmatpush2.msra.mxu0 0.0
        %3922 = vmatprep.subr.mxu0 0.0
        %3923 = vmatpush2.msra.mxu0 0.0
        %3924 = vmatprep.subr.mxu0 0.0
        %3925 = vmatpush2.msra.mxu0 0.0
        %3926 = vmatprep.subr.mxu0 0.0
        %3927 = vmatpush2.msra.mxu0 0.0
        %3928 = vmatprep.subr.mxu0 0.0
        %3929 = vmatpush2.msra.mxu0 0.0
        %3930 = vmatprep.subr.mxu0 0.0
        %3931 = vmatpush2.msra.mxu0 0.0
        %3932 = vmatprep.subr.mxu0 0.0
        %3933 = vmatpush2.msra.mxu0 0.0
        %3934 = vmatprep.subr.mxu0 0.0
        %3935 = vmatpush2.msra.mxu0 0.0
        %3936 = vmatprep.subr.mxu0 0.0
        %3937 = vmatpush2.msra.mxu0 0.0
        %3938 = vmatprep.subr.mxu0 0.0
        %3939 = vmatpush2.msra.mxu0 0.0
        %3940 = vmatprep.subr.mxu0 0.0
        %3941 = vmatpush2.msra.mxu0 0.0
        %3942 = vmatprep.subr.mxu0 0.0
        %3943 = vmatpush2.msra.mxu0 0.0
        %3944 = vmatprep.mubr.f32.mxu0 0.0
        %3945 = vmatmul.mubr.f32.gmra.mxu0 %v3872
        %v3946 = vpop.f32.mrf.mxu0
        %v3947 = vadd.f32 0.0, %v3946
        %v3948 = vpop.f32.mrf.mxu0
        %3949 = vmatprep.mubr.f32.mxu0 0.0
        %3950 = vmatmul.mubr.f32.gmra.mxu0 %v3875
        %v3951 = vpop.f32.mrf.mxu0
        %v3952 = vadd.f32 0.0, %v3951
        %v3953 = vpop.f32.mrf.mxu0
        %3954 = vmatprep.mubr.f32.mxu0 0.0
        %3955 = vmatmul.mubr.f32.gmra.mxu0 %v3878
        %v3956 = vpop.f32.mrf.mxu0
        %v3957 = vadd.f32 0.0, %v3956
        %v3958 = vpop.f32.mrf.mxu0
        %3959 = vdwg.mxu0
        %v3960 = vadd.f32 %v3622, %v3947
        %v3961 = vadd.f32 %v3627, %v3952
        %v3962 = vadd.f32 %v3632, %v3957
        %3963 = vrot.lane.b32.xlu0 %v2982, 104
        %v3964 = vpop.permute.xlu0 %3963
        %3965 = vrot.lane.b32.xlu0 %v2983, 104
        %v3966 = vpop.permute.xlu0 %3965
        %3967 = vrot.lane.b32.xlu0 %v2984, 104
        %v3968 = vpop.permute.xlu0 %3967
        %3969 = vrot.lane.b32.xlu0 %v2969, 72
        %v3970 = vpop.permute.xlu0 %3969
        %3971 = vrot.lane.b32.xlu0 %v2974, 72
        %v3972 = vpop.permute.xlu0 %3971
        %3973 = vrot.lane.b32.xlu0 %v2979, 72
        %v3974 = vpop.permute.xlu0 %3973
        %v3975 = vsel %vm1271, %v3964, 0
        %v3977 = vsel %vm1271, %v3966, 0
        %v3979 = vsel %vm1271, %v3968, 0
        %v3981 = vsel %vm1271, %v3970, 0
        %v3983 = vsel %vm1271, %v3972, 0
        %v3985 = vsel %vm1271, %v3974, 0
        %3987 = vmatprep.subr.mxu0 0.0
        %3988 = vmatpush1.xpose.msra.mxu0 0.0
        %3989 = vmatprep.subr.mxu0 0.0
        %3990 = vmatpush1.xpose.msra.mxu0 0.0
        %3991 = vmatprep.subr.mxu0 0.0
        %3992 = vmatpush1.xpose.msra.mxu0 0.0
        %3993 = vmatprep.subr.mxu0 0.0
        %3994 = vmatpush1.xpose.msra.mxu0 0.0
        %3995 = vmatprep.subr.mxu0 0.0
        %3996 = vmatpush1.xpose.msra.mxu0 0.0
        %3997 = vmatprep.subr.mxu0 0.0
        %3998 = vmatpush1.xpose.msra.mxu0 0.0
        %3999 = vmatprep.subr.mxu0 0.0
        %4000 = vmatpush1.xpose.msra.mxu0 0.0
        %4001 = vmatprep.subr.mxu0 0.0
        %4002 = vmatpush1.xpose.msra.mxu0 0.0
        %4003 = vmatprep.subr.mxu0 0.0
        %4004 = vmatpush1.xpose.msra.mxu0 0.0
        %4005 = vmatprep.subr.mxu0 0.0
        %4006 = vmatpush1.xpose.msra.mxu0 0.0
        %4007 = vmatprep.subr.mxu0 0.0
        %4008 = vmatpush1.xpose.msra.mxu0 0.0
        %4009 = vmatprep.subr.mxu0 0.0
        %4010 = vmatpush1.xpose.msra.mxu0 0.0
        %4011 = vmatprep.subr.mxu0 0.0
        %4012 = vmatpush1.xpose.msra.mxu0 0.0
        %4013 = vmatprep.subr.mxu0 0.0
        %4014 = vmatpush1.xpose.msra.mxu0 %v3985
        %4015 = vmatprep.subr.mxu0 0.0
        %4016 = vmatpush1.xpose.msra.mxu0 %v3983
        %4017 = vmatprep.subr.mxu0 0.0
        %4018 = vmatpush1.xpose.msra.mxu0 %v3981
        %4019 = vmatprep.subr.mxu0 0.0
        %4020 = vmatpush2.xpose.msra.mxu0 0.0
        %4021 = vmatprep.subr.mxu0 0.0
        %4022 = vmatpush2.xpose.msra.mxu0 0.0
        %4023 = vmatprep.subr.mxu0 0.0
        %4024 = vmatpush2.xpose.msra.mxu0 0.0
        %4025 = vmatprep.subr.mxu0 0.0
        %4026 = vmatpush2.xpose.msra.mxu0 0.0
        %4027 = vmatprep.subr.mxu0 0.0
        %4028 = vmatpush2.xpose.msra.mxu0 0.0
        %4029 = vmatprep.subr.mxu0 0.0
        %4030 = vmatpush2.xpose.msra.mxu0 0.0
        %4031 = vmatprep.subr.mxu0 0.0
        %4032 = vmatpush2.xpose.msra.mxu0 0.0
        %4033 = vmatprep.subr.mxu0 0.0
        %4034 = vmatpush2.xpose.msra.mxu0 0.0
        %4035 = vmatprep.subr.mxu0 0.0
        %4036 = vmatpush2.xpose.msra.mxu0 0.0
        %4037 = vmatprep.subr.mxu0 0.0
        %4038 = vmatpush2.xpose.msra.mxu0 0.0
        %4039 = vmatprep.subr.mxu0 0.0
        %4040 = vmatpush2.xpose.msra.mxu0 0.0
        %4041 = vmatprep.subr.mxu0 0.0
        %4042 = vmatpush2.xpose.msra.mxu0 0.0
        %4043 = vmatprep.subr.mxu0 0.0
        %4044 = vmatpush2.xpose.msra.mxu0 0.0
        %4045 = vmatprep.subr.mxu0 0.0
        %4046 = vmatpush2.xpose.msra.mxu0 0.0
        %4047 = vmatprep.subr.mxu0 0.0
        %4048 = vmatpush2.xpose.msra.mxu0 0.0
        %4049 = vmatprep.subr.mxu0 0.0
        %4050 = vmatpush2.xpose.msra.mxu0 0.0
        %4051 = vmatprep.mubr.f32.mxu0 0.0
        %4052 = vmatmul.mubr.f32.gmra.mxu0 %v3975
        %v4053 = vpop.f32.mrf.mxu0
        %v4054 = vadd.f32 0.0, %v4053
        %v4055 = vpop.f32.mrf.mxu0
        %4056 = vmatprep.mubr.f32.mxu0 0.0
        %4057 = vmatmul.mubr.f32.gmra.mxu0 %v3977
        %v4058 = vpop.f32.mrf.mxu0
        %v4059 = vadd.f32 0.0, %v4058
        %v4060 = vpop.f32.mrf.mxu0
        %4061 = vmatprep.mubr.f32.mxu0 0.0
        %4062 = vmatmul.mubr.f32.gmra.mxu0 %v3979
        %v4063 = vpop.f32.mrf.mxu0
        %v4064 = vadd.f32 0.0, %v4063
        %v4065 = vpop.f32.mrf.mxu0
        %4066 = vdwg.mxu0
        %v4067 = vsel %vm1367, %v4054, -inf
        %4068 = vmax.xlane.f32.xlu0 %v4067
        %v4069 = vpop.xlane.xlu0 %4068
        %v4070 = vsel %vm1367, %v4059, -inf
        %4071 = vmax.xlane.f32.xlu0 %v4070
        %v4072 = vpop.xlane.xlu0 %4071
        %v4073 = vsel %vm1374, %v4064, -inf
        %4074 = vmax.xlane.f32.xlu0 %v4073
        %v4075 = vpop.xlane.xlu0 %4074
        %v4076 = vsub.f32 %v4054, %v4069
        %v4077 = vsub.f32 %v4059, %v4072
        %v4078 = vsub.f32 %v4064, %v4075
        %v4079 = vmul.f32 %v4076, 1.442695
        %v4080 = vpow.pop %v4079
        %v4081 = vmul.f32 %v4077, 1.442695
        %v4082 = vpow.pop %v4081
        %v4083 = vmul.f32 %v4078, 1.442695
        %v4084 = vpow.pop %v4083
        %v4085 = vsel %vm1367, %v4080, 0.0
        %4086 = vadd.xlane.f32.xlu0 %v4085
        %v4087 = vpop.xlane.xlu0 %4086
        %v4088 = vsel %vm1367, %v4082, 0.0
        %4089 = vadd.xlane.f32.xlu0 %v4088
        %v4090 = vpop.xlane.xlu0 %4089
        %v4091 = vsel %vm1374, %v4084, 0.0
        %4092 = vadd.xlane.f32.xlu0 %v4091
        %v4093 = vpop.xlane.xlu0 %4092
        %v4094 = vrcp.pop %v4087
        %v4095 = vrcp.pop %v4090
        %v4096 = vrcp.pop %v4093
        %v4097 = vmul.f32 %v4080, %v4094
        %v4098 = vmul.f32 %v4082, %v4095
        %v4099 = vmul.f32 %v4084, %v4096
        %4100 = vrot.lane.b32.xlu0 %v2969, 40
        %v4101 = vpop.permute.xlu0 %4100
        %4102 = vrot.lane.b32.xlu0 %v2974, 40
        %v4103 = vpop.permute.xlu0 %4102
        %4104 = vrot.lane.b32.xlu0 %v2979, 40
        %v4105 = vpop.permute.xlu0 %4104
        %v4109 = vsel %vm1367, %v4097, 0
        %v4112 = vsel %vm1367, %v4098, 0
        %v4115 = vsel %vm1367, %v4099, 0
        %v4117 = vsel %vm1419, %v4105, 0
        %4119 = vmatprep.subr.mxu0 0.0
        %4120 = vmatpush1.msra.mxu0 0.0
        %4121 = vmatprep.subr.mxu0 0.0
        %4122 = vmatpush1.msra.mxu0 0.0
        %4123 = vmatprep.subr.mxu0 0.0
        %4124 = vmatpush1.msra.mxu0 0.0
        %4125 = vmatprep.subr.mxu0 0.0
        %4126 = vmatpush1.msra.mxu0 0.0
        %4127 = vmatprep.subr.mxu0 0.0
        %4128 = vmatpush1.msra.mxu0 0.0
        %4129 = vmatprep.subr.mxu0 0.0
        %4130 = vmatpush1.msra.mxu0 0.0
        %4131 = vmatprep.subr.mxu0 0.0
        %4132 = vmatpush1.msra.mxu0 0.0
        %4133 = vmatprep.subr.mxu0 0.0
        %4134 = vmatpush1.msra.mxu0 0.0
        %4135 = vmatprep.subr.mxu0 0.0
        %4136 = vmatpush1.msra.mxu0 0.0
        %4137 = vmatprep.subr.mxu0 0.0
        %4138 = vmatpush1.msra.mxu0 0.0
        %4139 = vmatprep.subr.mxu0 0.0
        %4140 = vmatpush1.msra.mxu0 0.0
        %4141 = vmatprep.subr.mxu0 0.0
        %4142 = vmatpush1.msra.mxu0 0.0
        %4143 = vmatprep.subr.mxu0 0.0
        %4144 = vmatpush1.msra.mxu0 0.0
        %4145 = vmatprep.subr.mxu0 0.0
        %4146 = vmatpush1.msra.mxu0 %v4117
        %4147 = vmatprep.subr.mxu0 0.0
        %4148 = vmatpush1.msra.mxu0 %v4103
        %4149 = vmatprep.subr.mxu0 0.0
        %4150 = vmatpush1.msra.mxu0 %v4101
        %4151 = vmatprep.subr.mxu0 0.0
        %4152 = vmatpush2.msra.mxu0 0.0
        %4153 = vmatprep.subr.mxu0 0.0
        %4154 = vmatpush2.msra.mxu0 0.0
        %4155 = vmatprep.subr.mxu0 0.0
        %4156 = vmatpush2.msra.mxu0 0.0
        %4157 = vmatprep.subr.mxu0 0.0
        %4158 = vmatpush2.msra.mxu0 0.0
        %4159 = vmatprep.subr.mxu0 0.0
        %4160 = vmatpush2.msra.mxu0 0.0
        %4161 = vmatprep.subr.mxu0 0.0
        %4162 = vmatpush2.msra.mxu0 0.0
        %4163 = vmatprep.subr.mxu0 0.0
        %4164 = vmatpush2.msra.mxu0 0.0
        %4165 = vmatprep.subr.mxu0 0.0
        %4166 = vmatpush2.msra.mxu0 0.0
        %4167 = vmatprep.subr.mxu0 0.0
        %4168 = vmatpush2.msra.mxu0 0.0
        %4169 = vmatprep.subr.mxu0 0.0
        %4170 = vmatpush2.msra.mxu0 0.0
        %4171 = vmatprep.subr.mxu0 0.0
        %4172 = vmatpush2.msra.mxu0 0.0
        %4173 = vmatprep.subr.mxu0 0.0
        %4174 = vmatpush2.msra.mxu0 0.0
        %4175 = vmatprep.subr.mxu0 0.0
        %4176 = vmatpush2.msra.mxu0 0.0
        %4177 = vmatprep.subr.mxu0 0.0
        %4178 = vmatpush2.msra.mxu0 0.0
        %4179 = vmatprep.subr.mxu0 0.0
        %4180 = vmatpush2.msra.mxu0 0.0
        %4181 = vmatprep.subr.mxu0 0.0
        %4182 = vmatpush2.msra.mxu0 0.0
        %4183 = vmatprep.mubr.f32.mxu0 0.0
        %4184 = vmatmul.mubr.f32.gmra.mxu0 %v4109
        %v4185 = vpop.f32.mrf.mxu0
        %v4186 = vadd.f32 0.0, %v4185
        %v4187 = vpop.f32.mrf.mxu0
        %4188 = vmatprep.mubr.f32.mxu0 0.0
        %4189 = vmatmul.mubr.f32.gmra.mxu0 %v4112
        %v4190 = vpop.f32.mrf.mxu0
        %v4191 = vadd.f32 0.0, %v4190
        %v4192 = vpop.f32.mrf.mxu0
        %4193 = vmatprep.mubr.f32.mxu0 0.0
        %4194 = vmatmul.mubr.f32.gmra.mxu0 %v4115
        %v4195 = vpop.f32.mrf.mxu0
        %v4196 = vadd.f32 0.0, %v4195
        %v4197 = vpop.f32.mrf.mxu0
        %4198 = vdwg.mxu0
        %v4200 = vsel %vm1271, %v4186, 0
        %v4203 = vsel %vm1271, %v4191, 0
        %v4206 = vsel %vm1271, %v4196, 0
        %4208 = vmatprep.subr.mxu0 0.0
        %4209 = vmatpush1.msra.mxu0 0.0
        %4210 = vmatprep.subr.mxu0 0.0
        %4211 = vmatpush1.msra.mxu0 0.0
        %4212 = vmatprep.subr.mxu0 0.0
        %4213 = vmatpush1.msra.mxu0 0.0
        %4214 = vmatprep.subr.mxu0 0.0
        %4215 = vmatpush1.msra.mxu0 0.0
        %4216 = vmatprep.subr.mxu0 0.0
        %4217 = vmatpush1.msra.mxu0 0.0
        %4218 = vmatprep.subr.mxu0 0.0
        %4219 = vmatpush1.msra.mxu0 0.0
        %4220 = vmatprep.subr.mxu0 0.0
        %4221 = vmatpush1.msra.mxu0 0.0
        %4222 = vmatprep.subr.mxu0 0.0
        %4223 = vmatpush1.msra.mxu0 0.0
        %4224 = vmatprep.subr.mxu0 0.0
        %4225 = vmatpush1.msra.mxu0 0.0
        %4226 = vmatprep.subr.mxu0 0.0
        %4227 = vmatpush1.msra.mxu0 0.0
        %4228 = vmatprep.subr.mxu0 0.0
        %4229 = vmatpush1.msra.mxu0 0.0
        %4230 = vmatprep.subr.mxu0 0.0
        %4231 = vmatpush1.msra.mxu0 0.0
        %4232 = vmatprep.subr.mxu0 0.0
        %4233 = vmatpush1.msra.mxu0 0.0
        %4234 = vmatprep.subr.mxu0 0.0
        %4235 = vmatpush1.msra.mxu0 0.0
        %4236 = vmatprep.subr.mxu0 0.0
        %4237 = vmatpush1.msra.mxu0 0.0
        %4238 = vmatprep.subr.mxu0 0.0
        %4239 = vmatpush1.msra.mxu0 %v1083
        %4240 = vmatprep.subr.mxu0 0.0
        %4241 = vmatpush2.msra.mxu0 0.0
        %4242 = vmatprep.subr.mxu0 0.0
        %4243 = vmatpush2.msra.mxu0 0.0
        %4244 = vmatprep.subr.mxu0 0.0
        %4245 = vmatpush2.msra.mxu0 0.0
        %4246 = vmatprep.subr.mxu0 0.0
        %4247 = vmatpush2.msra.mxu0 0.0
        %4248 = vmatprep.subr.mxu0 0.0
        %4249 = vmatpush2.msra.mxu0 0.0
        %4250 = vmatprep.subr.mxu0 0.0
        %4251 = vmatpush2.msra.mxu0 0.0
        %4252 = vmatprep.subr.mxu0 0.0
        %4253 = vmatpush2.msra.mxu0 0.0
        %4254 = vmatprep.subr.mxu0 0.0
        %4255 = vmatpush2.msra.mxu0 0.0
        %4256 = vmatprep.subr.mxu0 0.0
        %4257 = vmatpush2.msra.mxu0 0.0
        %4258 = vmatprep.subr.mxu0 0.0
        %4259 = vmatpush2.msra.mxu0 0.0
        %4260 = vmatprep.subr.mxu0 0.0
        %4261 = vmatpush2.msra.mxu0 0.0
        %4262 = vmatprep.subr.mxu0 0.0
        %4263 = vmatpush2.msra.mxu0 0.0
        %4264 = vmatprep.subr.mxu0 0.0
        %4265 = vmatpush2.msra.mxu0 0.0
        %4266 = vmatprep.subr.mxu0 0.0
        %4267 = vmatpush2.msra.mxu0 0.0
        %4268 = vmatprep.subr.mxu0 0.0
        %4269 = vmatpush2.msra.mxu0 0.0
        %4270 = vmatprep.subr.mxu0 0.0
        %4271 = vmatpush2.msra.mxu0 0.0
        %4272 = vmatprep.mubr.f32.mxu0 0.0
        %4273 = vmatmul.mubr.f32.gmra.mxu0 %v4200
        %v4274 = vpop.f32.mrf.mxu0
        %v4275 = vadd.f32 0.0, %v4274
        %v4276 = vpop.f32.mrf.mxu0
        %4277 = vmatprep.mubr.f32.mxu0 0.0
        %4278 = vmatmul.mubr.f32.gmra.mxu0 %v4203
        %v4279 = vpop.f32.mrf.mxu0
        %v4280 = vadd.f32 0.0, %v4279
        %v4281 = vpop.f32.mrf.mxu0
        %4282 = vmatprep.mubr.f32.mxu0 0.0
        %4283 = vmatmul.mubr.f32.gmra.mxu0 %v4206
        %v4284 = vpop.f32.mrf.mxu0
        %v4285 = vadd.f32 0.0, %v4284
        %v4286 = vpop.f32.mrf.mxu0
        %4287 = vdwg.mxu0
        %v4288 = vadd.f32 %v3960, %v4275
        %v4289 = vadd.f32 %v3961, %v4280
        %v4290 = vadd.f32 %v3962, %v4285
        %v4291 = vadd.f32 %v2845, %v4288
        %v4292 = vadd.f32 %v2846, %v4289
        %v4293 = vadd.f32 %v2847, %v4290
        %v4294 = vadd.f32 %v4291, %v2579
        %v4295 = vadd.f32 %v4292, %v2579
        %v4296 = vadd.f32 %v4293, %v2579
        %v4297 = vsel %vm1104, %v4294, 0.0
        %4298 = vadd.xlane.f32.xlu0 %v4297
        %v4299 = vpop.xlane.xlu0 %4298
        %v4300 = vsel %vm1104, %v4295, 0.0
        %4301 = vadd.xlane.f32.xlu0 %v4300
        %v4302 = vpop.xlane.xlu0 %4301
        %v4303 = vsel %vm1111, %v4296, 0.0
        %4304 = vadd.xlane.f32.xlu0 %v4303
        %v4305 = vpop.xlane.xlu0 %4304
        %v4306 = vmul.f32 %v4299, %v1115
        %v4307 = vmul.f32 %v4302, %v1115
        %v4308 = vmul.f32 %v4305, %v1115
        %v4309 = vsub.f32 %v4294, %v4306
        %v4310 = vsub.f32 %v4295, %v4307
        %v4311 = vsub.f32 %v4296, %v4308
        %v4312 = vmul.f32 %v4309, %v4309
        %v4313 = vmul.f32 %v4310, %v4310
        %v4314 = vmul.f32 %v4311, %v4311
        %v4315 = vsel %vm1104, %v4312, 0.0
        %4316 = vadd.xlane.f32.xlu0 %v4315
        %v4317 = vpop.xlane.xlu0 %4316
        %v4318 = vsel %vm1104, %v4313, 0.0
        %4319 = vadd.xlane.f32.xlu0 %v4318
        %v4320 = vpop.xlane.xlu0 %4319
        %v4321 = vsel %vm1111, %v4314, 0.0
        %4322 = vadd.xlane.f32.xlu0 %v4321
        %v4323 = vpop.xlane.xlu0 %4322
        %v4324 = vmul.f32 %v4317, %v1115
        %v4325 = vmul.f32 %v4320, %v1115
        %v4326 = vmul.f32 %v4323, %v1115
        %v4327 = vadd.f32 %v4324, 1e-05
        %v4328 = vadd.f32 %v4325, 1e-05
        %v4329 = vadd.f32 %v4326, 1e-05
        %v4330 = vrsqrt.pop %v4327
        %v4331 = vrsqrt.pop %v4328
        %v4332 = vrsqrt.pop %v4329
        %v4333 = vmul.f32 %v4309, %v4330
        %v4334 = vmul.f32 %v4310, %v4331
        %v4335 = vmul.f32 %v4311, %v4332
        %v4336 = vmul.f32 %v4333, %v2627
        %v4337 = vmul.f32 %v4334, %v2627
        %v4338 = vmul.f32 %v4335, %v2627
        %v4339 = vadd.f32 %v4336, %v2636
        %v4340 = vadd.f32 %v4337, %v2636
        %v4341 = vadd.f32 %v4338, %v2636
        %v4343 = vsel %vm1104, %v4339, 0
        %v4346 = vsel %vm1104, %v4340, 0
        %v4349 = vsel %vm1104, %v4341, 0
        %4351 = vmatprep.subr.mxu0 0.0
        %4352 = vmatpush1.msra.mxu0 0.0
        %4353 = vmatprep.subr.mxu0 0.0
        %4354 = vmatpush1.msra.mxu0 0.0
        %4355 = vmatprep.subr.mxu0 0.0
        %4356 = vmatpush1.msra.mxu0 0.0
        %4357 = vmatprep.subr.mxu0 0.0
        %4358 = vmatpush1.msra.mxu0 0.0
        %4359 = vmatprep.subr.mxu0 0.0
        %4360 = vmatpush1.msra.mxu0 0.0
        %4361 = vmatprep.subr.mxu0 0.0
        %4362 = vmatpush1.msra.mxu0 0.0
        %4363 = vmatprep.subr.mxu0 0.0
        %4364 = vmatpush1.msra.mxu0 0.0
        %4365 = vmatprep.subr.mxu0 0.0
        %4366 = vmatpush1.msra.mxu0 0.0
        %4367 = vmatprep.subr.mxu0 0.0
        %4368 = vmatpush1.msra.mxu0 0.0
        %4369 = vmatprep.subr.mxu0 0.0
        %4370 = vmatpush1.msra.mxu0 0.0
        %4371 = vmatprep.subr.mxu0 0.0
        %4372 = vmatpush1.msra.mxu0 0.0
        %4373 = vmatprep.subr.mxu0 0.0
        %4374 = vmatpush1.msra.mxu0 0.0
        %4375 = vmatprep.subr.mxu0 0.0
        %4376 = vmatpush1.msra.mxu0 %v1090
        %4377 = vmatprep.subr.mxu0 0.0
        %4378 = vmatpush1.msra.mxu0 %v1089
        %4379 = vmatprep.subr.mxu0 0.0
        %4380 = vmatpush1.msra.mxu0 %v1088
        %4381 = vmatprep.subr.mxu0 0.0
        %4382 = vmatpush1.msra.mxu0 %v1087
        %4383 = vmatprep.subr.mxu0 0.0
        %4384 = vmatpush2.msra.mxu0 0.0
        %4385 = vmatprep.subr.mxu0 0.0
        %4386 = vmatpush2.msra.mxu0 0.0
        %4387 = vmatprep.subr.mxu0 0.0
        %4388 = vmatpush2.msra.mxu0 0.0
        %4389 = vmatprep.subr.mxu0 0.0
        %4390 = vmatpush2.msra.mxu0 0.0
        %4391 = vmatprep.subr.mxu0 0.0
        %4392 = vmatpush2.msra.mxu0 0.0
        %4393 = vmatprep.subr.mxu0 0.0
        %4394 = vmatpush2.msra.mxu0 0.0
        %4395 = vmatprep.subr.mxu0 0.0
        %4396 = vmatpush2.msra.mxu0 0.0
        %4397 = vmatprep.subr.mxu0 0.0
        %4398 = vmatpush2.msra.mxu0 0.0
        %4399 = vmatprep.subr.mxu0 0.0
        %4400 = vmatpush2.msra.mxu0 0.0
        %4401 = vmatprep.subr.mxu0 0.0
        %4402 = vmatpush2.msra.mxu0 0.0
        %4403 = vmatprep.subr.mxu0 0.0
        %4404 = vmatpush2.msra.mxu0 0.0
        %4405 = vmatprep.subr.mxu0 0.0
        %4406 = vmatpush2.msra.mxu0 0.0
        %4407 = vmatprep.subr.mxu0 0.0
        %4408 = vmatpush2.msra.mxu0 0.0
        %4409 = vmatprep.subr.mxu0 0.0
        %4410 = vmatpush2.msra.mxu0 0.0
        %4411 = vmatprep.subr.mxu0 0.0
        %4412 = vmatpush2.msra.mxu0 0.0
        %4413 = vmatprep.subr.mxu0 0.0
        %4414 = vmatpush2.msra.mxu0 0.0
        %4415 = vmatprep.mubr.f32.mxu0 0.0
        %4416 = vmatmul.mubr.f32.gmra.mxu0 %v4343
        %v4417 = vpop.f32.mrf.mxu0
        %v4418 = vadd.f32 %v2645, %v4417
        %v4419 = vpop.f32.mrf.mxu0
        %4420 = vmatprep.mubr.f32.mxu0 0.0
        %4421 = vmatmul.mubr.f32.gmra.mxu0 %v4346
        %v4422 = vpop.f32.mrf.mxu0
        %v4423 = vadd.f32 %v2645, %v4422
        %v4424 = vpop.f32.mrf.mxu0
        %4425 = vmatprep.mubr.f32.mxu0 0.0
        %4426 = vmatmul.mubr.f32.gmra.mxu0 %v4349
        %v4427 = vpop.f32.mrf.mxu0
        %v4428 = vadd.f32 %v2645, %v4427
        %v4429 = vpop.f32.mrf.mxu0
        %4430 = vdwg.mxu0
        %v4431 = vmax.f32 %v4418, 0.0
        %v4432 = vmax.f32 %v4423, 0.0
        %v4433 = vmax.f32 %v4428, 0.0
        %v4435 = vsel %vm2739, %v4431, 0
        %v4438 = vsel %vm2739, %v4432, 0
        %v4441 = vsel %vm2739, %v4433, 0
        %4443 = vmatprep.subr.mxu0 0.0
        %4444 = vmatpush1.msra.mxu0 0.0
        %4445 = vmatprep.subr.mxu0 0.0
        %4446 = vmatpush1.msra.mxu0 0.0
        %4447 = vmatprep.subr.mxu0 0.0
        %4448 = vmatpush1.msra.mxu0 0.0
        %4449 = vmatprep.subr.mxu0 0.0
        %4450 = vmatpush1.msra.mxu0 0.0
        %4451 = vmatprep.subr.mxu0 0.0
        %4452 = vmatpush1.msra.mxu0 0.0
        %4453 = vmatprep.subr.mxu0 0.0
        %4454 = vmatpush1.msra.mxu0 0.0
        %4455 = vmatprep.subr.mxu0 0.0
        %4456 = vmatpush1.msra.mxu0 0.0
        %4457 = vmatprep.subr.mxu0 0.0
        %4458 = vmatpush1.msra.mxu0 0.0
        %4459 = vmatprep.subr.mxu0 0.0
        %4460 = vmatpush1.msra.mxu0 %v1099
        %4461 = vmatprep.subr.mxu0 0.0
        %4462 = vmatpush1.msra.mxu0 %v1098
        %4463 = vmatprep.subr.mxu0 0.0
        %4464 = vmatpush1.msra.mxu0 %v1097
        %4465 = vmatprep.subr.mxu0 0.0
        %4466 = vmatpush1.msra.mxu0 %v1096
        %4467 = vmatprep.subr.mxu0 0.0
        %4468 = vmatpush1.msra.mxu0 %v1095
        %4469 = vmatprep.subr.mxu0 0.0
        %4470 = vmatpush1.msra.mxu0 %v1094
        %4471 = vmatprep.subr.mxu0 0.0
        %4472 = vmatpush1.msra.mxu0 %v1093
        %4473 = vmatprep.subr.mxu0 0.0
        %4474 = vmatpush1.msra.mxu0 %v1092
        %4475 = vmatprep.subr.mxu0 0.0
        %4476 = vmatpush2.msra.mxu0 0.0
        %4477 = vmatprep.subr.mxu0 0.0
        %4478 = vmatpush2.msra.mxu0 0.0
        %4479 = vmatprep.subr.mxu0 0.0
        %4480 = vmatpush2.msra.mxu0 0.0
        %4481 = vmatprep.subr.mxu0 0.0
        %4482 = vmatpush2.msra.mxu0 0.0
        %4483 = vmatprep.subr.mxu0 0.0
        %4484 = vmatpush2.msra.mxu0 0.0
        %4485 = vmatprep.subr.mxu0 0.0
        %4486 = vmatpush2.msra.mxu0 0.0
        %4487 = vmatprep.subr.mxu0 0.0
        %4488 = vmatpush2.msra.mxu0 0.0
        %4489 = vmatprep.subr.mxu0 0.0
        %4490 = vmatpush2.msra.mxu0 0.0
        %4491 = vmatprep.subr.mxu0 0.0
        %4492 = vmatpush2.msra.mxu0 0.0
        %4493 = vmatprep.subr.mxu0 0.0
        %4494 = vmatpush2.msra.mxu0 0.0
        %4495 = vmatprep.subr.mxu0 0.0
        %4496 = vmatpush2.msra.mxu0 0.0
        %4497 = vmatprep.subr.mxu0 0.0
        %4498 = vmatpush2.msra.mxu0 0.0
        %4499 = vmatprep.subr.mxu0 0.0
        %4500 = vmatpush2.msra.mxu0 0.0
        %4501 = vmatprep.subr.mxu0 0.0
        %4502 = vmatpush2.msra.mxu0 0.0
        %4503 = vmatprep.subr.mxu0 0.0
        %4504 = vmatpush2.msra.mxu0 0.0
        %4505 = vmatprep.subr.mxu0 0.0
        %4506 = vmatpush2.msra.mxu0 0.0
        %4507 = vmatprep.mubr.f32.mxu0 0.0
        %4508 = vmatmul.mubr.f32.gmra.mxu0 %v4435
        %v4509 = vpop.f32.mrf.mxu0
        %v4510 = vadd.f32 0.0, %v4509
        %v4511 = vpop.f32.mrf.mxu0
        %4512 = vmatprep.mubr.f32.mxu0 0.0
        %4513 = vmatmul.mubr.f32.gmra.mxu0 %v4438
        %v4514 = vpop.f32.mrf.mxu0
        %v4515 = vadd.f32 0.0, %v4514
        %v4516 = vpop.f32.mrf.mxu0
        %4517 = vmatprep.mubr.f32.mxu0 0.0
        %4518 = vmatmul.mubr.f32.gmra.mxu0 %v4441
        %v4519 = vpop.f32.mrf.mxu0
        %v4520 = vadd.f32 0.0, %v4519
        %v4521 = vpop.f32.mrf.mxu0
        %4522 = vdwg.mxu0
        %v4523 = vadd.f32 %v4294, %v4510
        %v4524 = vadd.f32 %v4295, %v4515
        %v4525 = vadd.f32 %v4296, %v4520
        %v4526 = vadd.f32 %v4523, %v2836
        %v4527 = vadd.f32 %v4524, %v2836
        %v4528 = vadd.f32 %v4525, %v2836
        %4529 = vst.msk [vmem:[%s2844] sm:$0xff] %vm1104, %v4526
        %4530 = vst.msk [vmem:[%s2844 + $0x8] sm:$0xff] %vm1104, %v4527
        %4531 = vst.msk [vmem:[%s2844 + $0x10] sm:$0x1] %vm1111, %v4528
        %p4532 = scmp.eq.s32.totalorder %s38, 1
        // Predicated region
        $region109: #{vit_forward.1} parent=103 // pred_check
          %p4533 = pneg %p4532
        $region110: #{vit_forward.1} parent=103 // pred_check_branch
          %4535 = sbr.rel (%p4533) target = $region112
        $region111: #{vit_forward.1} parent=103 // pred_region
          %v4536 = vld [vmem:[%s17] sm:$0x1]
          %v4537 = vld [vmem:[%s18] sm:$0x1]
          %v4538 = vld [vmem:[%s19] sm:$0xff]
          %v4539 = vld [vmem:[%s19 + $0x8] sm:$0xff]
          %v4540 = vld [vmem:[%s19 + $0x10] sm:$0xff]
          %v4541 = vld [vmem:[%s19 + $0x18] sm:$0xff]
          %v4542 = vld [vmem:[%s20] sm:$0x1]
          %v4543 = vld [vmem:[#allocation2] sm:$0x1]
          %v4544 = vsel %vm1111, %v4543, 0.0
          %4545 = vadd.xlane.f32.xlu0 %v4544
          %v4546 = vpop.xlane.xlu0 %4545
          %v4547 = vmul.f32 %v4546, %v1115
          %v4548 = vsub.f32 %v4543, %v4547
          %v4549 = vmul.f32 %v4548, %v4548
          %v4550 = vsel %vm1111, %v4549, 0.0
          %4551 = vadd.xlane.f32.xlu0 %v4550
          %v4552 = vpop.xlane.xlu0 %4551
          %v4553 = vmul.f32 %v4552, %v1115
          %v4554 = vadd.f32 %v4553, 1e-05
          %v4555 = vrsqrt.pop %v4554
          %v4556 = vmul.f32 %v4548, %v4555
          %v4557 = vmul.f32 %v4556, %v4536
          %v4558 = vadd.f32 %v4557, %v4537
          %v4560 = vsel %vm1104, %v4558, 0
          %4562 = vmatprep.subr.mxu0 0.0
          %4563 = vmatpush1.msra.mxu0 0.0
          %4564 = vmatprep.subr.mxu0 0.0
          %4565 = vmatpush1.msra.mxu0 0.0
          %4566 = vmatprep.subr.mxu0 0.0
          %4567 = vmatpush1.msra.mxu0 0.0
          %4568 = vmatprep.subr.mxu0 0.0
          %4569 = vmatpush1.msra.mxu0 0.0
          %4570 = vmatprep.subr.mxu0 0.0
          %4571 = vmatpush1.msra.mxu0 0.0
          %4572 = vmatprep.subr.mxu0 0.0
          %4573 = vmatpush1.msra.mxu0 0.0
          %4574 = vmatprep.subr.mxu0 0.0
          %4575 = vmatpush1.msra.mxu0 0.0
          %4576 = vmatprep.subr.mxu0 0.0
          %4577 = vmatpush1.msra.mxu0 0.0
          %4578 = vmatprep.subr.mxu0 0.0
          %4579 = vmatpush1.msra.mxu0 0.0
          %4580 = vmatprep.subr.mxu0 0.0
          %4581 = vmatpush1.msra.mxu0 0.0
          %4582 = vmatprep.subr.mxu0 0.0
          %4583 = vmatpush1.msra.mxu0 0.0
          %4584 = vmatprep.subr.mxu0 0.0
          %4585 = vmatpush1.msra.mxu0 0.0
          %4586 = vmatprep.subr.mxu0 0.0
          %4587 = vmatpush1.msra.mxu0 %v4541
          %4588 = vmatprep.subr.mxu0 0.0
          %4589 = vmatpush1.msra.mxu0 %v4540
          %4590 = vmatprep.subr.mxu0 0.0
          %4591 = vmatpush1.msra.mxu0 %v4539
          %4592 = vmatprep.subr.mxu0 0.0
          %4593 = vmatpush1.msra.mxu0 %v4538
          %4594 = vmatprep.subr.mxu0 0.0
          %4595 = vmatpush2.msra.mxu0 0.0
          %4596 = vmatprep.subr.mxu0 0.0
          %4597 = vmatpush2.msra.mxu0 0.0
          %4598 = vmatprep.subr.mxu0 0.0
          %4599 = vmatpush2.msra.mxu0 0.0
          %4600 = vmatprep.subr.mxu0 0.0
          %4601 = vmatpush2.msra.mxu0 0.0
          %4602 = vmatprep.subr.mxu0 0.0
          %4603 = vmatpush2.msra.mxu0 0.0
          %4604 = vmatprep.subr.mxu0 0.0
          %4605 = vmatpush2.msra.mxu0 0.0
          %4606 = vmatprep.subr.mxu0 0.0
          %4607 = vmatpush2.msra.mxu0 0.0
          %4608 = vmatprep.subr.mxu0 0.0
          %4609 = vmatpush2.msra.mxu0 0.0
          %4610 = vmatprep.subr.mxu0 0.0
          %4611 = vmatpush2.msra.mxu0 0.0
          %4612 = vmatprep.subr.mxu0 0.0
          %4613 = vmatpush2.msra.mxu0 0.0
          %4614 = vmatprep.subr.mxu0 0.0
          %4615 = vmatpush2.msra.mxu0 0.0
          %4616 = vmatprep.subr.mxu0 0.0
          %4617 = vmatpush2.msra.mxu0 0.0
          %4618 = vmatprep.subr.mxu0 0.0
          %4619 = vmatpush2.msra.mxu0 0.0
          %4620 = vmatprep.subr.mxu0 0.0
          %4621 = vmatpush2.msra.mxu0 0.0
          %4622 = vmatprep.subr.mxu0 0.0
          %4623 = vmatpush2.msra.mxu0 0.0
          %4624 = vmatprep.subr.mxu0 0.0
          %4625 = vmatpush2.msra.mxu0 0.0
          %4626 = vmatprep.mubr.f32.mxu0 0.0
          %4627 = vmatmul.mubr.f32.gmra.mxu0 %v4560
          %v4628 = vpop.f32.mrf.mxu0
          %v4629 = vadd.f32 %v4542, %v4628
          %v4630 = vpop.f32.mrf.mxu0
          %4631 = vdwg.mxu0
          %vm4632 = vcmask 73728
          %4633 = vst.msk [vmem:[#allocation3] sm:$0x1] %vm4632, %v4629
          %v4634 = vld [vmem:[%s2844] sm:$0x1]
          %v4635 = vsel %vm1111, %v4634, 0.0
          %4636 = vadd.xlane.f32.xlu0 %v4635
          %v4637 = vpop.xlane.xlu0 %4636
          %v4638 = vmul.f32 %v4637, %v1115
          %v4639 = vsub.f32 %v4634, %v4638
          %v4640 = vmul.f32 %v4639, %v4639
          %v4641 = vsel %vm1111, %v4640, 0.0
          %4642 = vadd.xlane.f32.xlu0 %v4641
          %v4643 = vpop.xlane.xlu0 %4642
          %v4644 = vmul.f32 %v4643, %v1115
          %v4645 = vadd.f32 %v4644, 1e-05
          %v4646 = vrsqrt.pop %v4645
          %v4647 = vmul.f32 %v4639, %v4646
          %v4648 = vmul.f32 %v4647, %v4536
          %v4649 = vadd.f32 %v4648, %v4537
          %v4651 = vsel %vm1104, %v4649, 0
          %4653 = vmatprep.subr.mxu0 0.0
          %4654 = vmatpush1.msra.mxu0 0.0
          %4655 = vmatprep.subr.mxu0 0.0
          %4656 = vmatpush1.msra.mxu0 0.0
          %4657 = vmatprep.subr.mxu0 0.0
          %4658 = vmatpush1.msra.mxu0 0.0
          %4659 = vmatprep.subr.mxu0 0.0
          %4660 = vmatpush1.msra.mxu0 0.0
          %4661 = vmatprep.subr.mxu0 0.0
          %4662 = vmatpush1.msra.mxu0 0.0
          %4663 = vmatprep.subr.mxu0 0.0
          %4664 = vmatpush1.msra.mxu0 0.0
          %4665 = vmatprep.subr.mxu0 0.0
          %4666 = vmatpush1.msra.mxu0 0.0
          %4667 = vmatprep.subr.mxu0 0.0
          %4668 = vmatpush1.msra.mxu0 0.0
          %4669 = vmatprep.subr.mxu0 0.0
          %4670 = vmatpush1.msra.mxu0 0.0
          %4671 = vmatprep.subr.mxu0 0.0
          %4672 = vmatpush1.msra.mxu0 0.0
          %4673 = vmatprep.subr.mxu0 0.0
          %4674 = vmatpush1.msra.mxu0 0.0
          %4675 = vmatprep.subr.mxu0 0.0
          %4676 = vmatpush1.msra.mxu0 0.0
          %4677 = vmatprep.subr.mxu0 0.0
          %4678 = vmatpush1.msra.mxu0 %v4541
          %4679 = vmatprep.subr.mxu0 0.0
          %4680 = vmatpush1.msra.mxu0 %v4540
          %4681 = vmatprep.subr.mxu0 0.0
          %4682 = vmatpush1.msra.mxu0 %v4539
          %4683 = vmatprep.subr.mxu0 0.0
          %4684 = vmatpush1.msra.mxu0 %v4538
          %4685 = vmatprep.subr.mxu0 0.0
          %4686 = vmatpush2.msra.mxu0 0.0
          %4687 = vmatprep.subr.mxu0 0.0
          %4688 = vmatpush2.msra.mxu0 0.0
          %4689 = vmatprep.subr.mxu0 0.0
          %4690 = vmatpush2.msra.mxu0 0.0
          %4691 = vmatprep.subr.mxu0 0.0
          %4692 = vmatpush2.msra.mxu0 0.0
          %4693 = vmatprep.subr.mxu0 0.0
          %4694 = vmatpush2.msra.mxu0 0.0
          %4695 = vmatprep.subr.mxu0 0.0
          %4696 = vmatpush2.msra.mxu0 0.0
          %4697 = vmatprep.subr.mxu0 0.0
          %4698 = vmatpush2.msra.mxu0 0.0
          %4699 = vmatprep.subr.mxu0 0.0
          %4700 = vmatpush2.msra.mxu0 0.0
          %4701 = vmatprep.subr.mxu0 0.0
          %4702 = vmatpush2.msra.mxu0 0.0
          %4703 = vmatprep.subr.mxu0 0.0
          %4704 = vmatpush2.msra.mxu0 0.0
          %4705 = vmatprep.subr.mxu0 0.0
          %4706 = vmatpush2.msra.mxu0 0.0
          %4707 = vmatprep.subr.mxu0 0.0
          %4708 = vmatpush2.msra.mxu0 0.0
          %4709 = vmatprep.subr.mxu0 0.0
          %4710 = vmatpush2.msra.mxu0 0.0
          %4711 = vmatprep.subr.mxu0 0.0
          %4712 = vmatpush2.msra.mxu0 0.0
          %4713 = vmatprep.subr.mxu0 0.0
          %4714 = vmatpush2.msra.mxu0 0.0
          %4715 = vmatprep.subr.mxu0 0.0
          %4716 = vmatpush2.msra.mxu0 0.0
          %4717 = vmatprep.mubr.f32.mxu0 0.0
          %4718 = vmatmul.mubr.f32.gmra.mxu0 %v4651
          %v4719 = vpop.f32.mrf.mxu0
          %v4720 = vadd.f32 %v4542, %v4719
          %v4721 = vpop.f32.mrf.mxu0
          %4722 = vdwg.mxu0
          %4723 = vst.msk [vmem:[#allocation3 + $0x1] sm:$0x1] %vm4632, %v4720
        $region112: #{vit_forward.1} parent=103 // pred_fallthru
          _
        // Predicated region
        $region113: #{vit_forward.1} parent=103 // pred_check
          %p4724 = pneg %p569
        $region114: #{vit_forward.1} parent=103 // pred_check_branch
          %4726 = sbr.rel (%p4724) target = $region116
        $region115: #{vit_forward.1} parent=103 // pred_region
          %s4728 = ssub.s32 32, 32
          %4729 = vsyncadd [#allocation4], %s4728
          %s4730 = smul.addr %s37, 32
          %s4731 = scalar_lea.hbm %s21, %s4730
          %s4733 = sshll.u32 [#allocation3], 4
          %s4734 = int_to_ptr.vmem [resolvable:$true] %s4733
          %4736 = dma.vmem_to_hbm [thread:$0]  %s4734, 32, %s4731, [#allocation4]
        $region116: #{vit_forward.1} parent=103 // pred_fallthru
          _
        // Predicated region
        $region117: #{vit_forward.1} parent=103 // pred_check
          %p4737 = pneg %p569
        $region118: #{vit_forward.1} parent=103 // pred_check_branch
          %4739 = sbr.rel (%p4737) target = $region120
        $region119: #{vit_forward.1} parent=103 // pred_region
          %4740 = dma.done [#allocation4], 32
        $region120: #{vit_forward.1} parent=103 // pred_fallthru
          _
      $region104: #{vit_forward.1} parent=5 // pred_fallthru
        _
      %p4741 = scmp.le.s32.totalorder 2, %s28
      // Predicated region
      $region121: #{vit_forward.1} parent=5 // pred_check
        %p4742 = pneg %p4741
      $region122: #{vit_forward.1} parent=5 // pred_check_branch
        %4744 = sbr.rel (%p4742) target = $region124
      $region123: #{vit_forward.1} parent=5 // pred_region
        %s4745 = ssub.s32 %s28, 2
      $region124: #{vit_forward.1} parent=5 // pred_fallthru
        _
    $region6: #{vit_forward.1} parent=1 // loop_footer
      %s32 = sadd.s32 1, %s28
    $region7: #{vit_forward.1} parent=1 // loop_footer_branch
      %27 = sbr.rel target = $region3
    $region8: #{vit_forward.1} parent=1 // loop_exit
      _
    %4746 = vsyncpa [#allocation4], 1
    %s4747 = scalar_lea.sflag [#allocation4], 1
    %4748 = vsyncpa %s4747, 1

</llo_original>
